<compile_context>
chip_gen: v6e
topology: v6e:2x2x1
jax: 0.10.0
libtpu: 0.0.40
codegen_flags: <defaults>
</compile_context>

<pallas_src>
import jax
import jax.numpy as jnp
from jax import lax
from jax.experimental import pallas as pl
from jax.experimental.pallas import tpu as pltpu


def _round_up(x, m):
    return ((x + m - 1) // m) * m


def _box_decomp(k):
    """Pick (g, m, r) with k = m*g + r minimizing slab loads (g + m + r)."""
    best = (k, 1, k, 0)                     # direct k-tap fallback
    for g in range(2, k + 1):
        m, r = divmod(k, g)
        if m < 2:
            continue
        cost = g + m + r
        if cost < best[0]:
            best = (cost, g, m, r)
    _, g, m, r = best
    return g, m, r


def _make_kernel(D, k, W, Hp, Wp, LPAD, SPAD, g, m, r, U, T, tail):
    rad = (k - 1) // 2
    PADR = 2 * U                 # replicate-pad width of the shifted-right buffers
    A0 = LPAD - rad              # horizontal tap base (hpad scratch columns)
    Av = SPAD - rad              # vertical tap base (vpad scratch rows)
    NW = Wp + (m - 1) * g        # width of the horizontal partial-sum band
    NH = Hp + (m - 1) * g        # height of the vertical partial-sum band
    two_level = (g >= 2 and m >= 2)

    def hsum_taps(hpad_ref, th_ref):
        # k-tap horizontal sliding sum of the zero-bordered hpad scratch,
        # evaluated at output columns [0, Wp).
        if two_level:
            s = hpad_ref[:, A0:A0 + NW]
            for i in range(1, g):
                s = s + hpad_ref[:, A0 + i:A0 + i + NW]
            th_ref[:, A0:A0 + NW] = s
            out = th_ref[:, A0:A0 + Wp]
            for t in range(1, m):
                out = out + th_ref[:, A0 + t * g:A0 + t * g + Wp]
            for j in range(r):
                c = A0 + m * g + j
                out = out + hpad_ref[:, c:c + Wp]
        else:
            out = hpad_ref[:, A0:A0 + Wp]
            for j in range(1, k):
                out = out + hpad_ref[:, A0 + j:A0 + j + Wp]
        return out

    def vsum_taps(vpad_ref, tv_ref):
        # k-tap vertical sliding sum, evaluated at output rows [0, Hp).
        if two_level:
            s = vpad_ref[Av:Av + NH, :]
            for i in range(1, g):
                s = s + vpad_ref[Av + i:Av + i + NH, :]
            tv_ref[Av:Av + NH, :] = s
            out = tv_ref[Av:Av + Hp, :]
            for t in range(1, m):
                out = out + tv_ref[Av + t * g:Av + t * g + Hp, :]
            for j in range(r):
                rr = Av + m * g + j
                out = out + vpad_ref[rr:rr + Hp, :]
        else:
            out = vpad_ref[Av:Av + Hp, :]
            for j in range(1, k):
                out = out + vpad_ref[Av + j:Av + j + Hp, :]
        return out

    def kernel(l_ref, r_ref, out_ref, hpad_ref, th_ref, vpad_ref, tv_ref,
               ra_ref, rb_ref, bc_ref):
        # ---- per-batch-step init (cheap: border-only stores + priming) ------
        # Zero only the never-written borders of the conv scratches; the
        # centers are fully overwritten every disparity.  Done per grid step so
        # megacore sharding of the batch axis stays correct.
        hpad_ref[:, 0:LPAD] = jnp.zeros((Hp, LPAD), jnp.float32)
        hpad_ref[:, LPAD + W:Wp + 2 * LPAD] = jnp.zeros(
            (Hp, Wp + LPAD - W), jnp.float32)
        vpad_ref[0:SPAD, :] = jnp.zeros((SPAD, Wp), jnp.float32)
        vpad_ref[SPAD + Hp:Hp + 2 * SPAD, :] = jnp.zeros((SPAD, Wp), jnp.float32)

        # Prime the ping-pong shifted-right buffers.  Invariant: the buffer for
        # chunk base `b` holds right[max(x-b, 0)] at lane-aligned columns
        # [128, 128+Wp), and right[:, 0] (the replicate value, valid for every
        # base) at columns [128-PADR, 128).
        rep = jnp.broadcast_to(r_ref[0, :, 0:1], (Hp, PADR))
        ra_ref[:, 128:128 + Wp] = r_ref[0]
        ra_ref[:, 128 - PADR:128] = rep
        rb_ref[:, 128 - PADR:128] = rep

        bc_ref[...] = jnp.full((Hp, Wp), jnp.inf, jnp.float32)
        out_ref[0] = jnp.zeros((Hp, Wp), jnp.int32)

        # ---- one disparity --------------------------------------------------
        def do_disparity(d, rs):
            left = l_ref[0]                                  # (Hp, Wp) f32
            diff = jnp.abs(left - rs)
            # Store only the W valid columns: the tail of hpad stays zero,
            # reproducing the conv's zero padding with no per-d mask multiply.
            hpad_ref[:, LPAD:LPAD + W] = diff[:, :W]
            hsum = hsum_taps(hpad_ref, th_ref)
            vpad_ref[SPAD:SPAD + Hp, :] = hsum
            cost = vsum_taps(vpad_ref, tv_ref)
            # Running min / first-occurrence argmin (strict '<').
            better = cost < bc_ref[...]
            bc_ref[...] = jnp.where(better, cost, bc_ref[...])
            out_ref[0] = jnp.where(better, jnp.asarray(d, jnp.int32), out_ref[0])

        def chunk(buf_ref, base):
            # buf_ref holds the shifted right image for disparity `base`;
            # disparity base+j is the static slice at lane offset 128-j.
            for j in range(U):
                do_disparity(base + j, buf_ref[:, 128 - j:128 - j + Wp])

        # ---- disparity loop: fori over pairs of chunks (all offsets static) -
        if T > 0:
            def body(t, carry):
                base = (2 * U) * t
                chunk(ra_ref, base)
                # rb <- right shifted by base+U (static U-lane shift of ra)
                rb_ref[:, 128:128 + Wp] = ra_ref[:, 128 - U:128 - U + Wp]
                chunk(rb_ref, base + U)
                # ra <- right shifted by base+2U (for next iteration / tail)
                ra_ref[:, 128:128 + Wp] = rb_ref[:, 128 - U:128 - U + Wp]
                return carry
            lax.fori_loop(0, T, body, 0)

        # Static tail (D not a multiple of 2*U); ra now holds shift 2*U*T.
        for j in range(tail):
            do_disparity(2 * U * T + j, ra_ref[:, 128 - j:128 - j + Wp])

    return kernel


def stereo_bm_pallas(left, right, block_size=15, max_disparity=64):
    B, C, H, W = left.shape
    assert C == 1, "StereoBM's ones window is single-channel; inputs must be grayscale"
    assert block_size % 2 == 1, "padding='same' semantics implemented for odd block_size"

    D = int(max_disparity)
    k = int(block_size)
    rad = (k - 1) // 2

    Hp = _round_up(H, 8)                       # sublane-aligned rows
    Wp = _round_up(W, 128)                     # lane-dense columns (unmasked stores)
    LPAD = _round_up(max(rad, 1), 128)         # aligned center column in hpad
    SPAD = _round_up(max(rad, 1), 8)           # aligned center row in vpad

    g, m, r = _box_decomp(k)                   # k = m*g + r two-level tap split

    U = 4                                      # disparities per chunk (static offsets)
    T = D // (2 * U)                           # fori trip count (2U disparities / iter)
    tail = D - 2 * U * T                       # static tail (< 2U <= replicate pad)

    l_p = jnp.pad(left[:, 0].astype(jnp.float32),
                  ((0, 0), (0, Hp - H), (0, Wp - W)))
    r_p = jnp.pad(right[:, 0].astype(jnp.float32),
                  ((0, 0), (0, Hp - H), (0, Wp - W)))

    kernel = _make_kernel(D, k, W, Hp, Wp, LPAD, SPAD, g, m, r, U, T, tail)

    adds_per_pass = (g - 1) + (m - 1) + r if (g >= 2 and m >= 2) else (k - 1)
    flops = int(B) * D * Hp * Wp * (2 * adds_per_pass + 5)
    bytes_accessed = 4 * int(B) * Hp * Wp * 3

    # Real resident set: double-buffered in/out blocks + all scratches.
    vmem_words = (6 * Hp * Wp
                  + 2 * Hp * (Wp + 2 * LPAD)
                  + 2 * (Hp + 2 * SPAD) * Wp
                  + 2 * Hp * (128 + Wp)
                  + Hp * Wp)
    vmem_bytes = 4 * vmem_words
    vmem_limit = None
    if vmem_bytes > 16 * 1024 * 1024:
        # Raise the scoped limit toward the real footprint (caps at physical).
        vmem_limit = min(vmem_bytes + (2 << 20), 128 * 1024 * 1024)

    out = pl.pallas_call(
        kernel,
        out_shape=jax.ShapeDtypeStruct((B, Hp, Wp), jnp.int32),
        grid_spec=pltpu.PrefetchScalarGridSpec(
            num_scalar_prefetch=0,
            grid=(B,),
            in_specs=[
                pl.BlockSpec((1, Hp, Wp), lambda b: (b, 0, 0)),   # left  (padded)
                pl.BlockSpec((1, Hp, Wp), lambda b: (b, 0, 0)),   # right (padded)
            ],
            out_specs=pl.BlockSpec((1, Hp, Wp), lambda b: (b, 0, 0)),
            scratch_shapes=[
                pltpu.VMEM((Hp, Wp + 2 * LPAD), jnp.float32),     # hpad (zero-bordered diff)
                pltpu.VMEM((Hp, Wp + 2 * LPAD), jnp.float32),     # t_h  (horiz partial sums)
                pltpu.VMEM((Hp + 2 * SPAD, Wp), jnp.float32),     # vpad (zero-bordered hsum)
                pltpu.VMEM((Hp + 2 * SPAD, Wp), jnp.float32),     # t_v  (vert partial sums)
                pltpu.VMEM((Hp, 128 + Wp), jnp.float32),          # ra   (shifted right, ping)
                pltpu.VMEM((Hp, 128 + Wp), jnp.float32),          # rb   (shifted right, pong)
                pltpu.VMEM((Hp, Wp), jnp.float32),                # best cost
            ],
        ),
        compiler_params=pltpu.CompilerParams(
            dimension_semantics=("parallel",),
            vmem_limit_bytes=vmem_limit),
        cost_estimate=pl.CostEstimate(
            flops=flops, transcendentals=0, bytes_accessed=bytes_accessed),
    )(l_p, r_p)

    return out[:, :H, :W]


def stereo_bm_ref(left, right, block_size=15, max_disparity=64):
    """Pure-JAX reference mirroring the PyTorch module."""
    b, c, h, w = left.shape
    window = jnp.ones((1, 1, block_size, block_size), jnp.float32)
    x = jnp.arange(w)
    costs = []
    for d in range(max_disparity):
        idx = jnp.maximum(x - d, 0)
        rs = right[:, :, :, idx]
        diff = jnp.abs(left - rs)
        cost = lax.conv_general_dilated(
            diff, window, window_strides=(1, 1), padding="SAME",
            dimension_numbers=("NCHW", "OIHW", "NCHW"),
            precision=lax.Precision.HIGHEST)
        costs.append(cost[:, 0])
    cv = jnp.stack(costs, axis=1)          # (b, D, h, w)
    return jnp.argmin(cv, axis=1)          # (b, h, w)


if __name__ == "__main__":
    key = jax.random.PRNGKey(0)
    k1, k2 = jax.random.split(key)

    B, C, H, W = 2, 1, 32, 64
    block_size, max_disparity = 15, 16

    left = jax.random.uniform(k1, (B, C, H, W), dtype=jnp.float32)
    right = jax.random.uniform(k2, (B, C, H, W), dtype=jnp.float32)

    disp = stereo_bm_pallas(left, right, block_size, max_disparity)
    disp = jax.block_until_ready(disp)

    assert disp.shape == (B, H, W)
    assert disp.dtype == jnp.int32
    assert int(jnp.min(disp)) >= 0 and int(jnp.max(disp)) < max_disparity

    ref = stereo_bm_ref(left, right, block_size, max_disparity)
    match = float(jnp.mean((disp == ref.astype(jnp.int32)).astype(jnp.float32)))
    assert match >= 0.98, f"disparity map mismatch vs reference: match={match}"

    print("KERNEL_OK")
</pallas_src>

<mosaic_0001>
module attributes {stable_mosaic.version = 11 : i64} {
  func.func @kernel(%arg0: i32, %arg1: memref<1x32x128xf32, #tpu.memory_space<vmem>>, %arg2: memref<1x32x128xf32, #tpu.memory_space<vmem>>, %arg3: memref<1x32x128xi32, #tpu.memory_space<vmem>>, %arg4: memref<32x384xf32, #tpu.memory_space<vmem>>, %arg5: memref<32x384xf32, #tpu.memory_space<vmem>>, %arg6: memref<48x128xf32, #tpu.memory_space<vmem>>, %arg7: memref<48x128xf32, #tpu.memory_space<vmem>>, %arg8: memref<32x256xf32, #tpu.memory_space<vmem>>, %arg9: memref<32x256xf32, #tpu.memory_space<vmem>>, %arg10: memref<32x128xf32, #tpu.memory_space<vmem>>) attributes {dimension_semantics = [#tpu.dimension_semantics<parallel>], iteration_bounds = array<i64: 2>, scalar_prefetch = 0 : i64, scratch_operands = 7 : i64, tpu.core_type = #tpu.core_type<tc>, window_params = [{transform_indices = @transform_0, window_bounds = array<i64: 1, 32, 128>}, {transform_indices = @transform_1, window_bounds = array<i64: 1, 32, 128>}, {transform_indices = @transform_2, window_bounds = array<i64: 1, 32, 128>}]} {
    %cst = arith.constant 0.000000e+00 : f32
    %0 = vector.broadcast %cst : f32 to vector<32x128xf32>
    %c0 = arith.constant 0 : index
    %c0_0 = arith.constant 0 : index
    %1 = vector.load %arg4[%c0, %c0_0] : memref<32x384xf32, #tpu.memory_space<vmem>>, vector<32x128xf32>
    tpu.vector_store %arg4[%c0, %c0_0], %0 {strides = array<i32>} : memref<32x384xf32, #tpu.memory_space<vmem>>, vector<32x128xf32>,
    %cst_1 = arith.constant 0.000000e+00 : f32
    %2 = vector.broadcast %cst_1 : f32 to vector<32x192xf32>
    %c0_2 = arith.constant 0 : index
    %c192 = arith.constant 192 : index
    %3 = vector.load %arg4[%c0_2, %c192] : memref<32x384xf32, #tpu.memory_space<vmem>>, vector<32x192xf32>
    tpu.vector_store %arg4[%c0_2, %c192], %2 {strides = array<i32>} : memref<32x384xf32, #tpu.memory_space<vmem>>, vector<32x192xf32>,
    %cst_3 = arith.constant 0.000000e+00 : f32
    %4 = vector.broadcast %cst_3 : f32 to vector<8x128xf32>
    %c0_4 = arith.constant 0 : index
    %c0_5 = arith.constant 0 : index
    %5 = vector.load %arg6[%c0_4, %c0_5] : memref<48x128xf32, #tpu.memory_space<vmem>>, vector<8x128xf32>
    tpu.vector_store %arg6[%c0_4, %c0_5], %4 {strides = array<i32>} : memref<48x128xf32, #tpu.memory_space<vmem>>, vector<8x128xf32>,
    %cst_6 = arith.constant 0.000000e+00 : f32
    %6 = vector.broadcast %cst_6 : f32 to vector<8x128xf32>
    %c40 = arith.constant 40 : index
    %c0_7 = arith.constant 0 : index
    %7 = vector.load %arg6[%c40, %c0_7] : memref<48x128xf32, #tpu.memory_space<vmem>>, vector<8x128xf32>
    tpu.vector_store %arg6[%c40, %c0_7], %6 {strides = array<i32>} : memref<48x128xf32, #tpu.memory_space<vmem>>, vector<8x128xf32>,
    %c0_8 = arith.constant 0 : index
    %c0_9 = arith.constant 0 : index
    %c0_10 = arith.constant 0 : index
    %8 = vector.load %arg2[%c0_8, %c0_9, %c0_10] : memref<1x32x128xf32, #tpu.memory_space<vmem>>, vector<1x32x1xf32>
    %9 = vector.shape_cast %8 : vector<1x32x1xf32> to vector<32x1xf32>
    %10 = vector.shape_cast %9 : vector<32x1xf32> to vector<32x1xf32>
    %11 = vector.broadcast %10 : vector<32x1xf32> to vector<32x8xf32>
    %c0_11 = arith.constant 0 : index
    %c0_12 = arith.constant 0 : index
    %c0_13 = arith.constant 0 : index
    %12 = vector.load %arg2[%c0_11, %c0_12, %c0_13] : memref<1x32x128xf32, #tpu.memory_space<vmem>>, vector<1x32x128xf32>
    %13 = vector.shape_cast %12 : vector<1x32x128xf32> to vector<32x128xf32>
    %c0_14 = arith.constant 0 : index
    %c128 = arith.constant 128 : index
    %14 = vector.load %arg8[%c0_14, %c128] : memref<32x256xf32, #tpu.memory_space<vmem>>, vector<32x128xf32>
    tpu.vector_store %arg8[%c0_14, %c128], %13 {strides = array<i32>} : memref<32x256xf32, #tpu.memory_space<vmem>>, vector<32x128xf32>,
    %c0_15 = arith.constant 0 : index
    %c120 = arith.constant 120 : index
    %15 = vector.load %arg8[%c0_15, %c120] : memref<32x256xf32, #tpu.memory_space<vmem>>, vector<32x8xf32>
    tpu.vector_store %arg8[%c0_15, %c120], %11 {strides = array<i32>} : memref<32x256xf32, #tpu.memory_space<vmem>>, vector<32x8xf32>,
    %c0_16 = arith.constant 0 : index
    %c120_17 = arith.constant 120 : index
    %16 = vector.load %arg9[%c0_16, %c120_17] : memref<32x256xf32, #tpu.memory_space<vmem>>, vector<32x8xf32>
    tpu.vector_store %arg9[%c0_16, %c120_17], %11 {strides = array<i32>} : memref<32x256xf32, #tpu.memory_space<vmem>>, vector<32x8xf32>,
    %cst_18 = arith.constant 0x7F800000 : f32
    %17 = vector.broadcast %cst_18 : f32 to vector<32x128xf32>
    %c0_19 = arith.constant 0 : index
    %c0_20 = arith.constant 0 : index
    %18 = vector.load %arg10[%c0_19, %c0_20] : memref<32x128xf32, #tpu.memory_space<vmem>>, vector<32x128xf32>
    tpu.vector_store %arg10[%c0_19, %c0_20], %17 {strides = array<i32>} : memref<32x128xf32, #tpu.memory_space<vmem>>, vector<32x128xf32>,
    %c0_i32 = arith.constant 0 : i32
    %19 = vector.broadcast %c0_i32 : i32 to vector<32x128xi32>
    %c0_21 = arith.constant 0 : index
    %c0_22 = arith.constant 0 : index
    %c0_23 = arith.constant 0 : index
    %20 = vector.load %arg3[%c0_21, %c0_22, %c0_23] : memref<1x32x128xi32, #tpu.memory_space<vmem>>, vector<1x32x128xi32>
    %21 = vector.shape_cast %20 : vector<1x32x128xi32> to vector<32x128xi32>
    %22 = vector.shape_cast %19 : vector<32x128xi32> to vector<1x32x128xi32>
    tpu.vector_store %arg3[%c0_21, %c0_22, %c0_23], %22 {strides = array<i32>} : memref<1x32x128xi32, #tpu.memory_space<vmem>>, vector<1x32x128xi32>,
    %c0_i32_24 = arith.constant 0 : i32
    %c2_i32 = arith.constant 2 : i32
    %23 = arith.addi %c0_i32_24, %c2_i32 : i32
    %c1_i32 = arith.constant 1 : i32
    scf.for %arg11 = %c0_i32_24 to %23 step %c1_i32  : i32 {
      %c8_i32 = arith.constant 8 : i32
      %24 = arith.muli %c8_i32, %arg11 : i32
      %c0_i32_26 = arith.constant 0 : i32
      %25 = arith.addi %24, %c0_i32_26 : i32
      %c0_27 = arith.constant 0 : index
      %c128_28 = arith.constant 128 : index
      %26 = vector.load %arg8[%c0_27, %c128_28] : memref<32x256xf32, #tpu.memory_space<vmem>>, vector<32x128xf32>
      %c0_29 = arith.constant 0 : index
      %c0_30 = arith.constant 0 : index
      %c0_31 = arith.constant 0 : index
      %27 = vector.load %arg1[%c0_29, %c0_30, %c0_31] : memref<1x32x128xf32, #tpu.memory_space<vmem>>, vector<1x32x128xf32>
      %28 = vector.shape_cast %27 : vector<1x32x128xf32> to vector<32x128xf32>
      %29 = arith.subf %28, %26 : vector<32x128xf32>
      %30 = math.absf %29 : vector<32x128xf32>
      %31 = vector.extract_strided_slice %30 {offsets = [0, 0], sizes = [32, 64], strides = [1, 1]} : vector<32x128xf32> to vector<32x64xf32>
      %c0_32 = arith.constant 0 : index
      %c128_33 = arith.constant 128 : index
      %32 = vector.load %arg4[%c0_32, %c128_33] : memref<32x384xf32, #tpu.memory_space<vmem>>, vector<32x64xf32>
      tpu.vector_store %arg4[%c0_32, %c128_33], %31 {strides = array<i32>} : memref<32x384xf32, #tpu.memory_space<vmem>>, vector<32x64xf32>,
      %c0_34 = arith.constant 0 : index
      %c121 = arith.constant 121 : index
      %33 = vector.load %arg4[%c0_34, %c121] : memref<32x384xf32, #tpu.memory_space<vmem>>, vector<32x140xf32>
      %c0_35 = arith.constant 0 : index
      %c122 = arith.constant 122 : index
      %34 = vector.load %arg4[%c0_35, %c122] : memref<32x384xf32, #tpu.memory_space<vmem>>, vector<32x140xf32>
      %35 = arith.addf %33, %34 : vector<32x140xf32>
      %c0_36 = arith.constant 0 : index
      %c123 = arith.constant 123 : index
      %36 = vector.load %arg4[%c0_36, %c123] : memref<32x384xf32, #tpu.memory_space<vmem>>, vector<32x140xf32>
      %37 = arith.addf %35, %36 : vector<32x140xf32>
      %c0_37 = arith.constant 0 : index
      %c121_38 = arith.constant 121 : index
      %38 = vector.load %arg5[%c0_37, %c121_38] : memref<32x384xf32, #tpu.memory_space<vmem>>, vector<32x140xf32>
      tpu.vector_store %arg5[%c0_37, %c121_38], %37 {strides = array<i32>} : memref<32x384xf32, #tpu.memory_space<vmem>>, vector<32x140xf32>,
      %c0_39 = arith.constant 0 : index
      %c121_40 = arith.constant 121 : index
      %39 = vector.load %arg5[%c0_39, %c121_40] : memref<32x384xf32, #tpu.memory_space<vmem>>, vector<32x128xf32>
      %c0_41 = arith.constant 0 : index
      %c124 = arith.constant 124 : index
      %40 = vector.load %arg5[%c0_41, %c124] : memref<32x384xf32, #tpu.memory_space<vmem>>, vector<32x128xf32>
      %41 = arith.addf %39, %40 : vector<32x128xf32>
      %c0_42 = arith.constant 0 : index
      %c127 = arith.constant 127 : index
      %42 = vector.load %arg5[%c0_42, %c127] : memref<32x384xf32, #tpu.memory_space<vmem>>, vector<32x128xf32>
      %43 = arith.addf %41, %42 : vector<32x128xf32>
      %c0_43 = arith.constant 0 : index
      %c130 = arith.constant 130 : index
      %44 = vector.load %arg5[%c0_43, %c130] : memref<32x384xf32, #tpu.memory_space<vmem>>, vector<32x128xf32>
      %45 = arith.addf %43, %44 : vector<32x128xf32>
      %c0_44 = arith.constant 0 : index
      %c133 = arith.constant 133 : index
      %46 = vector.load %arg5[%c0_44, %c133] : memref<32x384xf32, #tpu.memory_space<vmem>>, vector<32x128xf32>
      %47 = arith.addf %45, %46 : vector<32x128xf32>
      %c8 = arith.constant 8 : index
      %c0_45 = arith.constant 0 : index
      %48 = vector.load %arg6[%c8, %c0_45] : memref<48x128xf32, #tpu.memory_space<vmem>>, vector<32x128xf32>
      tpu.vector_store %arg6[%c8, %c0_45], %47 {strides = array<i32>} : memref<48x128xf32, #tpu.memory_space<vmem>>, vector<32x128xf32>,
      %c1 = arith.constant 1 : index
      %c0_46 = arith.constant 0 : index
      %49 = vector.load %arg6[%c1, %c0_46] : memref<48x128xf32, #tpu.memory_space<vmem>>, vector<44x128xf32>
      %c2 = arith.constant 2 : index
      %c0_47 = arith.constant 0 : index
      %50 = vector.load %arg6[%c2, %c0_47] : memref<48x128xf32, #tpu.memory_space<vmem>>, vector<44x128xf32>
      %51 = arith.addf %49, %50 : vector<44x128xf32>
      %c3 = arith.constant 3 : index
      %c0_48 = arith.constant 0 : index
      %52 = vector.load %arg6[%c3, %c0_48] : memref<48x128xf32, #tpu.memory_space<vmem>>, vector<44x128xf32>
      %53 = arith.addf %51, %52 : vector<44x128xf32>
      %c1_49 = arith.constant 1 : index
      %c0_50 = arith.constant 0 : index
      %54 = vector.load %arg7[%c1_49, %c0_50] : memref<48x128xf32, #tpu.memory_space<vmem>>, vector<44x128xf32>
      tpu.vector_store %arg7[%c1_49, %c0_50], %53 {strides = array<i32>} : memref<48x128xf32, #tpu.memory_space<vmem>>, vector<44x128xf32>,
      %c1_51 = arith.constant 1 : index
      %c0_52 = arith.constant 0 : index
      %55 = vector.load %arg7[%c1_51, %c0_52] : memref<48x128xf32, #tpu.memory_space<vmem>>, vector<32x128xf32>
      %c4 = arith.constant 4 : index
      %c0_53 = arith.constant 0 : index
      %56 = vector.load %arg7[%c4, %c0_53] : memref<48x128xf32, #tpu.memory_space<vmem>>, vector<32x128xf32>
      %57 = arith.addf %55, %56 : vector<32x128xf32>
      %c7 = arith.constant 7 : index
      %c0_54 = arith.constant 0 : index
      %58 = vector.load %arg7[%c7, %c0_54] : memref<48x128xf32, #tpu.memory_space<vmem>>, vector<32x128xf32>
      %59 = arith.addf %57, %58 : vector<32x128xf32>
      %c10 = arith.constant 10 : index
      %c0_55 = arith.constant 0 : index
      %60 = vector.load %arg7[%c10, %c0_55] : memref<48x128xf32, #tpu.memory_space<vmem>>, vector<32x128xf32>
      %61 = arith.addf %59, %60 : vector<32x128xf32>
      %c13 = arith.constant 13 : index
      %c0_56 = arith.constant 0 : index
      %62 = vector.load %arg7[%c13, %c0_56] : memref<48x128xf32, #tpu.memory_space<vmem>>, vector<32x128xf32>
      %63 = arith.addf %61, %62 : vector<32x128xf32>
      %c0_57 = arith.constant 0 : index
      %c0_58 = arith.constant 0 : index
      %64 = vector.load %arg10[%c0_57, %c0_58] : memref<32x128xf32, #tpu.memory_space<vmem>>, vector<32x128xf32>
      %65 = arith.cmpf olt, %63, %64 : vector<32x128xf32>
      %c0_59 = arith.constant 0 : index
      %c0_60 = arith.constant 0 : index
      %66 = vector.load %arg10[%c0_59, %c0_60] : memref<32x128xf32, #tpu.memory_space<vmem>>, vector<32x128xf32>
      %67 = arith.select %65, %63, %66 : vector<32x128xi1>, vector<32x128xf32>
      %c0_61 = arith.constant 0 : index
      %c0_62 = arith.constant 0 : index
      %68 = vector.load %arg10[%c0_61, %c0_62] : memref<32x128xf32, #tpu.memory_space<vmem>>, vector<32x128xf32>
      tpu.vector_store %arg10[%c0_61, %c0_62], %67 {strides = array<i32>} : memref<32x128xf32, #tpu.memory_space<vmem>>, vector<32x128xf32>,
      %c0_63 = arith.constant 0 : index
      %c0_64 = arith.constant 0 : index
      %c0_65 = arith.constant 0 : index
      %69 = vector.load %arg3[%c0_63, %c0_64, %c0_65] : memref<1x32x128xi32, #tpu.memory_space<vmem>>, vector<1x32x128xi32>
      %70 = vector.shape_cast %69 : vector<1x32x128xi32> to vector<32x128xi32>
      %71 = vector.broadcast %25 : i32 to vector<32x128xi32>
      %72 = arith.select %65, %71, %70 : vector<32x128xi1>, vector<32x128xi32>
      %c0_66 = arith.constant 0 : index
      %c0_67 = arith.constant 0 : index
      %c0_68 = arith.constant 0 : index
      %73 = vector.load %arg3[%c0_66, %c0_67, %c0_68] : memref<1x32x128xi32, #tpu.memory_space<vmem>>, vector<1x32x128xi32>
      %74 = vector.shape_cast %73 : vector<1x32x128xi32> to vector<32x128xi32>
      %75 = vector.shape_cast %72 : vector<32x128xi32> to vector<1x32x128xi32>
      tpu.vector_store %arg3[%c0_66, %c0_67, %c0_68], %75 {strides = array<i32>} : memref<1x32x128xi32, #tpu.memory_space<vmem>>, vector<1x32x128xi32>,
      %c1_i32_69 = arith.constant 1 : i32
      %76 = arith.addi %24, %c1_i32_69 : i32
      %c0_70 = arith.constant 0 : index
      %c127_71 = arith.constant 127 : index
      %77 = vector.load %arg8[%c0_70, %c127_71] : memref<32x256xf32, #tpu.memory_space<vmem>>, vector<32x128xf32>
      %c0_72 = arith.constant 0 : index
      %c0_73 = arith.constant 0 : index
      %c0_74 = arith.constant 0 : index
      %78 = vector.load %arg1[%c0_72, %c0_73, %c0_74] : memref<1x32x128xf32, #tpu.memory_space<vmem>>, vector<1x32x128xf32>
      %79 = vector.shape_cast %78 : vector<1x32x128xf32> to vector<32x128xf32>
      %80 = arith.subf %79, %77 : vector<32x128xf32>
      %81 = math.absf %80 : vector<32x128xf32>
      %82 = vector.extract_strided_slice %81 {offsets = [0, 0], sizes = [32, 64], strides = [1, 1]} : vector<32x128xf32> to vector<32x64xf32>
      %c0_75 = arith.constant 0 : index
      %c128_76 = arith.constant 128 : index
      %83 = vector.load %arg4[%c0_75, %c128_76] : memref<32x384xf32, #tpu.memory_space<vmem>>, vector<32x64xf32>
      tpu.vector_store %arg4[%c0_75, %c128_76], %82 {strides = array<i32>} : memref<32x384xf32, #tpu.memory_space<vmem>>, vector<32x64xf32>,
      %c0_77 = arith.constant 0 : index
      %c121_78 = arith.constant 121 : index
      %84 = vector.load %arg4[%c0_77, %c121_78] : memref<32x384xf32, #tpu.memory_space<vmem>>, vector<32x140xf32>
      %c0_79 = arith.constant 0 : index
      %c122_80 = arith.constant 122 : index
      %85 = vector.load %arg4[%c0_79, %c122_80] : memref<32x384xf32, #tpu.memory_space<vmem>>, vector<32x140xf32>
      %86 = arith.addf %84, %85 : vector<32x140xf32>
      %c0_81 = arith.constant 0 : index
      %c123_82 = arith.constant 123 : index
      %87 = vector.load %arg4[%c0_81, %c123_82] : memref<32x384xf32, #tpu.memory_space<vmem>>, vector<32x140xf32>
      %88 = arith.addf %86, %87 : vector<32x140xf32>
      %c0_83 = arith.constant 0 : index
      %c121_84 = arith.constant 121 : index
      %89 = vector.load %arg5[%c0_83, %c121_84] : memref<32x384xf32, #tpu.memory_space<vmem>>, vector<32x140xf32>
      tpu.vector_store %arg5[%c0_83, %c121_84], %88 {strides = array<i32>} : memref<32x384xf32, #tpu.memory_space<vmem>>, vector<32x140xf32>,
      %c0_85 = arith.constant 0 : index
      %c121_86 = arith.constant 121 : index
      %90 = vector.load %arg5[%c0_85, %c121_86] : memref<32x384xf32, #tpu.memory_space<vmem>>, vector<32x128xf32>
      %c0_87 = arith.constant 0 : index
      %c124_88 = arith.constant 124 : index
      %91 = vector.load %arg5[%c0_87, %c124_88] : memref<32x384xf32, #tpu.memory_space<vmem>>, vector<32x128xf32>
      %92 = arith.addf %90, %91 : vector<32x128xf32>
      %c0_89 = arith.constant 0 : index
      %c127_90 = arith.constant 127 : index
      %93 = vector.load %arg5[%c0_89, %c127_90] : memref<32x384xf32, #tpu.memory_space<vmem>>, vector<32x128xf32>
      %94 = arith.addf %92, %93 : vector<32x128xf32>
      %c0_91 = arith.constant 0 : index
      %c130_92 = arith.constant 130 : index
      %95 = vector.load %arg5[%c0_91, %c130_92] : memref<32x384xf32, #tpu.memory_space<vmem>>, vector<32x128xf32>
      %96 = arith.addf %94, %95 : vector<32x128xf32>
      %c0_93 = arith.constant 0 : index
      %c133_94 = arith.constant 133 : index
      %97 = vector.load %arg5[%c0_93, %c133_94] : memref<32x384xf32, #tpu.memory_space<vmem>>, vector<32x128xf32>
      %98 = arith.addf %96, %97 : vector<32x128xf32>
      %c8_95 = arith.constant 8 : index
      %c0_96 = arith.constant 0 : index
      %99 = vector.load %arg6[%c8_95, %c0_96] : memref<48x128xf32, #tpu.memory_space<vmem>>, vector<32x128xf32>
      tpu.vector_store %arg6[%c8_95, %c0_96], %98 {strides = array<i32>} : memref<48x128xf32, #tpu.memory_space<vmem>>, vector<32x128xf32>,
      %c1_97 = arith.constant 1 : index
      %c0_98 = arith.constant 0 : index
      %100 = vector.load %arg6[%c1_97, %c0_98] : memref<48x128xf32, #tpu.memory_space<vmem>>, vector<44x128xf32>
      %c2_99 = arith.constant 2 : index
      %c0_100 = arith.constant 0 : index
      %101 = vector.load %arg6[%c2_99, %c0_100] : memref<48x128xf32, #tpu.memory_space<vmem>>, vector<44x128xf32>
      %102 = arith.addf %100, %101 : vector<44x128xf32>
      %c3_101 = arith.constant 3 : index
      %c0_102 = arith.constant 0 : index
      %103 = vector.load %arg6[%c3_101, %c0_102] : memref<48x128xf32, #tpu.memory_space<vmem>>, vector<44x128xf32>
      %104 = arith.addf %102, %103 : vector<44x128xf32>
      %c1_103 = arith.constant 1 : index
      %c0_104 = arith.constant 0 : index
      %105 = vector.load %arg7[%c1_103, %c0_104] : memref<48x128xf32, #tpu.memory_space<vmem>>, vector<44x128xf32>
      tpu.vector_store %arg7[%c1_103, %c0_104], %104 {strides = array<i32>} : memref<48x128xf32, #tpu.memory_space<vmem>>, vector<44x128xf32>,
      %c1_105 = arith.constant 1 : index
      %c0_106 = arith.constant 0 : index
      %106 = vector.load %arg7[%c1_105, %c0_106] : memref<48x128xf32, #tpu.memory_space<vmem>>, vector<32x128xf32>
      %c4_107 = arith.constant 4 : index
      %c0_108 = arith.constant 0 : index
      %107 = vector.load %arg7[%c4_107, %c0_108] : memref<48x128xf32, #tpu.memory_space<vmem>>, vector<32x128xf32>
      %108 = arith.addf %106, %107 : vector<32x128xf32>
      %c7_109 = arith.constant 7 : index
      %c0_110 = arith.constant 0 : index
      %109 = vector.load %arg7[%c7_109, %c0_110] : memref<48x128xf32, #tpu.memory_space<vmem>>, vector<32x128xf32>
      %110 = arith.addf %108, %109 : vector<32x128xf32>
      %c10_111 = arith.constant 10 : index
      %c0_112 = arith.constant 0 : index
      %111 = vector.load %arg7[%c10_111, %c0_112] : memref<48x128xf32, #tpu.memory_space<vmem>>, vector<32x128xf32>
      %112 = arith.addf %110, %111 : vector<32x128xf32>
      %c13_113 = arith.constant 13 : index
      %c0_114 = arith.constant 0 : index
      %113 = vector.load %arg7[%c13_113, %c0_114] : memref<48x128xf32, #tpu.memory_space<vmem>>, vector<32x128xf32>
      %114 = arith.addf %112, %113 : vector<32x128xf32>
      %c0_115 = arith.constant 0 : index
      %c0_116 = arith.constant 0 : index
      %115 = vector.load %arg10[%c0_115, %c0_116] : memref<32x128xf32, #tpu.memory_space<vmem>>, vector<32x128xf32>
      %116 = arith.cmpf olt, %114, %115 : vector<32x128xf32>
      %c0_117 = arith.constant 0 : index
      %c0_118 = arith.constant 0 : index
      %117 = vector.load %arg10[%c0_117, %c0_118] : memref<32x128xf32, #tpu.memory_space<vmem>>, vector<32x128xf32>
      %118 = arith.select %116, %114, %117 : vector<32x128xi1>, vector<32x128xf32>
      %c0_119 = arith.constant 0 : index
      %c0_120 = arith.constant 0 : index
      %119 = vector.load %arg10[%c0_119, %c0_120] : memref<32x128xf32, #tpu.memory_space<vmem>>, vector<32x128xf32>
      tpu.vector_store %arg10[%c0_119, %c0_120], %118 {strides = array<i32>} : memref<32x128xf32, #tpu.memory_space<vmem>>, vector<32x128xf32>,
      %c0_121 = arith.constant 0 : index
      %c0_122 = arith.constant 0 : index
      %c0_123 = arith.constant 0 : index
      %120 = vector.load %arg3[%c0_121, %c0_122, %c0_123] : memref<1x32x128xi32, #tpu.memory_space<vmem>>, vector<1x32x128xi32>
      %121 = vector.shape_cast %120 : vector<1x32x128xi32> to vector<32x128xi32>
      %122 = vector.broadcast %76 : i32 to vector<32x128xi32>
      %123 = arith.select %116, %122, %121 : vector<32x128xi1>, vector<32x128xi32>
      %c0_124 = arith.constant 0 : index
      %c0_125 = arith.constant 0 : index
      %c0_126 = arith.constant 0 : index
      %124 = vector.load %arg3[%c0_124, %c0_125, %c0_126] : memref<1x32x128xi32, #tpu.memory_space<vmem>>, vector<1x32x128xi32>
      %125 = vector.shape_cast %124 : vector<1x32x128xi32> to vector<32x128xi32>
      %126 = vector.shape_cast %123 : vector<32x128xi32> to vector<1x32x128xi32>
      tpu.vector_store %arg3[%c0_124, %c0_125, %c0_126], %126 {strides = array<i32>} : memref<1x32x128xi32, #tpu.memory_space<vmem>>, vector<1x32x128xi32>,
      %c2_i32_127 = arith.constant 2 : i32
      %127 = arith.addi %24, %c2_i32_127 : i32
      %c0_128 = arith.constant 0 : index
      %c126 = arith.constant 126 : index
      %128 = vector.load %arg8[%c0_128, %c126] : memref<32x256xf32, #tpu.memory_space<vmem>>, vector<32x128xf32>
      %c0_129 = arith.constant 0 : index
      %c0_130 = arith.constant 0 : index
      %c0_131 = arith.constant 0 : index
      %129 = vector.load %arg1[%c0_129, %c0_130, %c0_131] : memref<1x32x128xf32, #tpu.memory_space<vmem>>, vector<1x32x128xf32>
      %130 = vector.shape_cast %129 : vector<1x32x128xf32> to vector<32x128xf32>
      %131 = arith.subf %130, %128 : vector<32x128xf32>
      %132 = math.absf %131 : vector<32x128xf32>
      %133 = vector.extract_strided_slice %132 {offsets = [0, 0], sizes = [32, 64], strides = [1, 1]} : vector<32x128xf32> to vector<32x64xf32>
      %c0_132 = arith.constant 0 : index
      %c128_133 = arith.constant 128 : index
      %134 = vector.load %arg4[%c0_132, %c128_133] : memref<32x384xf32, #tpu.memory_space<vmem>>, vector<32x64xf32>
      tpu.vector_store %arg4[%c0_132, %c128_133], %133 {strides = array<i32>} : memref<32x384xf32, #tpu.memory_space<vmem>>, vector<32x64xf32>,
      %c0_134 = arith.constant 0 : index
      %c121_135 = arith.constant 121 : index
      %135 = vector.load %arg4[%c0_134, %c121_135] : memref<32x384xf32, #tpu.memory_space<vmem>>, vector<32x140xf32>
      %c0_136 = arith.constant 0 : index
      %c122_137 = arith.constant 122 : index
      %136 = vector.load %arg4[%c0_136, %c122_137] : memref<32x384xf32, #tpu.memory_space<vmem>>, vector<32x140xf32>
      %137 = arith.addf %135, %136 : vector<32x140xf32>
      %c0_138 = arith.constant 0 : index
      %c123_139 = arith.constant 123 : index
      %138 = vector.load %arg4[%c0_138, %c123_139] : memref<32x384xf32, #tpu.memory_space<vmem>>, vector<32x140xf32>
      %139 = arith.addf %137, %138 : vector<32x140xf32>
      %c0_140 = arith.constant 0 : index
      %c121_141 = arith.constant 121 : index
      %140 = vector.load %arg5[%c0_140, %c121_141] : memref<32x384xf32, #tpu.memory_space<vmem>>, vector<32x140xf32>
      tpu.vector_store %arg5[%c0_140, %c121_141], %139 {strides = array<i32>} : memref<32x384xf32, #tpu.memory_space<vmem>>, vector<32x140xf32>,
      %c0_142 = arith.constant 0 : index
      %c121_143 = arith.constant 121 : index
      %141 = vector.load %arg5[%c0_142, %c121_143] : memref<32x384xf32, #tpu.memory_space<vmem>>, vector<32x128xf32>
      %c0_144 = arith.constant 0 : index
      %c124_145 = arith.constant 124 : index
      %142 = vector.load %arg5[%c0_144, %c124_145] : memref<32x384xf32, #tpu.memory_space<vmem>>, vector<32x128xf32>
      %143 = arith.addf %141, %142 : vector<32x128xf32>
      %c0_146 = arith.constant 0 : index
      %c127_147 = arith.constant 127 : index
      %144 = vector.load %arg5[%c0_146, %c127_147] : memref<32x384xf32, #tpu.memory_space<vmem>>, vector<32x128xf32>
      %145 = arith.addf %143, %144 : vector<32x128xf32>
      %c0_148 = arith.constant 0 : index
      %c130_149 = arith.constant 130 : index
      %146 = vector.load %arg5[%c0_148, %c130_149] : memref<32x384xf32, #tpu.memory_space<vmem>>, vector<32x128xf32>
      %147 = arith.addf %145, %146 : vector<32x128xf32>
      %c0_150 = arith.constant 0 : index
      %c133_151 = arith.constant 133 : index
      %148 = vector.load %arg5[%c0_150, %c133_151] : memref<32x384xf32, #tpu.memory_space<vmem>>, vector<32x128xf32>
      %149 = arith.addf %147, %148 : vector<32x128xf32>
      %c8_152 = arith.constant 8 : index
      %c0_153 = arith.constant 0 : index
      %150 = vector.load %arg6[%c8_152, %c0_153] : memref<48x128xf32, #tpu.memory_space<vmem>>, vector<32x128xf32>
      tpu.vector_store %arg6[%c8_152, %c0_153], %149 {strides = array<i32>} : memref<48x128xf32, #tpu.memory_space<vmem>>, vector<32x128xf32>,
      %c1_154 = arith.constant 1 : index
      %c0_155 = arith.constant 0 : index
      %151 = vector.load %arg6[%c1_154, %c0_155] : memref<48x128xf32, #tpu.memory_space<vmem>>, vector<44x128xf32>
      %c2_156 = arith.constant 2 : index
      %c0_157 = arith.constant 0 : index
      %152 = vector.load %arg6[%c2_156, %c0_157] : memref<48x128xf32, #tpu.memory_space<vmem>>, vector<44x128xf32>
      %153 = arith.addf %151, %152 : vector<44x128xf32>
      %c3_158 = arith.constant 3 : index
      %c0_159 = arith.constant 0 : index
      %154 = vector.load %arg6[%c3_158, %c0_159] : memref<48x128xf32, #tpu.memory_space<vmem>>, vector<44x128xf32>
      %155 = arith.addf %153, %154 : vector<44x128xf32>
      %c1_160 = arith.constant 1 : index
      %c0_161 = arith.constant 0 : index
      %156 = vector.load %arg7[%c1_160, %c0_161] : memref<48x128xf32, #tpu.memory_space<vmem>>, vector<44x128xf32>
      tpu.vector_store %arg7[%c1_160, %c0_161], %155 {strides = array<i32>} : memref<48x128xf32, #tpu.memory_space<vmem>>, vector<44x128xf32>,
      %c1_162 = arith.constant 1 : index
      %c0_163 = arith.constant 0 : index
      %157 = vector.load %arg7[%c1_162, %c0_163] : memref<48x128xf32, #tpu.memory_space<vmem>>, vector<32x128xf32>
      %c4_164 = arith.constant 4 : index
      %c0_165 = arith.constant 0 : index
      %158 = vector.load %arg7[%c4_164, %c0_165] : memref<48x128xf32, #tpu.memory_space<vmem>>, vector<32x128xf32>
      %159 = arith.addf %157, %158 : vector<32x128xf32>
      %c7_166 = arith.constant 7 : index
      %c0_167 = arith.constant 0 : index
      %160 = vector.load %arg7[%c7_166, %c0_167] : memref<48x128xf32, #tpu.memory_space<vmem>>, vector<32x128xf32>
      %161 = arith.addf %159, %160 : vector<32x128xf32>
      %c10_168 = arith.constant 10 : index
      %c0_169 = arith.constant 0 : index
      %162 = vector.load %arg7[%c10_168, %c0_169] : memref<48x128xf32, #tpu.memory_space<vmem>>, vector<32x128xf32>
      %163 = arith.addf %161, %162 : vector<32x128xf32>
      %c13_170 = arith.constant 13 : index
      %c0_171 = arith.constant 0 : index
      %164 = vector.load %arg7[%c13_170, %c0_171] : memref<48x128xf32, #tpu.memory_space<vmem>>, vector<32x128xf32>
      %165 = arith.addf %163, %164 : vector<32x128xf32>
      %c0_172 = arith.constant 0 : index
      %c0_173 = arith.constant 0 : index
      %166 = vector.load %arg10[%c0_172, %c0_173] : memref<32x128xf32, #tpu.memory_space<vmem>>, vector<32x128xf32>
      %167 = arith.cmpf olt, %165, %166 : vector<32x128xf32>
      %c0_174 = arith.constant 0 : index
      %c0_175 = arith.constant 0 : index
      %168 = vector.load %arg10[%c0_174, %c0_175] : memref<32x128xf32, #tpu.memory_space<vmem>>, vector<32x128xf32>
      %169 = arith.select %167, %165, %168 : vector<32x128xi1>, vector<32x128xf32>
      %c0_176 = arith.constant 0 : index
      %c0_177 = arith.constant 0 : index
      %170 = vector.load %arg10[%c0_176, %c0_177] : memref<32x128xf32, #tpu.memory_space<vmem>>, vector<32x128xf32>
      tpu.vector_store %arg10[%c0_176, %c0_177], %169 {strides = array<i32>} : memref<32x128xf32, #tpu.memory_space<vmem>>, vector<32x128xf32>,
      %c0_178 = arith.constant 0 : index
      %c0_179 = arith.constant 0 : index
      %c0_180 = arith.constant 0 : index
      %171 = vector.load %arg3[%c0_178, %c0_179, %c0_180] : memref<1x32x128xi32, #tpu.memory_space<vmem>>, vector<1x32x128xi32>
      %172 = vector.shape_cast %171 : vector<1x32x128xi32> to vector<32x128xi32>
      %173 = vector.broadcast %127 : i32 to vector<32x128xi32>
      %174 = arith.select %167, %173, %172 : vector<32x128xi1>, vector<32x128xi32>
      %c0_181 = arith.constant 0 : index
      %c0_182 = arith.constant 0 : index
      %c0_183 = arith.constant 0 : index
      %175 = vector.load %arg3[%c0_181, %c0_182, %c0_183] : memref<1x32x128xi32, #tpu.memory_space<vmem>>, vector<1x32x128xi32>
      %176 = vector.shape_cast %175 : vector<1x32x128xi32> to vector<32x128xi32>
      %177 = vector.shape_cast %174 : vector<32x128xi32> to vector<1x32x128xi32>
      tpu.vector_store %arg3[%c0_181, %c0_182, %c0_183], %177 {strides = array<i32>} : memref<1x32x128xi32, #tpu.memory_space<vmem>>, vector<1x32x128xi32>,
      %c3_i32 = arith.constant 3 : i32
      %178 = arith.addi %24, %c3_i32 : i32
      %c0_184 = arith.constant 0 : index
      %c125 = arith.constant 125 : index
      %179 = vector.load %arg8[%c0_184, %c125] : memref<32x256xf32, #tpu.memory_space<vmem>>, vector<32x128xf32>
      %c0_185 = arith.constant 0 : index
      %c0_186 = arith.constant 0 : index
      %c0_187 = arith.constant 0 : index
      %180 = vector.load %arg1[%c0_185, %c0_186, %c0_187] : memref<1x32x128xf32, #tpu.memory_space<vmem>>, vector<1x32x128xf32>
      %181 = vector.shape_cast %180 : vector<1x32x128xf32> to vector<32x128xf32>
      %182 = arith.subf %181, %179 : vector<32x128xf32>
      %183 = math.absf %182 : vector<32x128xf32>
      %184 = vector.extract_strided_slice %183 {offsets = [0, 0], sizes = [32, 64], strides = [1, 1]} : vector<32x128xf32> to vector<32x64xf32>
      %c0_188 = arith.constant 0 : index
      %c128_189 = arith.constant 128 : index
      %185 = vector.load %arg4[%c0_188, %c128_189] : memref<32x384xf32, #tpu.memory_space<vmem>>, vector<32x64xf32>
      tpu.vector_store %arg4[%c0_188, %c128_189], %184 {strides = array<i32>} : memref<32x384xf32, #tpu.memory_space<vmem>>, vector<32x64xf32>,
      %c0_190 = arith.constant 0 : index
      %c121_191 = arith.constant 121 : index
      %186 = vector.load %arg4[%c0_190, %c121_191] : memref<32x384xf32, #tpu.memory_space<vmem>>, vector<32x140xf32>
      %c0_192 = arith.constant 0 : index
      %c122_193 = arith.constant 122 : index
      %187 = vector.load %arg4[%c0_192, %c122_193] : memref<32x384xf32, #tpu.memory_space<vmem>>, vector<32x140xf32>
      %188 = arith.addf %186, %187 : vector<32x140xf32>
      %c0_194 = arith.constant 0 : index
      %c123_195 = arith.constant 123 : index
      %189 = vector.load %arg4[%c0_194, %c123_195] : memref<32x384xf32, #tpu.memory_space<vmem>>, vector<32x140xf32>
      %190 = arith.addf %188, %189 : vector<32x140xf32>
      %c0_196 = arith.constant 0 : index
      %c121_197 = arith.constant 121 : index
      %191 = vector.load %arg5[%c0_196, %c121_197] : memref<32x384xf32, #tpu.memory_space<vmem>>, vector<32x140xf32>
      tpu.vector_store %arg5[%c0_196, %c121_197], %190 {strides = array<i32>} : memref<32x384xf32, #tpu.memory_space<vmem>>, vector<32x140xf32>,
      %c0_198 = arith.constant 0 : index
      %c121_199 = arith.constant 121 : index
      %192 = vector.load %arg5[%c0_198, %c121_199] : memref<32x384xf32, #tpu.memory_space<vmem>>, vector<32x128xf32>
      %c0_200 = arith.constant 0 : index
      %c124_201 = arith.constant 124 : index
      %193 = vector.load %arg5[%c0_200, %c124_201] : memref<32x384xf32, #tpu.memory_space<vmem>>, vector<32x128xf32>
      %194 = arith.addf %192, %193 : vector<32x128xf32>
      %c0_202 = arith.constant 0 : index
      %c127_203 = arith.constant 127 : index
      %195 = vector.load %arg5[%c0_202, %c127_203] : memref<32x384xf32, #tpu.memory_space<vmem>>, vector<32x128xf32>
      %196 = arith.addf %194, %195 : vector<32x128xf32>
      %c0_204 = arith.constant 0 : index
      %c130_205 = arith.constant 130 : index
      %197 = vector.load %arg5[%c0_204, %c130_205] : memref<32x384xf32, #tpu.memory_space<vmem>>, vector<32x128xf32>
      %198 = arith.addf %196, %197 : vector<32x128xf32>
      %c0_206 = arith.constant 0 : index
      %c133_207 = arith.constant 133 : index
      %199 = vector.load %arg5[%c0_206, %c133_207] : memref<32x384xf32, #tpu.memory_space<vmem>>, vector<32x128xf32>
      %200 = arith.addf %198, %199 : vector<32x128xf32>
      %c8_208 = arith.constant 8 : index
      %c0_209 = arith.constant 0 : index
      %201 = vector.load %arg6[%c8_208, %c0_209] : memref<48x128xf32, #tpu.memory_space<vmem>>, vector<32x128xf32>
      tpu.vector_store %arg6[%c8_208, %c0_209], %200 {strides = array<i32>} : memref<48x128xf32, #tpu.memory_space<vmem>>, vector<32x128xf32>,
      %c1_210 = arith.constant 1 : index
      %c0_211 = arith.constant 0 : index
      %202 = vector.load %arg6[%c1_210, %c0_211] : memref<48x128xf32, #tpu.memory_space<vmem>>, vector<44x128xf32>
      %c2_212 = arith.constant 2 : index
      %c0_213 = arith.constant 0 : index
      %203 = vector.load %arg6[%c2_212, %c0_213] : memref<48x128xf32, #tpu.memory_space<vmem>>, vector<44x128xf32>
      %204 = arith.addf %202, %203 : vector<44x128xf32>
      %c3_214 = arith.constant 3 : index
      %c0_215 = arith.constant 0 : index
      %205 = vector.load %arg6[%c3_214, %c0_215] : memref<48x128xf32, #tpu.memory_space<vmem>>, vector<44x128xf32>
      %206 = arith.addf %204, %205 : vector<44x128xf32>
      %c1_216 = arith.constant 1 : index
      %c0_217 = arith.constant 0 : index
      %207 = vector.load %arg7[%c1_216, %c0_217] : memref<48x128xf32, #tpu.memory_space<vmem>>, vector<44x128xf32>
      tpu.vector_store %arg7[%c1_216, %c0_217], %206 {strides = array<i32>} : memref<48x128xf32, #tpu.memory_space<vmem>>, vector<44x128xf32>,
      %c1_218 = arith.constant 1 : index
      %c0_219 = arith.constant 0 : index
      %208 = vector.load %arg7[%c1_218, %c0_219] : memref<48x128xf32, #tpu.memory_space<vmem>>, vector<32x128xf32>
      %c4_220 = arith.constant 4 : index
      %c0_221 = arith.constant 0 : index
      %209 = vector.load %arg7[%c4_220, %c0_221] : memref<48x128xf32, #tpu.memory_space<vmem>>, vector<32x128xf32>
      %210 = arith.addf %208, %209 : vector<32x128xf32>
      %c7_222 = arith.constant 7 : index
      %c0_223 = arith.constant 0 : index
      %211 = vector.load %arg7[%c7_222, %c0_223] : memref<48x128xf32, #tpu.memory_space<vmem>>, vector<32x128xf32>
      %212 = arith.addf %210, %211 : vector<32x128xf32>
      %c10_224 = arith.constant 10 : index
      %c0_225 = arith.constant 0 : index
      %213 = vector.load %arg7[%c10_224, %c0_225] : memref<48x128xf32, #tpu.memory_space<vmem>>, vector<32x128xf32>
      %214 = arith.addf %212, %213 : vector<32x128xf32>
      %c13_226 = arith.constant 13 : index
      %c0_227 = arith.constant 0 : index
      %215 = vector.load %arg7[%c13_226, %c0_227] : memref<48x128xf32, #tpu.memory_space<vmem>>, vector<32x128xf32>
      %216 = arith.addf %214, %215 : vector<32x128xf32>
      %c0_228 = arith.constant 0 : index
      %c0_229 = arith.constant 0 : index
      %217 = vector.load %arg10[%c0_228, %c0_229] : memref<32x128xf32, #tpu.memory_space<vmem>>, vector<32x128xf32>
      %218 = arith.cmpf olt, %216, %217 : vector<32x128xf32>
      %c0_230 = arith.constant 0 : index
      %c0_231 = arith.constant 0 : index
      %219 = vector.load %arg10[%c0_230, %c0_231] : memref<32x128xf32, #tpu.memory_space<vmem>>, vector<32x128xf32>
      %220 = arith.select %218, %216, %219 : vector<32x128xi1>, vector<32x128xf32>
      %c0_232 = arith.constant 0 : index
      %c0_233 = arith.constant 0 : index
      %221 = vector.load %arg10[%c0_232, %c0_233] : memref<32x128xf32, #tpu.memory_space<vmem>>, vector<32x128xf32>
      tpu.vector_store %arg10[%c0_232, %c0_233], %220 {strides = array<i32>} : memref<32x128xf32, #tpu.memory_space<vmem>>, vector<32x128xf32>,
      %c0_234 = arith.constant 0 : index
      %c0_235 = arith.constant 0 : index
      %c0_236 = arith.constant 0 : index
      %222 = vector.load %arg3[%c0_234, %c0_235, %c0_236] : memref<1x32x128xi32, #tpu.memory_space<vmem>>, vector<1x32x128xi32>
      %223 = vector.shape_cast %222 : vector<1x32x128xi32> to vector<32x128xi32>
      %224 = vector.broadcast %178 : i32 to vector<32x128xi32>
      %225 = arith.select %218, %224, %223 : vector<32x128xi1>, vector<32x128xi32>
      %c0_237 = arith.constant 0 : index
      %c0_238 = arith.constant 0 : index
      %c0_239 = arith.constant 0 : index
      %226 = vector.load %arg3[%c0_237, %c0_238, %c0_239] : memref<1x32x128xi32, #tpu.memory_space<vmem>>, vector<1x32x128xi32>
      %227 = vector.shape_cast %226 : vector<1x32x128xi32> to vector<32x128xi32>
      %228 = vector.shape_cast %225 : vector<32x128xi32> to vector<1x32x128xi32>
      tpu.vector_store %arg3[%c0_237, %c0_238, %c0_239], %228 {strides = array<i32>} : memref<1x32x128xi32, #tpu.memory_space<vmem>>, vector<1x32x128xi32>,
      %c0_240 = arith.constant 0 : index
      %c124_241 = arith.constant 124 : index
      %229 = vector.load %arg8[%c0_240, %c124_241] : memref<32x256xf32, #tpu.memory_space<vmem>>, vector<32x128xf32>
      %c0_242 = arith.constant 0 : index
      %c128_243 = arith.constant 128 : index
      %230 = vector.load %arg9[%c0_242, %c128_243] : memref<32x256xf32, #tpu.memory_space<vmem>>, vector<32x128xf32>
      tpu.vector_store %arg9[%c0_242, %c128_243], %229 {strides = array<i32>} : memref<32x256xf32, #tpu.memory_space<vmem>>, vector<32x128xf32>,
      %c4_i32 = arith.constant 4 : i32
      %231 = arith.addi %24, %c4_i32 : i32
      %c0_i32_244 = arith.constant 0 : i32
      %232 = arith.addi %231, %c0_i32_244 : i32
      %c0_245 = arith.constant 0 : index
      %c128_246 = arith.constant 128 : index
      %233 = vector.load %arg9[%c0_245, %c128_246] : memref<32x256xf32, #tpu.memory_space<vmem>>, vector<32x128xf32>
      %c0_247 = arith.constant 0 : index
      %c0_248 = arith.constant 0 : index
      %c0_249 = arith.constant 0 : index
      %234 = vector.load %arg1[%c0_247, %c0_248, %c0_249] : memref<1x32x128xf32, #tpu.memory_space<vmem>>, vector<1x32x128xf32>
      %235 = vector.shape_cast %234 : vector<1x32x128xf32> to vector<32x128xf32>
      %236 = arith.subf %235, %233 : vector<32x128xf32>
      %237 = math.absf %236 : vector<32x128xf32>
      %238 = vector.extract_strided_slice %237 {offsets = [0, 0], sizes = [32, 64], strides = [1, 1]} : vector<32x128xf32> to vector<32x64xf32>
      %c0_250 = arith.constant 0 : index
      %c128_251 = arith.constant 128 : index
      %239 = vector.load %arg4[%c0_250, %c128_251] : memref<32x384xf32, #tpu.memory_space<vmem>>, vector<32x64xf32>
      tpu.vector_store %arg4[%c0_250, %c128_251], %238 {strides = array<i32>} : memref<32x384xf32, #tpu.memory_space<vmem>>, vector<32x64xf32>,
      %c0_252 = arith.constant 0 : index
      %c121_253 = arith.constant 121 : index
      %240 = vector.load %arg4[%c0_252, %c121_253] : memref<32x384xf32, #tpu.memory_space<vmem>>, vector<32x140xf32>
      %c0_254 = arith.constant 0 : index
      %c122_255 = arith.constant 122 : index
      %241 = vector.load %arg4[%c0_254, %c122_255] : memref<32x384xf32, #tpu.memory_space<vmem>>, vector<32x140xf32>
      %242 = arith.addf %240, %241 : vector<32x140xf32>
      %c0_256 = arith.constant 0 : index
      %c123_257 = arith.constant 123 : index
      %243 = vector.load %arg4[%c0_256, %c123_257] : memref<32x384xf32, #tpu.memory_space<vmem>>, vector<32x140xf32>
      %244 = arith.addf %242, %243 : vector<32x140xf32>
      %c0_258 = arith.constant 0 : index
      %c121_259 = arith.constant 121 : index
      %245 = vector.load %arg5[%c0_258, %c121_259] : memref<32x384xf32, #tpu.memory_space<vmem>>, vector<32x140xf32>
      tpu.vector_store %arg5[%c0_258, %c121_259], %244 {strides = array<i32>} : memref<32x384xf32, #tpu.memory_space<vmem>>, vector<32x140xf32>,
      %c0_260 = arith.constant 0 : index
      %c121_261 = arith.constant 121 : index
      %246 = vector.load %arg5[%c0_260, %c121_261] : memref<32x384xf32, #tpu.memory_space<vmem>>, vector<32x128xf32>
      %c0_262 = arith.constant 0 : index
      %c124_263 = arith.constant 124 : index
      %247 = vector.load %arg5[%c0_262, %c124_263] : memref<32x384xf32, #tpu.memory_space<vmem>>, vector<32x128xf32>
      %248 = arith.addf %246, %247 : vector<32x128xf32>
      %c0_264 = arith.constant 0 : index
      %c127_265 = arith.constant 127 : index
      %249 = vector.load %arg5[%c0_264, %c127_265] : memref<32x384xf32, #tpu.memory_space<vmem>>, vector<32x128xf32>
      %250 = arith.addf %248, %249 : vector<32x128xf32>
      %c0_266 = arith.constant 0 : index
      %c130_267 = arith.constant 130 : index
      %251 = vector.load %arg5[%c0_266, %c130_267] : memref<32x384xf32, #tpu.memory_space<vmem>>, vector<32x128xf32>
      %252 = arith.addf %250, %251 : vector<32x128xf32>
      %c0_268 = arith.constant 0 : index
      %c133_269 = arith.constant 133 : index
      %253 = vector.load %arg5[%c0_268, %c133_269] : memref<32x384xf32, #tpu.memory_space<vmem>>, vector<32x128xf32>
      %254 = arith.addf %252, %253 : vector<32x128xf32>
      %c8_270 = arith.constant 8 : index
      %c0_271 = arith.constant 0 : index
      %255 = vector.load %arg6[%c8_270, %c0_271] : memref<48x128xf32, #tpu.memory_space<vmem>>, vector<32x128xf32>
      tpu.vector_store %arg6[%c8_270, %c0_271], %254 {strides = array<i32>} : memref<48x128xf32, #tpu.memory_space<vmem>>, vector<32x128xf32>,
      %c1_272 = arith.constant 1 : index
      %c0_273 = arith.constant 0 : index
      %256 = vector.load %arg6[%c1_272, %c0_273] : memref<48x128xf32, #tpu.memory_space<vmem>>, vector<44x128xf32>
      %c2_274 = arith.constant 2 : index
      %c0_275 = arith.constant 0 : index
      %257 = vector.load %arg6[%c2_274, %c0_275] : memref<48x128xf32, #tpu.memory_space<vmem>>, vector<44x128xf32>
      %258 = arith.addf %256, %257 : vector<44x128xf32>
      %c3_276 = arith.constant 3 : index
      %c0_277 = arith.constant 0 : index
      %259 = vector.load %arg6[%c3_276, %c0_277] : memref<48x128xf32, #tpu.memory_space<vmem>>, vector<44x128xf32>
      %260 = arith.addf %258, %259 : vector<44x128xf32>
      %c1_278 = arith.constant 1 : index
      %c0_279 = arith.constant 0 : index
      %261 = vector.load %arg7[%c1_278, %c0_279] : memref<48x128xf32, #tpu.memory_space<vmem>>, vector<44x128xf32>
      tpu.vector_store %arg7[%c1_278, %c0_279], %260 {strides = array<i32>} : memref<48x128xf32, #tpu.memory_space<vmem>>, vector<44x128xf32>,
      %c1_280 = arith.constant 1 : index
      %c0_281 = arith.constant 0 : index
      %262 = vector.load %arg7[%c1_280, %c0_281] : memref<48x128xf32, #tpu.memory_space<vmem>>, vector<32x128xf32>
      %c4_282 = arith.constant 4 : index
      %c0_283 = arith.constant 0 : index
      %263 = vector.load %arg7[%c4_282, %c0_283] : memref<48x128xf32, #tpu.memory_space<vmem>>, vector<32x128xf32>
      %264 = arith.addf %262, %263 : vector<32x128xf32>
      %c7_284 = arith.constant 7 : index
      %c0_285 = arith.constant 0 : index
      %265 = vector.load %arg7[%c7_284, %c0_285] : memref<48x128xf32, #tpu.memory_space<vmem>>, vector<32x128xf32>
      %266 = arith.addf %264, %265 : vector<32x128xf32>
      %c10_286 = arith.constant 10 : index
      %c0_287 = arith.constant 0 : index
      %267 = vector.load %arg7[%c10_286, %c0_287] : memref<48x128xf32, #tpu.memory_space<vmem>>, vector<32x128xf32>
      %268 = arith.addf %266, %267 : vector<32x128xf32>
      %c13_288 = arith.constant 13 : index
      %c0_289 = arith.constant 0 : index
      %269 = vector.load %arg7[%c13_288, %c0_289] : memref<48x128xf32, #tpu.memory_space<vmem>>, vector<32x128xf32>
      %270 = arith.addf %268, %269 : vector<32x128xf32>
      %c0_290 = arith.constant 0 : index
      %c0_291 = arith.constant 0 : index
      %271 = vector.load %arg10[%c0_290, %c0_291] : memref<32x128xf32, #tpu.memory_space<vmem>>, vector<32x128xf32>
      %272 = arith.cmpf olt, %270, %271 : vector<32x128xf32>
      %c0_292 = arith.constant 0 : index
      %c0_293 = arith.constant 0 : index
      %273 = vector.load %arg10[%c0_292, %c0_293] : memref<32x128xf32, #tpu.memory_space<vmem>>, vector<32x128xf32>
      %274 = arith.select %272, %270, %273 : vector<32x128xi1>, vector<32x128xf32>
      %c0_294 = arith.constant 0 : index
      %c0_295 = arith.constant 0 : index
      %275 = vector.load %arg10[%c0_294, %c0_295] : memref<32x128xf32, #tpu.memory_space<vmem>>, vector<32x128xf32>
      tpu.vector_store %arg10[%c0_294, %c0_295], %274 {strides = array<i32>} : memref<32x128xf32, #tpu.memory_space<vmem>>, vector<32x128xf32>,
      %c0_296 = arith.constant 0 : index
      %c0_297 = arith.constant 0 : index
      %c0_298 = arith.constant 0 : index
      %276 = vector.load %arg3[%c0_296, %c0_297, %c0_298] : memref<1x32x128xi32, #tpu.memory_space<vmem>>, vector<1x32x128xi32>
      %277 = vector.shape_cast %276 : vector<1x32x128xi32> to vector<32x128xi32>
      %278 = vector.broadcast %232 : i32 to vector<32x128xi32>
      %279 = arith.select %272, %278, %277 : vector<32x128xi1>, vector<32x128xi32>
      %c0_299 = arith.constant 0 : index
      %c0_300 = arith.constant 0 : index
      %c0_301 = arith.constant 0 : index
      %280 = vector.load %arg3[%c0_299, %c0_300, %c0_301] : memref<1x32x128xi32, #tpu.memory_space<vmem>>, vector<1x32x128xi32>
      %281 = vector.shape_cast %280 : vector<1x32x128xi32> to vector<32x128xi32>
      %282 = vector.shape_cast %279 : vector<32x128xi32> to vector<1x32x128xi32>
      tpu.vector_store %arg3[%c0_299, %c0_300, %c0_301], %282 {strides = array<i32>} : memref<1x32x128xi32, #tpu.memory_space<vmem>>, vector<1x32x128xi32>,
      %c1_i32_302 = arith.constant 1 : i32
      %283 = arith.addi %231, %c1_i32_302 : i32
      %c0_303 = arith.constant 0 : index
      %c127_304 = arith.constant 127 : index
      %284 = vector.load %arg9[%c0_303, %c127_304] : memref<32x256xf32, #tpu.memory_space<vmem>>, vector<32x128xf32>
      %c0_305 = arith.constant 0 : index
      %c0_306 = arith.constant 0 : index
      %c0_307 = arith.constant 0 : index
      %285 = vector.load %arg1[%c0_305, %c0_306, %c0_307] : memref<1x32x128xf32, #tpu.memory_space<vmem>>, vector<1x32x128xf32>
      %286 = vector.shape_cast %285 : vector<1x32x128xf32> to vector<32x128xf32>
      %287 = arith.subf %286, %284 : vector<32x128xf32>
      %288 = math.absf %287 : vector<32x128xf32>
      %289 = vector.extract_strided_slice %288 {offsets = [0, 0], sizes = [32, 64], strides = [1, 1]} : vector<32x128xf32> to vector<32x64xf32>
      %c0_308 = arith.constant 0 : index
      %c128_309 = arith.constant 128 : index
      %290 = vector.load %arg4[%c0_308, %c128_309] : memref<32x384xf32, #tpu.memory_space<vmem>>, vector<32x64xf32>
      tpu.vector_store %arg4[%c0_308, %c128_309], %289 {strides = array<i32>} : memref<32x384xf32, #tpu.memory_space<vmem>>, vector<32x64xf32>,
      %c0_310 = arith.constant 0 : index
      %c121_311 = arith.constant 121 : index
      %291 = vector.load %arg4[%c0_310, %c121_311] : memref<32x384xf32, #tpu.memory_space<vmem>>, vector<32x140xf32>
      %c0_312 = arith.constant 0 : index
      %c122_313 = arith.constant 122 : index
      %292 = vector.load %arg4[%c0_312, %c122_313] : memref<32x384xf32, #tpu.memory_space<vmem>>, vector<32x140xf32>
      %293 = arith.addf %291, %292 : vector<32x140xf32>
      %c0_314 = arith.constant 0 : index
      %c123_315 = arith.constant 123 : index
      %294 = vector.load %arg4[%c0_314, %c123_315] : memref<32x384xf32, #tpu.memory_space<vmem>>, vector<32x140xf32>
      %295 = arith.addf %293, %294 : vector<32x140xf32>
      %c0_316 = arith.constant 0 : index
      %c121_317 = arith.constant 121 : index
      %296 = vector.load %arg5[%c0_316, %c121_317] : memref<32x384xf32, #tpu.memory_space<vmem>>, vector<32x140xf32>
      tpu.vector_store %arg5[%c0_316, %c121_317], %295 {strides = array<i32>} : memref<32x384xf32, #tpu.memory_space<vmem>>, vector<32x140xf32>,
      %c0_318 = arith.constant 0 : index
      %c121_319 = arith.constant 121 : index
      %297 = vector.load %arg5[%c0_318, %c121_319] : memref<32x384xf32, #tpu.memory_space<vmem>>, vector<32x128xf32>
      %c0_320 = arith.constant 0 : index
      %c124_321 = arith.constant 124 : index
      %298 = vector.load %arg5[%c0_320, %c124_321] : memref<32x384xf32, #tpu.memory_space<vmem>>, vector<32x128xf32>
      %299 = arith.addf %297, %298 : vector<32x128xf32>
      %c0_322 = arith.constant 0 : index
      %c127_323 = arith.constant 127 : index
      %300 = vector.load %arg5[%c0_322, %c127_323] : memref<32x384xf32, #tpu.memory_space<vmem>>, vector<32x128xf32>
      %301 = arith.addf %299, %300 : vector<32x128xf32>
      %c0_324 = arith.constant 0 : index
      %c130_325 = arith.constant 130 : index
      %302 = vector.load %arg5[%c0_324, %c130_325] : memref<32x384xf32, #tpu.memory_space<vmem>>, vector<32x128xf32>
      %303 = arith.addf %301, %302 : vector<32x128xf32>
      %c0_326 = arith.constant 0 : index
      %c133_327 = arith.constant 133 : index
      %304 = vector.load %arg5[%c0_326, %c133_327] : memref<32x384xf32, #tpu.memory_space<vmem>>, vector<32x128xf32>
      %305 = arith.addf %303, %304 : vector<32x128xf32>
      %c8_328 = arith.constant 8 : index
      %c0_329 = arith.constant 0 : index
      %306 = vector.load %arg6[%c8_328, %c0_329] : memref<48x128xf32, #tpu.memory_space<vmem>>, vector<32x128xf32>
      tpu.vector_store %arg6[%c8_328, %c0_329], %305 {strides = array<i32>} : memref<48x128xf32, #tpu.memory_space<vmem>>, vector<32x128xf32>,
      %c1_330 = arith.constant 1 : index
      %c0_331 = arith.constant 0 : index
      %307 = vector.load %arg6[%c1_330, %c0_331] : memref<48x128xf32, #tpu.memory_space<vmem>>, vector<44x128xf32>
      %c2_332 = arith.constant 2 : index
      %c0_333 = arith.constant 0 : index
      %308 = vector.load %arg6[%c2_332, %c0_333] : memref<48x128xf32, #tpu.memory_space<vmem>>, vector<44x128xf32>
      %309 = arith.addf %307, %308 : vector<44x128xf32>
      %c3_334 = arith.constant 3 : index
      %c0_335 = arith.constant 0 : index
      %310 = vector.load %arg6[%c3_334, %c0_335] : memref<48x128xf32, #tpu.memory_space<vmem>>, vector<44x128xf32>
      %311 = arith.addf %309, %310 : vector<44x128xf32>
      %c1_336 = arith.constant 1 : index
      %c0_337 = arith.constant 0 : index
      %312 = vector.load %arg7[%c1_336, %c0_337] : memref<48x128xf32, #tpu.memory_space<vmem>>, vector<44x128xf32>
      tpu.vector_store %arg7[%c1_336, %c0_337], %311 {strides = array<i32>} : memref<48x128xf32, #tpu.memory_space<vmem>>, vector<44x128xf32>,
      %c1_338 = arith.constant 1 : index
      %c0_339 = arith.constant 0 : index
      %313 = vector.load %arg7[%c1_338, %c0_339] : memref<48x128xf32, #tpu.memory_space<vmem>>, vector<32x128xf32>
      %c4_340 = arith.constant 4 : index
      %c0_341 = arith.constant 0 : index
      %314 = vector.load %arg7[%c4_340, %c0_341] : memref<48x128xf32, #tpu.memory_space<vmem>>, vector<32x128xf32>
      %315 = arith.addf %313, %314 : vector<32x128xf32>
      %c7_342 = arith.constant 7 : index
      %c0_343 = arith.constant 0 : index
      %316 = vector.load %arg7[%c7_342, %c0_343] : memref<48x128xf32, #tpu.memory_space<vmem>>, vector<32x128xf32>
      %317 = arith.addf %315, %316 : vector<32x128xf32>
      %c10_344 = arith.constant 10 : index
      %c0_345 = arith.constant 0 : index
      %318 = vector.load %arg7[%c10_344, %c0_345] : memref<48x128xf32, #tpu.memory_space<vmem>>, vector<32x128xf32>
      %319 = arith.addf %317, %318 : vector<32x128xf32>
      %c13_346 = arith.constant 13 : index
      %c0_347 = arith.constant 0 : index
      %320 = vector.load %arg7[%c13_346, %c0_347] : memref<48x128xf32, #tpu.memory_space<vmem>>, vector<32x128xf32>
      %321 = arith.addf %319, %320 : vector<32x128xf32>
      %c0_348 = arith.constant 0 : index
      %c0_349 = arith.constant 0 : index
      %322 = vector.load %arg10[%c0_348, %c0_349] : memref<32x128xf32, #tpu.memory_space<vmem>>, vector<32x128xf32>
      %323 = arith.cmpf olt, %321, %322 : vector<32x128xf32>
      %c0_350 = arith.constant 0 : index
      %c0_351 = arith.constant 0 : index
      %324 = vector.load %arg10[%c0_350, %c0_351] : memref<32x128xf32, #tpu.memory_space<vmem>>, vector<32x128xf32>
      %325 = arith.select %323, %321, %324 : vector<32x128xi1>, vector<32x128xf32>
      %c0_352 = arith.constant 0 : index
      %c0_353 = arith.constant 0 : index
      %326 = vector.load %arg10[%c0_352, %c0_353] : memref<32x128xf32, #tpu.memory_space<vmem>>, vector<32x128xf32>
      tpu.vector_store %arg10[%c0_352, %c0_353], %325 {strides = array<i32>} : memref<32x128xf32, #tpu.memory_space<vmem>>, vector<32x128xf32>,
      %c0_354 = arith.constant 0 : index
      %c0_355 = arith.constant 0 : index
      %c0_356 = arith.constant 0 : index
      %327 = vector.load %arg3[%c0_354, %c0_355, %c0_356] : memref<1x32x128xi32, #tpu.memory_space<vmem>>, vector<1x32x128xi32>
      %328 = vector.shape_cast %327 : vector<1x32x128xi32> to vector<32x128xi32>
      %329 = vector.broadcast %283 : i32 to vector<32x128xi32>
      %330 = arith.select %323, %329, %328 : vector<32x128xi1>, vector<32x128xi32>
      %c0_357 = arith.constant 0 : index
      %c0_358 = arith.constant 0 : index
      %c0_359 = arith.constant 0 : index
      %331 = vector.load %arg3[%c0_357, %c0_358, %c0_359] : memref<1x32x128xi32, #tpu.memory_space<vmem>>, vector<1x32x128xi32>
      %332 = vector.shape_cast %331 : vector<1x32x128xi32> to vector<32x128xi32>
      %333 = vector.shape_cast %330 : vector<32x128xi32> to vector<1x32x128xi32>
      tpu.vector_store %arg3[%c0_357, %c0_358, %c0_359], %333 {strides = array<i32>} : memref<1x32x128xi32, #tpu.memory_space<vmem>>, vector<1x32x128xi32>,
      %c2_i32_360 = arith.constant 2 : i32
      %334 = arith.addi %231, %c2_i32_360 : i32
      %c0_361 = arith.constant 0 : index
      %c126_362 = arith.constant 126 : index
      %335 = vector.load %arg9[%c0_361, %c126_362] : memref<32x256xf32, #tpu.memory_space<vmem>>, vector<32x128xf32>
      %c0_363 = arith.constant 0 : index
      %c0_364 = arith.constant 0 : index
      %c0_365 = arith.constant 0 : index
      %336 = vector.load %arg1[%c0_363, %c0_364, %c0_365] : memref<1x32x128xf32, #tpu.memory_space<vmem>>, vector<1x32x128xf32>
      %337 = vector.shape_cast %336 : vector<1x32x128xf32> to vector<32x128xf32>
      %338 = arith.subf %337, %335 : vector<32x128xf32>
      %339 = math.absf %338 : vector<32x128xf32>
      %340 = vector.extract_strided_slice %339 {offsets = [0, 0], sizes = [32, 64], strides = [1, 1]} : vector<32x128xf32> to vector<32x64xf32>
      %c0_366 = arith.constant 0 : index
      %c128_367 = arith.constant 128 : index
      %341 = vector.load %arg4[%c0_366, %c128_367] : memref<32x384xf32, #tpu.memory_space<vmem>>, vector<32x64xf32>
      tpu.vector_store %arg4[%c0_366, %c128_367], %340 {strides = array<i32>} : memref<32x384xf32, #tpu.memory_space<vmem>>, vector<32x64xf32>,
      %c0_368 = arith.constant 0 : index
      %c121_369 = arith.constant 121 : index
      %342 = vector.load %arg4[%c0_368, %c121_369] : memref<32x384xf32, #tpu.memory_space<vmem>>, vector<32x140xf32>
      %c0_370 = arith.constant 0 : index
      %c122_371 = arith.constant 122 : index
      %343 = vector.load %arg4[%c0_370, %c122_371] : memref<32x384xf32, #tpu.memory_space<vmem>>, vector<32x140xf32>
      %344 = arith.addf %342, %343 : vector<32x140xf32>
      %c0_372 = arith.constant 0 : index
      %c123_373 = arith.constant 123 : index
      %345 = vector.load %arg4[%c0_372, %c123_373] : memref<32x384xf32, #tpu.memory_space<vmem>>, vector<32x140xf32>
      %346 = arith.addf %344, %345 : vector<32x140xf32>
      %c0_374 = arith.constant 0 : index
      %c121_375 = arith.constant 121 : index
      %347 = vector.load %arg5[%c0_374, %c121_375] : memref<32x384xf32, #tpu.memory_space<vmem>>, vector<32x140xf32>
      tpu.vector_store %arg5[%c0_374, %c121_375], %346 {strides = array<i32>} : memref<32x384xf32, #tpu.memory_space<vmem>>, vector<32x140xf32>,
      %c0_376 = arith.constant 0 : index
      %c121_377 = arith.constant 121 : index
      %348 = vector.load %arg5[%c0_376, %c121_377] : memref<32x384xf32, #tpu.memory_space<vmem>>, vector<32x128xf32>
      %c0_378 = arith.constant 0 : index
      %c124_379 = arith.constant 124 : index
      %349 = vector.load %arg5[%c0_378, %c124_379] : memref<32x384xf32, #tpu.memory_space<vmem>>, vector<32x128xf32>
      %350 = arith.addf %348, %349 : vector<32x128xf32>
      %c0_380 = arith.constant 0 : index
      %c127_381 = arith.constant 127 : index
      %351 = vector.load %arg5[%c0_380, %c127_381] : memref<32x384xf32, #tpu.memory_space<vmem>>, vector<32x128xf32>
      %352 = arith.addf %350, %351 : vector<32x128xf32>
      %c0_382 = arith.constant 0 : index
      %c130_383 = arith.constant 130 : index
      %353 = vector.load %arg5[%c0_382, %c130_383] : memref<32x384xf32, #tpu.memory_space<vmem>>, vector<32x128xf32>
      %354 = arith.addf %352, %353 : vector<32x128xf32>
      %c0_384 = arith.constant 0 : index
      %c133_385 = arith.constant 133 : index
      %355 = vector.load %arg5[%c0_384, %c133_385] : memref<32x384xf32, #tpu.memory_space<vmem>>, vector<32x128xf32>
      %356 = arith.addf %354, %355 : vector<32x128xf32>
      %c8_386 = arith.constant 8 : index
      %c0_387 = arith.constant 0 : index
      %357 = vector.load %arg6[%c8_386, %c0_387] : memref<48x128xf32, #tpu.memory_space<vmem>>, vector<32x128xf32>
      tpu.vector_store %arg6[%c8_386, %c0_387], %356 {strides = array<i32>} : memref<48x128xf32, #tpu.memory_space<vmem>>, vector<32x128xf32>,
      %c1_388 = arith.constant 1 : index
      %c0_389 = arith.constant 0 : index
      %358 = vector.load %arg6[%c1_388, %c0_389] : memref<48x128xf32, #tpu.memory_space<vmem>>, vector<44x128xf32>
      %c2_390 = arith.constant 2 : index
      %c0_391 = arith.constant 0 : index
      %359 = vector.load %arg6[%c2_390, %c0_391] : memref<48x128xf32, #tpu.memory_space<vmem>>, vector<44x128xf32>
      %360 = arith.addf %358, %359 : vector<44x128xf32>
      %c3_392 = arith.constant 3 : index
      %c0_393 = arith.constant 0 : index
      %361 = vector.load %arg6[%c3_392, %c0_393] : memref<48x128xf32, #tpu.memory_space<vmem>>, vector<44x128xf32>
      %362 = arith.addf %360, %361 : vector<44x128xf32>
      %c1_394 = arith.constant 1 : index
      %c0_395 = arith.constant 0 : index
      %363 = vector.load %arg7[%c1_394, %c0_395] : memref<48x128xf32, #tpu.memory_space<vmem>>, vector<44x128xf32>
      tpu.vector_store %arg7[%c1_394, %c0_395], %362 {strides = array<i32>} : memref<48x128xf32, #tpu.memory_space<vmem>>, vector<44x128xf32>,
      %c1_396 = arith.constant 1 : index
      %c0_397 = arith.constant 0 : index
      %364 = vector.load %arg7[%c1_396, %c0_397] : memref<48x128xf32, #tpu.memory_space<vmem>>, vector<32x128xf32>
      %c4_398 = arith.constant 4 : index
      %c0_399 = arith.constant 0 : index
      %365 = vector.load %arg7[%c4_398, %c0_399] : memref<48x128xf32, #tpu.memory_space<vmem>>, vector<32x128xf32>
      %366 = arith.addf %364, %365 : vector<32x128xf32>
      %c7_400 = arith.constant 7 : index
      %c0_401 = arith.constant 0 : index
      %367 = vector.load %arg7[%c7_400, %c0_401] : memref<48x128xf32, #tpu.memory_space<vmem>>, vector<32x128xf32>
      %368 = arith.addf %366, %367 : vector<32x128xf32>
      %c10_402 = arith.constant 10 : index
      %c0_403 = arith.constant 0 : index
      %369 = vector.load %arg7[%c10_402, %c0_403] : memref<48x128xf32, #tpu.memory_space<vmem>>, vector<32x128xf32>
      %370 = arith.addf %368, %369 : vector<32x128xf32>
      %c13_404 = arith.constant 13 : index
      %c0_405 = arith.constant 0 : index
      %371 = vector.load %arg7[%c13_404, %c0_405] : memref<48x128xf32, #tpu.memory_space<vmem>>, vector<32x128xf32>
      %372 = arith.addf %370, %371 : vector<32x128xf32>
      %c0_406 = arith.constant 0 : index
      %c0_407 = arith.constant 0 : index
      %373 = vector.load %arg10[%c0_406, %c0_407] : memref<32x128xf32, #tpu.memory_space<vmem>>, vector<32x128xf32>
      %374 = arith.cmpf olt, %372, %373 : vector<32x128xf32>
      %c0_408 = arith.constant 0 : index
      %c0_409 = arith.constant 0 : index
      %375 = vector.load %arg10[%c0_408, %c0_409] : memref<32x128xf32, #tpu.memory_space<vmem>>, vector<32x128xf32>
      %376 = arith.select %374, %372, %375 : vector<32x128xi1>, vector<32x128xf32>
      %c0_410 = arith.constant 0 : index
      %c0_411 = arith.constant 0 : index
      %377 = vector.load %arg10[%c0_410, %c0_411] : memref<32x128xf32, #tpu.memory_space<vmem>>, vector<32x128xf32>
      tpu.vector_store %arg10[%c0_410, %c0_411], %376 {strides = array<i32>} : memref<32x128xf32, #tpu.memory_space<vmem>>, vector<32x128xf32>,
      %c0_412 = arith.constant 0 : index
      %c0_413 = arith.constant 0 : index
      %c0_414 = arith.constant 0 : index
      %378 = vector.load %arg3[%c0_412, %c0_413, %c0_414] : memref<1x32x128xi32, #tpu.memory_space<vmem>>, vector<1x32x128xi32>
      %379 = vector.shape_cast %378 : vector<1x32x128xi32> to vector<32x128xi32>
      %380 = vector.broadcast %334 : i32 to vector<32x128xi32>
      %381 = arith.select %374, %380, %379 : vector<32x128xi1>, vector<32x128xi32>
      %c0_415 = arith.constant 0 : index
      %c0_416 = arith.constant 0 : index
      %c0_417 = arith.constant 0 : index
      %382 = vector.load %arg3[%c0_415, %c0_416, %c0_417] : memref<1x32x128xi32, #tpu.memory_space<vmem>>, vector<1x32x128xi32>
      %383 = vector.shape_cast %382 : vector<1x32x128xi32> to vector<32x128xi32>
      %384 = vector.shape_cast %381 : vector<32x128xi32> to vector<1x32x128xi32>
      tpu.vector_store %arg3[%c0_415, %c0_416, %c0_417], %384 {strides = array<i32>} : memref<1x32x128xi32, #tpu.memory_space<vmem>>, vector<1x32x128xi32>,
      %c3_i32_418 = arith.constant 3 : i32
      %385 = arith.addi %231, %c3_i32_418 : i32
      %c0_419 = arith.constant 0 : index
      %c125_420 = arith.constant 125 : index
      %386 = vector.load %arg9[%c0_419, %c125_420] : memref<32x256xf32, #tpu.memory_space<vmem>>, vector<32x128xf32>
      %c0_421 = arith.constant 0 : index
      %c0_422 = arith.constant 0 : index
      %c0_423 = arith.constant 0 : index
      %387 = vector.load %arg1[%c0_421, %c0_422, %c0_423] : memref<1x32x128xf32, #tpu.memory_space<vmem>>, vector<1x32x128xf32>
      %388 = vector.shape_cast %387 : vector<1x32x128xf32> to vector<32x128xf32>
      %389 = arith.subf %388, %386 : vector<32x128xf32>
      %390 = math.absf %389 : vector<32x128xf32>
      %391 = vector.extract_strided_slice %390 {offsets = [0, 0], sizes = [32, 64], strides = [1, 1]} : vector<32x128xf32> to vector<32x64xf32>
      %c0_424 = arith.constant 0 : index
      %c128_425 = arith.constant 128 : index
      %392 = vector.load %arg4[%c0_424, %c128_425] : memref<32x384xf32, #tpu.memory_space<vmem>>, vector<32x64xf32>
      tpu.vector_store %arg4[%c0_424, %c128_425], %391 {strides = array<i32>} : memref<32x384xf32, #tpu.memory_space<vmem>>, vector<32x64xf32>,
      %c0_426 = arith.constant 0 : index
      %c121_427 = arith.constant 121 : index
      %393 = vector.load %arg4[%c0_426, %c121_427] : memref<32x384xf32, #tpu.memory_space<vmem>>, vector<32x140xf32>
      %c0_428 = arith.constant 0 : index
      %c122_429 = arith.constant 122 : index
      %394 = vector.load %arg4[%c0_428, %c122_429] : memref<32x384xf32, #tpu.memory_space<vmem>>, vector<32x140xf32>
      %395 = arith.addf %393, %394 : vector<32x140xf32>
      %c0_430 = arith.constant 0 : index
      %c123_431 = arith.constant 123 : index
      %396 = vector.load %arg4[%c0_430, %c123_431] : memref<32x384xf32, #tpu.memory_space<vmem>>, vector<32x140xf32>
      %397 = arith.addf %395, %396 : vector<32x140xf32>
      %c0_432 = arith.constant 0 : index
      %c121_433 = arith.constant 121 : index
      %398 = vector.load %arg5[%c0_432, %c121_433] : memref<32x384xf32, #tpu.memory_space<vmem>>, vector<32x140xf32>
      tpu.vector_store %arg5[%c0_432, %c121_433], %397 {strides = array<i32>} : memref<32x384xf32, #tpu.memory_space<vmem>>, vector<32x140xf32>,
      %c0_434 = arith.constant 0 : index
      %c121_435 = arith.constant 121 : index
      %399 = vector.load %arg5[%c0_434, %c121_435] : memref<32x384xf32, #tpu.memory_space<vmem>>, vector<32x128xf32>
      %c0_436 = arith.constant 0 : index
      %c124_437 = arith.constant 124 : index
      %400 = vector.load %arg5[%c0_436, %c124_437] : memref<32x384xf32, #tpu.memory_space<vmem>>, vector<32x128xf32>
      %401 = arith.addf %399, %400 : vector<32x128xf32>
      %c0_438 = arith.constant 0 : index
      %c127_439 = arith.constant 127 : index
      %402 = vector.load %arg5[%c0_438, %c127_439] : memref<32x384xf32, #tpu.memory_space<vmem>>, vector<32x128xf32>
      %403 = arith.addf %401, %402 : vector<32x128xf32>
      %c0_440 = arith.constant 0 : index
      %c130_441 = arith.constant 130 : index
      %404 = vector.load %arg5[%c0_440, %c130_441] : memref<32x384xf32, #tpu.memory_space<vmem>>, vector<32x128xf32>
      %405 = arith.addf %403, %404 : vector<32x128xf32>
      %c0_442 = arith.constant 0 : index
      %c133_443 = arith.constant 133 : index
      %406 = vector.load %arg5[%c0_442, %c133_443] : memref<32x384xf32, #tpu.memory_space<vmem>>, vector<32x128xf32>
      %407 = arith.addf %405, %406 : vector<32x128xf32>
      %c8_444 = arith.constant 8 : index
      %c0_445 = arith.constant 0 : index
      %408 = vector.load %arg6[%c8_444, %c0_445] : memref<48x128xf32, #tpu.memory_space<vmem>>, vector<32x128xf32>
      tpu.vector_store %arg6[%c8_444, %c0_445], %407 {strides = array<i32>} : memref<48x128xf32, #tpu.memory_space<vmem>>, vector<32x128xf32>,
      %c1_446 = arith.constant 1 : index
      %c0_447 = arith.constant 0 : index
      %409 = vector.load %arg6[%c1_446, %c0_447] : memref<48x128xf32, #tpu.memory_space<vmem>>, vector<44x128xf32>
      %c2_448 = arith.constant 2 : index
      %c0_449 = arith.constant 0 : index
      %410 = vector.load %arg6[%c2_448, %c0_449] : memref<48x128xf32, #tpu.memory_space<vmem>>, vector<44x128xf32>
      %411 = arith.addf %409, %410 : vector<44x128xf32>
      %c3_450 = arith.constant 3 : index
      %c0_451 = arith.constant 0 : index
      %412 = vector.load %arg6[%c3_450, %c0_451] : memref<48x128xf32, #tpu.memory_space<vmem>>, vector<44x128xf32>
      %413 = arith.addf %411, %412 : vector<44x128xf32>
      %c1_452 = arith.constant 1 : index
      %c0_453 = arith.constant 0 : index
      %414 = vector.load %arg7[%c1_452, %c0_453] : memref<48x128xf32, #tpu.memory_space<vmem>>, vector<44x128xf32>
      tpu.vector_store %arg7[%c1_452, %c0_453], %413 {strides = array<i32>} : memref<48x128xf32, #tpu.memory_space<vmem>>, vector<44x128xf32>,
      %c1_454 = arith.constant 1 : index
      %c0_455 = arith.constant 0 : index
      %415 = vector.load %arg7[%c1_454, %c0_455] : memref<48x128xf32, #tpu.memory_space<vmem>>, vector<32x128xf32>
      %c4_456 = arith.constant 4 : index
      %c0_457 = arith.constant 0 : index
      %416 = vector.load %arg7[%c4_456, %c0_457] : memref<48x128xf32, #tpu.memory_space<vmem>>, vector<32x128xf32>
      %417 = arith.addf %415, %416 : vector<32x128xf32>
      %c7_458 = arith.constant 7 : index
      %c0_459 = arith.constant 0 : index
      %418 = vector.load %arg7[%c7_458, %c0_459] : memref<48x128xf32, #tpu.memory_space<vmem>>, vector<32x128xf32>
      %419 = arith.addf %417, %418 : vector<32x128xf32>
      %c10_460 = arith.constant 10 : index
      %c0_461 = arith.constant 0 : index
      %420 = vector.load %arg7[%c10_460, %c0_461] : memref<48x128xf32, #tpu.memory_space<vmem>>, vector<32x128xf32>
      %421 = arith.addf %419, %420 : vector<32x128xf32>
      %c13_462 = arith.constant 13 : index
      %c0_463 = arith.constant 0 : index
      %422 = vector.load %arg7[%c13_462, %c0_463] : memref<48x128xf32, #tpu.memory_space<vmem>>, vector<32x128xf32>
      %423 = arith.addf %421, %422 : vector<32x128xf32>
      %c0_464 = arith.constant 0 : index
      %c0_465 = arith.constant 0 : index
      %424 = vector.load %arg10[%c0_464, %c0_465] : memref<32x128xf32, #tpu.memory_space<vmem>>, vector<32x128xf32>
      %425 = arith.cmpf olt, %423, %424 : vector<32x128xf32>
      %c0_466 = arith.constant 0 : index
      %c0_467 = arith.constant 0 : index
      %426 = vector.load %arg10[%c0_466, %c0_467] : memref<32x128xf32, #tpu.memory_space<vmem>>, vector<32x128xf32>
      %427 = arith.select %425, %423, %426 : vector<32x128xi1>, vector<32x128xf32>
      %c0_468 = arith.constant 0 : index
      %c0_469 = arith.constant 0 : index
      %428 = vector.load %arg10[%c0_468, %c0_469] : memref<32x128xf32, #tpu.memory_space<vmem>>, vector<32x128xf32>
      tpu.vector_store %arg10[%c0_468, %c0_469], %427 {strides = array<i32>} : memref<32x128xf32, #tpu.memory_space<vmem>>, vector<32x128xf32>,
      %c0_470 = arith.constant 0 : index
      %c0_471 = arith.constant 0 : index
      %c0_472 = arith.constant 0 : index
      %429 = vector.load %arg3[%c0_470, %c0_471, %c0_472] : memref<1x32x128xi32, #tpu.memory_space<vmem>>, vector<1x32x128xi32>
      %430 = vector.shape_cast %429 : vector<1x32x128xi32> to vector<32x128xi32>
      %431 = vector.broadcast %385 : i32 to vector<32x128xi32>
      %432 = arith.select %425, %431, %430 : vector<32x128xi1>, vector<32x128xi32>
      %c0_473 = arith.constant 0 : index
      %c0_474 = arith.constant 0 : index
      %c0_475 = arith.constant 0 : index
      %433 = vector.load %arg3[%c0_473, %c0_474, %c0_475] : memref<1x32x128xi32, #tpu.memory_space<vmem>>, vector<1x32x128xi32>
      %434 = vector.shape_cast %433 : vector<1x32x128xi32> to vector<32x128xi32>
      %435 = vector.shape_cast %432 : vector<32x128xi32> to vector<1x32x128xi32>
      tpu.vector_store %arg3[%c0_473, %c0_474, %c0_475], %435 {strides = array<i32>} : memref<1x32x128xi32, #tpu.memory_space<vmem>>, vector<1x32x128xi32>,
      %c0_476 = arith.constant 0 : index
      %c124_477 = arith.constant 124 : index
      %436 = vector.load %arg9[%c0_476, %c124_477] : memref<32x256xf32, #tpu.memory_space<vmem>>, vector<32x128xf32>
      %c0_478 = arith.constant 0 : index
      %c128_479 = arith.constant 128 : index
      %437 = vector.load %arg8[%c0_478, %c128_479] : memref<32x256xf32, #tpu.memory_space<vmem>>, vector<32x128xf32>
      tpu.vector_store %arg8[%c0_478, %c128_479], %436 {strides = array<i32>} : memref<32x256xf32, #tpu.memory_space<vmem>>, vector<32x128xf32>,
    }
    %c2_i32_25 = arith.constant 2 : i32
    return
  }
  func.func @transform_0(%arg0: i32) -> (i32, i32, i32) {
    %c0_i32 = arith.constant 0 : i32
    %c0_i32_0 = arith.constant 0 : i32
    %c0_i32_1 = arith.constant 0 : i32
    return %arg0, %c0_i32, %c0_i32_0 : i32, i32, i32
  }
  func.func @transform_1(%arg0: i32) -> (i32, i32, i32) {
    %c0_i32 = arith.constant 0 : i32
    %c0_i32_0 = arith.constant 0 : i32
    %c0_i32_1 = arith.constant 0 : i32
    return %arg0, %c0_i32, %c0_i32_0 : i32, i32, i32
  }
  func.func @transform_2(%arg0: i32) -> (i32, i32, i32) {
    %c0_i32 = arith.constant 0 : i32
    %c0_i32_0 = arith.constant 0 : i32
    %c0_i32_1 = arith.constant 0 : i32
    return %arg0, %c0_i32, %c0_i32_0 : i32, i32, i32
  }
}

</mosaic_0001>

<llo_original>
// kernel: tpu_custom_call.1
$region0: #{tpu_custom_call.1}
  #allocation0 [shape = 'u32[]', space=smem, size = 0x4, offset = 0x4, fixed_abs, tag = 'smem constant byte address 0x4 - core index']
  #allocation1 [shape = 'u32[144,128]{1,0:T(1,128)}', space=vmem, size = 0x12000, scoped, tag = 'internal scratch']
  #allocation2 [shape = 'f32[32,384]{1,0:T(8,128)}', space=vmem, size = 0xc000, scoped, tag = 'scratch operand']
  #allocation3 [shape = 'f32[32,384]{1,0:T(8,128)}', space=vmem, size = 0xc000, scoped, tag = 'scratch operand']
  #allocation4 [shape = 'f32[48,128]{1,0:T(8,128)}', space=vmem, size = 0x6000, scoped, tag = 'scratch operand']
  #allocation5 [shape = 'f32[48,128]{1,0:T(8,128)}', space=vmem, size = 0x6000, scoped, tag = 'scratch operand']
  #allocation6 [shape = 'f32[32,256]{1,0:T(8,128)}', space=vmem, size = 0x8000, scoped, tag = 'scratch operand']
  #allocation7 [shape = 'f32[32,256]{1,0:T(8,128)}', space=vmem, size = 0x8000, scoped, tag = 'scratch operand']
  #allocation8 [shape = 'f32[32,128]{1,0:T(8,128)}', space=vmem, size = 0x4000, scoped, tag = 'scratch operand']
  %s0 = inlined_call_operand.hbm [shape: f32[2,32,128], index: 0, kind: input, shape index: {}]
  %s1 = inlined_call_operand.hbm [shape: f32[2,32,128], index: 1, kind: input, shape index: {}]
  %s2 = inlined_call_operand.hbm [shape: s32[2,32,128], index: 2, kind: output, shape index: {}]
  %s3 = sld [smem:[#allocation0]]
  $region56: #{tpu_custom_call.1} parent=0
    _
  %s5 = ssub.s32 1, %s3
  %s6 = scalar_select 0, %s5, %s3
  $region1: #{tpu_custom_call.1} parent=0
    #allocation9 [shape = 'u8[32768]{0}', space=vmem, size = 0x8000, scoped, tag = 'input window, operand 0']
    #allocation10 [shape = 's32[2]{0}', space=sflag, size = 0x8, scoped, tag = 'scoped memory for tpu_custom_call.1']
    #allocation11 [shape = 's32[2]{0}', space=sflag, size = 0x8, scoped, tag = 'scoped memory for tpu_custom_call.1']
    #allocation12 [shape = 'u8[32768]{0}', space=vmem, size = 0x8000, scoped, tag = 'input window, operand 1']
    #allocation13 [shape = 's32[2]{0}', space=sflag, size = 0x8, scoped, tag = 'scoped memory for tpu_custom_call.1']
    #allocation14 [shape = 'u8[32768]{0}', space=vmem, size = 0x8000, scoped, tag = 'output window, operand 0']
    %7 = vsyncpa [#allocation10], 0
    %s8 = scalar_lea.sflag [#allocation10], 1
    %9 = vsyncpa %s8, 0
    %10 = vsyncpa [#allocation13], 0
    %s11 = scalar_lea.sflag [#allocation13], 1
    %12 = vsyncpa %s11, 0
    %13 = vsyncpa [#allocation11], 0
    %s14 = scalar_lea.sflag [#allocation11], 1
    %15 = vsyncpa %s14, 0
    loop: start=0, step=1, limit=4
    $region2: #{tpu_custom_call.1} parent=1 // loop_pre_header
      _
    $region3: #{tpu_custom_call.1} parent=1 // loop_header
      %s17 = sphi 0, %s21
      %p18 = scmp.ge.s32.totalorder %s17, 4
      %s27 = sphi 0, %s29
      %s30 = sphi 0, %s27
      %s31 = sphi 0, %s30
      %s47 = sphi 0, %s31
      %s53 = sphi 0, %s55
      %s56 = sphi 0, %s53
      %s57 = sphi 0, %s56
      %s73 = sphi 0, %s57
      %s79 = sphi 0, %s81
      %s82 = sphi 0, %s79
      %s83 = sphi 0, %s82
      %s99 = sphi 0, %s83
    $region4: #{tpu_custom_call.1} parent=1 // loop_header_branch
      %20 = sbr.rel (%p18) target = $region8
    $region5: #{tpu_custom_call.1} parent=1 // loop_body
      %s22 = ssub.s32 %s17, 1
      %s23 = ssub.s32 %s17, 2
      %s24 = sadd.s32 %s17, 1
      %s25 = ssub.s32 %s17, %s24
      %p26 = scmp.eq.s32.totalorder %s25, 0
      %s28 = sadd.s32 %s27, 1
      %s29 = scalar_select %p26, %s27, %s28
      %p32 = pneg %p26
      %p33 = scmp.eq.s32.totalorder %s17, 1
      %p34 = por %p32, %p33
      %p35 = scmp.ne.s32.totalorder %s27, %s30
      %p36 = scmp.eq.s32.totalorder %s17, 0
      %p37 = por %p35, %p36
      %p38 = scmp.ne.s32.totalorder %s27, %s30
      %p39 = scmp.eq.s32.totalorder %s22, 1
      %p40 = por %p38, %p39
      %p41 = scmp.ne.s32.totalorder %s30, %s31
      %p42 = scmp.eq.s32.totalorder %s22, 0
      %p43 = por %p41, %p42
      %p44 = scmp.ne.s32.totalorder %s30, %s31
      %p45 = scmp.eq.s32.totalorder %s23, 1
      %p46 = por %p44, %p45
      %p48 = scmp.ne.s32.totalorder %s31, %s47
      %p49 = scmp.eq.s32.totalorder %s23, 0
      %p50 = por %p48, %p49
      %s51 = ssub.s32 %s17, %s24
      %p52 = scmp.eq.s32.totalorder %s51, 0
      %s54 = sadd.s32 %s53, 1
      %s55 = scalar_select %p52, %s53, %s54
      %p58 = pneg %p52
      %p59 = scmp.eq.s32.totalorder %s17, 1
      %p60 = por %p58, %p59
      %p61 = scmp.ne.s32.totalorder %s53, %s56
      %p62 = scmp.eq.s32.totalorder %s17, 0
      %p63 = por %p61, %p62
      %p64 = scmp.ne.s32.totalorder %s53, %s56
      %p65 = scmp.eq.s32.totalorder %s22, 1
      %p66 = por %p64, %p65
      %p67 = scmp.ne.s32.totalorder %s56, %s57
      %p68 = scmp.eq.s32.totalorder %s22, 0
      %p69 = por %p67, %p68
      %p70 = scmp.ne.s32.totalorder %s56, %s57
      %p71 = scmp.eq.s32.totalorder %s23, 1
      %p72 = por %p70, %p71
      %p74 = scmp.ne.s32.totalorder %s57, %s73
      %p75 = scmp.eq.s32.totalorder %s23, 0
      %p76 = por %p74, %p75
      %s77 = ssub.s32 %s17, %s24
      %p78 = scmp.eq.s32.totalorder %s77, 0
      %s80 = sadd.s32 %s79, 1
      %s81 = scalar_select %p78, %s79, %s80
      %p84 = pneg %p78
      %p85 = scmp.eq.s32.totalorder %s17, 1
      %p86 = por %p84, %p85
      %p87 = scmp.ne.s32.totalorder %s79, %s82
      %p88 = scmp.eq.s32.totalorder %s17, 0
      %p89 = por %p87, %p88
      %p90 = scmp.ne.s32.totalorder %s79, %s82
      %p91 = scmp.eq.s32.totalorder %s22, 1
      %p92 = por %p90, %p91
      %p93 = scmp.ne.s32.totalorder %s82, %s83
      %p94 = scmp.eq.s32.totalorder %s22, 0
      %p95 = por %p93, %p94
      %p96 = scmp.ne.s32.totalorder %s82, %s83
      %p97 = scmp.eq.s32.totalorder %s23, 1
      %p98 = por %p96, %p97
      %p100 = scmp.ne.s32.totalorder %s83, %s99
      %p101 = scmp.eq.s32.totalorder %s23, 0
      %p102 = por %p100, %p101
      %p103 = scmp.le.s32.totalorder 1, %s17
      %p104 = scmp.lt.s32.totalorder %s17, 3
      %p105 = pnand %p103, %p104
      %p106 = pneg %p105
      // Predicated region
      $region9: #{tpu_custom_call.1} parent=5 // pred_check
        _
      $region10: #{tpu_custom_call.1} parent=5 // pred_check_branch
        %108 = sbr.rel (%p105) target = $region12
      $region11: #{tpu_custom_call.1} parent=5 // pred_region
        %s109 = ssub.s32 %s17, 1
      $region12: #{tpu_custom_call.1} parent=5 // pred_fallthru
        _
      %p110 = scmp.lt.s32.totalorder %s17, 2
      // Predicated region
      $region13: #{tpu_custom_call.1} parent=5 // pred_check
        %p111 = pneg %p110
      $region14: #{tpu_custom_call.1} parent=5 // pred_check_branch
        %113 = sbr.rel (%p111) target = $region16
      $region15: #{tpu_custom_call.1} parent=5 // pred_region
        // Predicated region
        $region17: #{tpu_custom_call.1} parent=15 // pred_check
          %p114 = pneg %p37
        $region18: #{tpu_custom_call.1} parent=15 // pred_check_branch
          %116 = sbr.rel (%p114) target = $region20
        $region19: #{tpu_custom_call.1} parent=15 // pred_region
          %s117 = sand.u32 %s27, 1
          %s118 = scalar_lea.sflag [#allocation10], %s117
          %s119 = sand.u32 %s27, 1
          %s120 = smul.addr %s119, 32
          %s121 = scalar_lea.vmem [#allocation9], %s120
          %s123 = ssub.s32 512, 512
          %124 = vsyncadd %s118, %s123
          %s125 = smul.addr %s17, 4
          %s126 = smul.addr %s125, 128
          %s127 = scalar_lea.hbm %s0, %s126
          %s128 = sshll.u32 %s121, 4
          %s129 = int_to_ptr.vmem [resolvable:$true] %s128
          %134 = dma.hbm_to_vmem [thread:$0]  %s127, 512, %s129, %s118, 128, 128, 8
        $region20: #{tpu_custom_call.1} parent=15 // pred_fallthru
          _
        // Predicated region
        $region21: #{tpu_custom_call.1} parent=15 // pred_check
          %p135 = pneg %p63
        $region22: #{tpu_custom_call.1} parent=15 // pred_check_branch
          %137 = sbr.rel (%p135) target = $region24
        $region23: #{tpu_custom_call.1} parent=15 // pred_region
          %s138 = sand.u32 %s53, 1
          %s139 = scalar_lea.sflag [#allocation13], %s138
          %s140 = sand.u32 %s53, 1
          %s141 = smul.addr %s140, 32
          %s142 = scalar_lea.vmem [#allocation12], %s141
          %s144 = ssub.s32 512, 512
          %145 = vsyncadd %s139, %s144
          %s146 = smul.addr %s17, 4
          %s147 = smul.addr %s146, 128
          %s148 = scalar_lea.hbm %s1, %s147
          %s149 = sshll.u32 %s142, 4
          %s150 = int_to_ptr.vmem [resolvable:$true] %s149
          %155 = dma.hbm_to_vmem [thread:$0]  %s148, 512, %s150, %s139, 128, 128, 8
        $region24: #{tpu_custom_call.1} parent=15 // pred_fallthru
          _
      $region16: #{tpu_custom_call.1} parent=5 // pred_fallthru
        _
      %p156 = scmp.le.s32.totalorder 1, %s17
      %p157 = scmp.lt.s32.totalorder %s17, 3
      %p158 = pnand %p156, %p157
      %p159 = pneg %p158
      // Predicated region
      $region25: #{tpu_custom_call.1} parent=5 // pred_check
        _
      $region26: #{tpu_custom_call.1} parent=5 // pred_check_branch
        %161 = sbr.rel (%p158) target = $region28
      $region27: #{tpu_custom_call.1} parent=5 // pred_region
        %s162 = ssub.s32 %s17, 1
        %s163 = sand.u32 %s30, 1
        %s164 = scalar_lea.sflag [#allocation10], %s163
        %s165 = sand.u32 %s30, 1
        %s166 = smul.addr %s165, 32
        %s167 = scalar_lea.vmem [#allocation9], %s166
        // Predicated region
        $region29: #{tpu_custom_call.1} parent=27 // pred_check
          %p168 = pneg %p43
        $region30: #{tpu_custom_call.1} parent=27 // pred_check_branch
          %170 = sbr.rel (%p168) target = $region32
        $region31: #{tpu_custom_call.1} parent=27 // pred_region
          %171 = dma.done %s164, 512
        $region32: #{tpu_custom_call.1} parent=27 // pred_fallthru
          _
        %s172 = sand.u32 %s56, 1
        %s173 = scalar_lea.sflag [#allocation13], %s172
        %s174 = sand.u32 %s56, 1
        %s175 = smul.addr %s174, 32
        %s176 = scalar_lea.vmem [#allocation12], %s175
        // Predicated region
        $region33: #{tpu_custom_call.1} parent=27 // pred_check
          %p177 = pneg %p69
        $region34: #{tpu_custom_call.1} parent=27 // pred_check_branch
          %179 = sbr.rel (%p177) target = $region36
        $region35: #{tpu_custom_call.1} parent=27 // pred_region
          %180 = dma.done %s173, 512
        $region36: #{tpu_custom_call.1} parent=27 // pred_fallthru
          _
        %s181 = sand.u32 %s30, 1
        %s182 = scalar_lea.sflag [#allocation10], %s181
        %s183 = sand.u32 %s30, 1
        %s184 = smul.addr %s183, 32
        %s185 = scalar_lea.vmem [#allocation9], %s184
        %p186 = pneg %p43
        %p187 = pneg %p40
        %s188 = sand.u32 %s56, 1
        %s189 = scalar_lea.sflag [#allocation13], %s188
        %s190 = sand.u32 %s56, 1
        %s191 = smul.addr %s190, 32
        %s192 = scalar_lea.vmem [#allocation12], %s191
        %p193 = pneg %p69
        %p194 = pneg %p66
        %p195 = pneg %p95
        %p196 = pneg %p92
        %s197 = sand.u32 %s82, 1
        %s198 = scalar_lea.sflag [#allocation11], %s197
        %s199 = sand.u32 %s82, 1
        %s200 = smul.addr %s199, 32
        %s201 = scalar_lea.vmem [#allocation14], %s200
        %202 = vst [vmem:[#allocation2] sm:$0xff] 0.0
        %203 = vst [vmem:[#allocation2 + $0x18] sm:$0xff] 0.0
        %204 = vst [vmem:[#allocation2 + $0x30] sm:$0xff] 0.0
        %205 = vst [vmem:[#allocation2 + $0x48] sm:$0xff] 0.0
        %vm206 = vcmask 1048064
        %207 = vst.msk [vmem:[#allocation2 + $0x8] sm:$0xff] %vm206, 0.0
        %208 = vst [vmem:[#allocation2 + $0x10] sm:$0xff] 0.0
        %209 = vst.msk [vmem:[#allocation2 + $0x20] sm:$0xff] %vm206, 0.0
        %210 = vst [vmem:[#allocation2 + $0x28] sm:$0xff] 0.0
        %211 = vst.msk [vmem:[#allocation2 + $0x38] sm:$0xff] %vm206, 0.0
        %212 = vst [vmem:[#allocation2 + $0x40] sm:$0xff] 0.0
        %213 = vst.msk [vmem:[#allocation2 + $0x50] sm:$0xff] %vm206, 0.0
        %214 = vst [vmem:[#allocation2 + $0x58] sm:$0xff] 0.0
        %215 = vst [vmem:[#allocation4] sm:$0xff] 0.0
        %216 = vst [vmem:[#allocation4 + $0x28] sm:$0xff] 0.0
        %v217 = vld [vmem:[%s176] sm:$0xff]
        %v218 = vld [vmem:[%s176 + $0x8] sm:$0xff]
        %v219 = vld [vmem:[%s176 + $0x10] sm:$0xff]
        %v220 = vld [vmem:[%s176 + $0x18] sm:$0xff]
        %222 = vset.pattern.permute.xlu0 0
        %223 = vperm.xlu0 %222, %v217
        %v224 = vpop.permute.xlu0 %223
        %227 = vset.pattern.permute.xlu0 0
        %228 = vperm.xlu0 %227, %v218
        %v229 = vpop.permute.xlu0 %228
        %232 = vset.pattern.permute.xlu0 0
        %233 = vperm.xlu0 %232, %v219
        %v234 = vpop.permute.xlu0 %233
        %237 = vset.pattern.permute.xlu0 0
        %238 = vperm.xlu0 %237, %v220
        %v239 = vpop.permute.xlu0 %238
        %241 = vst [vmem:[#allocation6 + $0x8] sm:$0xff] %v217
        %242 = vst [vmem:[#allocation6 + $0x18] sm:$0xff] %v218
        %243 = vst [vmem:[#allocation6 + $0x28] sm:$0xff] %v219
        %244 = vst [vmem:[#allocation6 + $0x38] sm:$0xff] %v220
        %vm245 = vcmask 1048512
        %246 = vst.msk [vmem:[#allocation6] sm:$0xff] %vm245, %v224
        %247 = vst.msk [vmem:[#allocation6 + $0x10] sm:$0xff] %vm245, %v229
        %248 = vst.msk [vmem:[#allocation6 + $0x20] sm:$0xff] %vm245, %v234
        %249 = vst.msk [vmem:[#allocation6 + $0x30] sm:$0xff] %vm245, %v239
        %250 = vst.msk [vmem:[#allocation7] sm:$0xff] %vm245, %v224
        %251 = vst.msk [vmem:[#allocation7 + $0x10] sm:$0xff] %vm245, %v229
        %252 = vst.msk [vmem:[#allocation7 + $0x20] sm:$0xff] %vm245, %v234
        %253 = vst.msk [vmem:[#allocation7 + $0x30] sm:$0xff] %vm245, %v239
        %254 = vst [vmem:[#allocation8] sm:$0xff] inf
        %255 = vst [vmem:[#allocation8 + $0x8] sm:$0xff] inf
        %256 = vst [vmem:[#allocation8 + $0x10] sm:$0xff] inf
        %257 = vst [vmem:[#allocation8 + $0x18] sm:$0xff] inf
        %258 = vst [vmem:[%s201] sm:$0xff] 0
        %259 = vst [vmem:[%s201 + $0x8] sm:$0xff] 0
        %260 = vst [vmem:[%s201 + $0x10] sm:$0xff] 0
        %261 = vst [vmem:[%s201 + $0x18] sm:$0xff] 0
        loop: start=0, step=1, limit=2
        $region37: #{tpu_custom_call.1} parent=27 // loop_pre_header
          _
        $region38: #{tpu_custom_call.1} parent=27 // loop_header
          %s263 = sphi 0, %s267
          %p264 = scmp.ge.s32.totalorder %s263, 2
        $region39: #{tpu_custom_call.1} parent=27 // loop_header_branch
          %266 = sbr.rel (%p264) target = $region43
        $region40: #{tpu_custom_call.1} parent=27 // loop_body
          %s268 = smul.u32 %s263, 8
          %v269 = vld [vmem:[#allocation6 + $0x8] sm:$0xff]
          %v270 = vld [vmem:[#allocation6 + $0x18] sm:$0xff]
          %v271 = vld [vmem:[#allocation6 + $0x28] sm:$0xff]
          %v272 = vld [vmem:[#allocation6 + $0x38] sm:$0xff]
          %v273 = vld [vmem:[%s167] sm:$0xff]
          %v274 = vld [vmem:[%s167 + $0x8] sm:$0xff]
          %v275 = vld [vmem:[%s167 + $0x10] sm:$0xff]
          %v276 = vld [vmem:[%s167 + $0x18] sm:$0xff]
          %v277 = vsub.f32 %v273, %v269
          %v278 = vsub.f32 %v274, %v270
          %v279 = vsub.f32 %v275, %v271
          %v280 = vsub.f32 %v276, %v272
          %v281 = vand.u32 2147483647, %v277
          %v282 = vand.u32 2147483647, %v278
          %v283 = vand.u32 2147483647, %v279
          %v284 = vand.u32 2147483647, %v280
          %vm285 = vcmask 523264
          %286 = vst.msk [vmem:[#allocation2 + $0x8] sm:$0xff] %vm285, %v281
          %287 = vst.msk [vmem:[#allocation2 + $0x20] sm:$0xff] %vm285, %v282
          %288 = vst.msk [vmem:[#allocation2 + $0x38] sm:$0xff] %vm285, %v283
          %289 = vst.msk [vmem:[#allocation2 + $0x50] sm:$0xff] %vm285, %v284
          %v290 = vld [vmem:[#allocation2] sm:$0xff]
          %v291 = vld [vmem:[#allocation2 + $0x8] sm:$0xff]
          %v292 = vld [vmem:[#allocation2 + $0x10] sm:$0xff]
          %v293 = vld [vmem:[#allocation2 + $0x18] sm:$0xff]
          %v294 = vld [vmem:[#allocation2 + $0x20] sm:$0xff]
          %v295 = vld [vmem:[#allocation2 + $0x28] sm:$0xff]
          %v296 = vld [vmem:[#allocation2 + $0x30] sm:$0xff]
          %v297 = vld [vmem:[#allocation2 + $0x38] sm:$0xff]
          %v298 = vld [vmem:[#allocation2 + $0x40] sm:$0xff]
          %v299 = vld [vmem:[#allocation2 + $0x48] sm:$0xff]
          %v300 = vld [vmem:[#allocation2 + $0x50] sm:$0xff]
          %v301 = vld [vmem:[#allocation2 + $0x58] sm:$0xff]
          %314 = vrot.lane.b32.xlu0 %v290, 127
          %v315 = vpop.permute.xlu0 %314
          %316 = vrot.lane.b32.xlu0 %v291, 127
          %v317 = vpop.permute.xlu0 %316
          %318 = vrot.lane.b32.xlu0 %v292, 127
          %v319 = vpop.permute.xlu0 %318
          %320 = vrot.lane.b32.xlu0 %v293, 127
          %v321 = vpop.permute.xlu0 %320
          %322 = vrot.lane.b32.xlu0 %v294, 127
          %v323 = vpop.permute.xlu0 %322
          %324 = vrot.lane.b32.xlu0 %v295, 127
          %v325 = vpop.permute.xlu0 %324
          %326 = vrot.lane.b32.xlu0 %v296, 127
          %v327 = vpop.permute.xlu0 %326
          %328 = vrot.lane.b32.xlu0 %v297, 127
          %v329 = vpop.permute.xlu0 %328
          %330 = vrot.lane.b32.xlu0 %v298, 127
          %v331 = vpop.permute.xlu0 %330
          %332 = vrot.lane.b32.xlu0 %v299, 127
          %v333 = vpop.permute.xlu0 %332
          %334 = vrot.lane.b32.xlu0 %v300, 127
          %v335 = vpop.permute.xlu0 %334
          %336 = vrot.lane.b32.xlu0 %v301, 127
          %v337 = vpop.permute.xlu0 %336
          %vm338 = vcmask 1039360
          %v339 = vsel %vm338, %v315, %v317
          %v340 = vsel %vm338, %v317, %v319
          %v341 = vsel %vm338, %v321, %v323
          %v342 = vsel %vm338, %v323, %v325
          %v343 = vsel %vm338, %v327, %v329
          %v344 = vsel %vm338, %v329, %v331
          %v345 = vsel %vm338, %v333, %v335
          %v346 = vsel %vm338, %v335, %v337
          %v359 = vadd.f32 %v290, %v339
          %v360 = vadd.f32 %v291, %v340
          %v361 = vadd.f32 %v292, %v319
          %v362 = vadd.f32 %v293, %v341
          %v363 = vadd.f32 %v294, %v342
          %v364 = vadd.f32 %v295, %v325
          %v365 = vadd.f32 %v296, %v343
          %v366 = vadd.f32 %v297, %v344
          %v367 = vadd.f32 %v298, %v331
          %v368 = vadd.f32 %v299, %v345
          %v369 = vadd.f32 %v300, %v346
          %v370 = vadd.f32 %v301, %v337
          %371 = vrot.lane.b32.xlu0 %v290, 126
          %v372 = vpop.permute.xlu0 %371
          %373 = vrot.lane.b32.xlu0 %v291, 126
          %v374 = vpop.permute.xlu0 %373
          %375 = vrot.lane.b32.xlu0 %v292, 126
          %v376 = vpop.permute.xlu0 %375
          %377 = vrot.lane.b32.xlu0 %v293, 126
          %v378 = vpop.permute.xlu0 %377
          %379 = vrot.lane.b32.xlu0 %v294, 126
          %v380 = vpop.permute.xlu0 %379
          %381 = vrot.lane.b32.xlu0 %v295, 126
          %v382 = vpop.permute.xlu0 %381
          %383 = vrot.lane.b32.xlu0 %v296, 126
          %v384 = vpop.permute.xlu0 %383
          %385 = vrot.lane.b32.xlu0 %v297, 126
          %v386 = vpop.permute.xlu0 %385
          %387 = vrot.lane.b32.xlu0 %v298, 126
          %v388 = vpop.permute.xlu0 %387
          %389 = vrot.lane.b32.xlu0 %v299, 126
          %v390 = vpop.permute.xlu0 %389
          %391 = vrot.lane.b32.xlu0 %v300, 126
          %v392 = vpop.permute.xlu0 %391
          %393 = vrot.lane.b32.xlu0 %v301, 126
          %v394 = vpop.permute.xlu0 %393
          %vm395 = vcmask 1031168
          %v396 = vsel %vm395, %v372, %v374
          %v397 = vsel %vm395, %v374, %v376
          %v398 = vsel %vm395, %v378, %v380
          %v399 = vsel %vm395, %v380, %v382
          %v400 = vsel %vm395, %v384, %v386
          %v401 = vsel %vm395, %v386, %v388
          %v402 = vsel %vm395, %v390, %v392
          %v403 = vsel %vm395, %v392, %v394
          %v416 = vadd.f32 %v359, %v396
          %v417 = vadd.f32 %v360, %v397
          %v418 = vadd.f32 %v361, %v376
          %v419 = vadd.f32 %v362, %v398
          %v420 = vadd.f32 %v363, %v399
          %v421 = vadd.f32 %v364, %v382
          %v422 = vadd.f32 %v365, %v400
          %v423 = vadd.f32 %v366, %v401
          %v424 = vadd.f32 %v367, %v388
          %v425 = vadd.f32 %v368, %v402
          %v426 = vadd.f32 %v369, %v403
          %v427 = vadd.f32 %v370, %v394
          %vm428 = vcmask 1048520
          %429 = vst.msk [vmem:[#allocation3] sm:$0xff] %vm428, %v416
          %430 = vst [vmem:[#allocation3 + $0x8] sm:$0xff] %v417
          %vm431 = vcmask 39936
          %432 = vst.msk [vmem:[#allocation3 + $0x10] sm:$0xff] %vm431, %v418
          %433 = vst.msk [vmem:[#allocation3 + $0x18] sm:$0xff] %vm428, %v419
          %434 = vst [vmem:[#allocation3 + $0x20] sm:$0xff] %v420
          %435 = vst.msk [vmem:[#allocation3 + $0x28] sm:$0xff] %vm431, %v421
          %436 = vst.msk [vmem:[#allocation3 + $0x30] sm:$0xff] %vm428, %v422
          %437 = vst [vmem:[#allocation3 + $0x38] sm:$0xff] %v423
          %438 = vst.msk [vmem:[#allocation3 + $0x40] sm:$0xff] %vm431, %v424
          %439 = vst.msk [vmem:[#allocation3 + $0x48] sm:$0xff] %vm428, %v425
          %440 = vst [vmem:[#allocation3 + $0x50] sm:$0xff] %v426
          %441 = vst.msk [vmem:[#allocation3 + $0x58] sm:$0xff] %vm431, %v427
          %v442 = vld [vmem:[#allocation3] sm:$0xff]
          %v443 = vld [vmem:[#allocation3 + $0x8] sm:$0xff]
          %v444 = vld [vmem:[#allocation3 + $0x18] sm:$0xff]
          %v445 = vld [vmem:[#allocation3 + $0x20] sm:$0xff]
          %v446 = vld [vmem:[#allocation3 + $0x30] sm:$0xff]
          %v447 = vld [vmem:[#allocation3 + $0x38] sm:$0xff]
          %v448 = vld [vmem:[#allocation3 + $0x48] sm:$0xff]
          %v449 = vld [vmem:[#allocation3 + $0x50] sm:$0xff]
          %458 = vrot.lane.b32.xlu0 %v442, 125
          %v459 = vpop.permute.xlu0 %458
          %460 = vrot.lane.b32.xlu0 %v443, 125
          %v461 = vpop.permute.xlu0 %460
          %462 = vrot.lane.b32.xlu0 %v444, 125
          %v463 = vpop.permute.xlu0 %462
          %464 = vrot.lane.b32.xlu0 %v445, 125
          %v465 = vpop.permute.xlu0 %464
          %466 = vrot.lane.b32.xlu0 %v446, 125
          %v467 = vpop.permute.xlu0 %466
          %468 = vrot.lane.b32.xlu0 %v447, 125
          %v469 = vpop.permute.xlu0 %468
          %470 = vrot.lane.b32.xlu0 %v448, 125
          %v471 = vpop.permute.xlu0 %470
          %472 = vrot.lane.b32.xlu0 %v449, 125
          %v473 = vpop.permute.xlu0 %472
          %vm474 = vcmask 1022976
          %v475 = vsel %vm474, %v459, %v461
          %v476 = vsel %vm474, %v463, %v465
          %v477 = vsel %vm474, %v467, %v469
          %v478 = vsel %vm474, %v471, %v473
          %v487 = vadd.f32 %v442, %v475
          %v488 = vadd.f32 %v443, %v461
          %v489 = vadd.f32 %v444, %v476
          %v490 = vadd.f32 %v445, %v465
          %v491 = vadd.f32 %v446, %v477
          %v492 = vadd.f32 %v447, %v469
          %v493 = vadd.f32 %v448, %v478
          %v494 = vadd.f32 %v449, %v473
          %495 = vrot.lane.b32.xlu0 %v442, 122
          %v496 = vpop.permute.xlu0 %495
          %497 = vrot.lane.b32.xlu0 %v443, 122
          %v498 = vpop.permute.xlu0 %497
          %499 = vrot.lane.b32.xlu0 %v444, 122
          %v500 = vpop.permute.xlu0 %499
          %501 = vrot.lane.b32.xlu0 %v445, 122
          %v502 = vpop.permute.xlu0 %501
          %503 = vrot.lane.b32.xlu0 %v446, 122
          %v504 = vpop.permute.xlu0 %503
          %505 = vrot.lane.b32.xlu0 %v447, 122
          %v506 = vpop.permute.xlu0 %505
          %507 = vrot.lane.b32.xlu0 %v448, 122
          %v508 = vpop.permute.xlu0 %507
          %509 = vrot.lane.b32.xlu0 %v449, 122
          %v510 = vpop.permute.xlu0 %509
          %vm511 = vcmask 998400
          %v512 = vsel %vm511, %v496, %v498
          %v513 = vsel %vm511, %v500, %v502
          %v514 = vsel %vm511, %v504, %v506
          %v515 = vsel %vm511, %v508, %v510
          %v524 = vadd.f32 %v487, %v512
          %v525 = vadd.f32 %v488, %v498
          %v526 = vadd.f32 %v489, %v513
          %v527 = vadd.f32 %v490, %v502
          %v528 = vadd.f32 %v491, %v514
          %v529 = vadd.f32 %v492, %v506
          %v530 = vadd.f32 %v493, %v515
          %v531 = vadd.f32 %v494, %v510
          %v532 = vld [vmem:[#allocation3 + $0x8] sm:$0xff]
          %v533 = vld [vmem:[#allocation3 + $0x10] sm:$0xff]
          %v534 = vld [vmem:[#allocation3 + $0x20] sm:$0xff]
          %v535 = vld [vmem:[#allocation3 + $0x28] sm:$0xff]
          %v536 = vld [vmem:[#allocation3 + $0x38] sm:$0xff]
          %v537 = vld [vmem:[#allocation3 + $0x40] sm:$0xff]
          %v538 = vld [vmem:[#allocation3 + $0x50] sm:$0xff]
          %v539 = vld [vmem:[#allocation3 + $0x58] sm:$0xff]
          %548 = vrot.lane.b32.xlu0 %v532, 119
          %v549 = vpop.permute.xlu0 %548
          %550 = vrot.lane.b32.xlu0 %v533, 119
          %v551 = vpop.permute.xlu0 %550
          %552 = vrot.lane.b32.xlu0 %v534, 119
          %v553 = vpop.permute.xlu0 %552
          %554 = vrot.lane.b32.xlu0 %v535, 119
          %v555 = vpop.permute.xlu0 %554
          %556 = vrot.lane.b32.xlu0 %v536, 119
          %v557 = vpop.permute.xlu0 %556
          %558 = vrot.lane.b32.xlu0 %v537, 119
          %v559 = vpop.permute.xlu0 %558
          %560 = vrot.lane.b32.xlu0 %v538, 119
          %v561 = vpop.permute.xlu0 %560
          %562 = vrot.lane.b32.xlu0 %v539, 119
          %v563 = vpop.permute.xlu0 %562
          %vm564 = vcmask 973824
          %v565 = vsel %vm564, %v549, %v551
          %v566 = vsel %vm564, %v553, %v555
          %v567 = vsel %vm564, %v557, %v559
          %v568 = vsel %vm564, %v561, %v563
          %v577 = vadd.f32 %v524, %v549
          %v578 = vadd.f32 %v525, %v565
          %v579 = vadd.f32 %v526, %v553
          %v580 = vadd.f32 %v527, %v566
          %v581 = vadd.f32 %v528, %v557
          %v582 = vadd.f32 %v529, %v567
          %v583 = vadd.f32 %v530, %v561
          %v584 = vadd.f32 %v531, %v568
          %585 = vrot.lane.b32.xlu0 %v532, 116
          %v586 = vpop.permute.xlu0 %585
          %587 = vrot.lane.b32.xlu0 %v533, 116
          %v588 = vpop.permute.xlu0 %587
          %589 = vrot.lane.b32.xlu0 %v534, 116
          %v590 = vpop.permute.xlu0 %589
          %591 = vrot.lane.b32.xlu0 %v535, 116
          %v592 = vpop.permute.xlu0 %591
          %593 = vrot.lane.b32.xlu0 %v536, 116
          %v594 = vpop.permute.xlu0 %593
          %595 = vrot.lane.b32.xlu0 %v537, 116
          %v596 = vpop.permute.xlu0 %595
          %597 = vrot.lane.b32.xlu0 %v538, 116
          %v598 = vpop.permute.xlu0 %597
          %599 = vrot.lane.b32.xlu0 %v539, 116
          %v600 = vpop.permute.xlu0 %599
          %vm601 = vcmask 949248
          %v602 = vsel %vm601, %v586, %v588
          %v603 = vsel %vm601, %v590, %v592
          %v604 = vsel %vm601, %v594, %v596
          %v605 = vsel %vm601, %v598, %v600
          %v614 = vadd.f32 %v577, %v586
          %v615 = vadd.f32 %v578, %v602
          %v616 = vadd.f32 %v579, %v590
          %v617 = vadd.f32 %v580, %v603
          %v618 = vadd.f32 %v581, %v594
          %v619 = vadd.f32 %v582, %v604
          %v620 = vadd.f32 %v583, %v598
          %v621 = vadd.f32 %v584, %v605
          %630 = vrot.lane.b32.xlu0 %v614, 7
          %v631 = vpop.permute.xlu0 %630
          %632 = vrot.lane.b32.xlu0 %v615, 7
          %v633 = vpop.permute.xlu0 %632
          %634 = vrot.lane.b32.xlu0 %v616, 7
          %v635 = vpop.permute.xlu0 %634
          %636 = vrot.lane.b32.xlu0 %v617, 7
          %v637 = vpop.permute.xlu0 %636
          %638 = vrot.lane.b32.xlu0 %v618, 7
          %v639 = vpop.permute.xlu0 %638
          %640 = vrot.lane.b32.xlu0 %v619, 7
          %v641 = vpop.permute.xlu0 %640
          %642 = vrot.lane.b32.xlu0 %v620, 7
          %v643 = vpop.permute.xlu0 %642
          %644 = vrot.lane.b32.xlu0 %v621, 7
          %v645 = vpop.permute.xlu0 %644
          %vm646 = vcmask 56320
          %v647 = vsel %vm646, %v631, %v633
          %v648 = vsel %vm646, %v635, %v637
          %v649 = vsel %vm646, %v639, %v641
          %v650 = vsel %vm646, %v643, %v645
          %655 = vst [vmem:[#allocation4 + $0x8] sm:$0xff] %v647
          %656 = vst [vmem:[#allocation4 + $0x10] sm:$0xff] %v648
          %657 = vst [vmem:[#allocation4 + $0x18] sm:$0xff] %v649
          %658 = vst [vmem:[#allocation4 + $0x20] sm:$0xff] %v650
          %v659 = vld [vmem:[#allocation4 + $0x1] sm:$0xff]
          %v660 = vld [vmem:[#allocation4 + $0x9] sm:$0xff]
          %v661 = vld [vmem:[#allocation4 + $0x11] sm:$0xff]
          %v662 = vld [vmem:[#allocation4 + $0x19] sm:$0xff]
          %v663 = vld [vmem:[#allocation4 + $0x21] sm:$0xff]
          %v664 = vld [vmem:[#allocation4 + $0x29] sm:$0xf]
          %v665 = vld [vmem:[#allocation4 + $0x2] sm:$0xff]
          %v666 = vld [vmem:[#allocation4 + $0xa] sm:$0xff]
          %v667 = vld [vmem:[#allocation4 + $0x12] sm:$0xff]
          %v668 = vld [vmem:[#allocation4 + $0x1a] sm:$0xff]
          %v669 = vld [vmem:[#allocation4 + $0x22] sm:$0xff]
          %v670 = vld [vmem:[#allocation4 + $0x2a] sm:$0xf]
          %v671 = vadd.f32 %v659, %v665
          %v672 = vadd.f32 %v660, %v666
          %v673 = vadd.f32 %v661, %v667
          %v674 = vadd.f32 %v662, %v668
          %v675 = vadd.f32 %v663, %v669
          %v676 = vadd.f32 %v664, %v670
          %v677 = vld [vmem:[#allocation4 + $0x3] sm:$0xff]
          %v678 = vld [vmem:[#allocation4 + $0xb] sm:$0xff]
          %v679 = vld [vmem:[#allocation4 + $0x13] sm:$0xff]
          %v680 = vld [vmem:[#allocation4 + $0x1b] sm:$0xff]
          %v681 = vld [vmem:[#allocation4 + $0x23] sm:$0xff]
          %v682 = vld [vmem:[#allocation4 + $0x2b] sm:$0xf]
          %v683 = vadd.f32 %v671, %v677
          %v684 = vadd.f32 %v672, %v678
          %v685 = vadd.f32 %v673, %v679
          %v686 = vadd.f32 %v674, %v680
          %v687 = vadd.f32 %v675, %v681
          %v688 = vadd.f32 %v676, %v682
          %689 = vst [vmem:[#allocation5 + $0x1] sm:$0xff] %v683
          %690 = vst [vmem:[#allocation5 + $0x9] sm:$0xff] %v684
          %691 = vst [vmem:[#allocation5 + $0x11] sm:$0xff] %v685
          %692 = vst [vmem:[#allocation5 + $0x19] sm:$0xff] %v686
          %693 = vst [vmem:[#allocation5 + $0x21] sm:$0xff] %v687
          %694 = vst [vmem:[#allocation5 + $0x29] sm:$0xf] %v688
          %v695 = vld [vmem:[#allocation5 + $0x1] sm:$0xff]
          %v696 = vld [vmem:[#allocation5 + $0x9] sm:$0xff]
          %v697 = vld [vmem:[#allocation5 + $0x11] sm:$0xff]
          %v698 = vld [vmem:[#allocation5 + $0x19] sm:$0xff]
          %v699 = vld [vmem:[#allocation5 + $0x4] sm:$0xff]
          %v700 = vld [vmem:[#allocation5 + $0xc] sm:$0xff]
          %v701 = vld [vmem:[#allocation5 + $0x14] sm:$0xff]
          %v702 = vld [vmem:[#allocation5 + $0x1c] sm:$0xff]
          %v703 = vadd.f32 %v695, %v699
          %v704 = vadd.f32 %v696, %v700
          %v705 = vadd.f32 %v697, %v701
          %v706 = vadd.f32 %v698, %v702
          %v707 = vld [vmem:[#allocation5 + $0x7] sm:$0xff]
          %v708 = vld [vmem:[#allocation5 + $0xf] sm:$0xff]
          %v709 = vld [vmem:[#allocation5 + $0x17] sm:$0xff]
          %v710 = vld [vmem:[#allocation5 + $0x1f] sm:$0xff]
          %v711 = vadd.f32 %v703, %v707
          %v712 = vadd.f32 %v704, %v708
          %v713 = vadd.f32 %v705, %v709
          %v714 = vadd.f32 %v706, %v710
          %v715 = vld [vmem:[#allocation5 + $0xa] sm:$0xff]
          %v716 = vld [vmem:[#allocation5 + $0x12] sm:$0xff]
          %v717 = vld [vmem:[#allocation5 + $0x1a] sm:$0xff]
          %v718 = vld [vmem:[#allocation5 + $0x22] sm:$0xff]
          %v719 = vadd.f32 %v711, %v715
          %v720 = vadd.f32 %v712, %v716
          %v721 = vadd.f32 %v713, %v717
          %v722 = vadd.f32 %v714, %v718
          %v723 = vld [vmem:[#allocation5 + $0xd] sm:$0xff]
          %v724 = vld [vmem:[#allocation5 + $0x15] sm:$0xff]
          %v725 = vld [vmem:[#allocation5 + $0x1d] sm:$0xff]
          %v726 = vld [vmem:[#allocation5 + $0x25] sm:$0xff]
          %v727 = vadd.f32 %v719, %v723
          %v728 = vadd.f32 %v720, %v724
          %v729 = vadd.f32 %v721, %v725
          %v730 = vadd.f32 %v722, %v726
          %v731 = vld [vmem:[#allocation8] sm:$0xff]
          %v732 = vld [vmem:[#allocation8 + $0x8] sm:$0xff]
          %v733 = vld [vmem:[#allocation8 + $0x10] sm:$0xff]
          %v734 = vld [vmem:[#allocation8 + $0x18] sm:$0xff]
          %vm735 = vcmp.lt.f32.partialorder %v727, %v731
          %vm736 = vcmp.lt.f32.partialorder %v728, %v732
          %vm737 = vcmp.lt.f32.partialorder %v729, %v733
          %vm738 = vcmp.lt.f32.partialorder %v730, %v734
          %v739 = vsel %vm735, %v727, %v731
          %v740 = vsel %vm736, %v728, %v732
          %v741 = vsel %vm737, %v729, %v733
          %v742 = vsel %vm738, %v730, %v734
          %743 = vst [vmem:[#allocation8] sm:$0xff] %v739
          %744 = vst [vmem:[#allocation8 + $0x8] sm:$0xff] %v740
          %745 = vst [vmem:[#allocation8 + $0x10] sm:$0xff] %v741
          %746 = vst [vmem:[#allocation8 + $0x18] sm:$0xff] %v742
          %v747 = vld [vmem:[%s201] sm:$0xff]
          %v748 = vld [vmem:[%s201 + $0x8] sm:$0xff]
          %v749 = vld [vmem:[%s201 + $0x10] sm:$0xff]
          %v750 = vld [vmem:[%s201 + $0x18] sm:$0xff]
          %v751 = vstv %s268
          %v752 = vsel %vm735, %v751, %v747
          %v753 = vsel %vm736, %v751, %v748
          %v754 = vsel %vm737, %v751, %v749
          %v755 = vsel %vm738, %v751, %v750
          %756 = vst [vmem:[%s201] sm:$0xff] %v752
          %757 = vst [vmem:[%s201 + $0x8] sm:$0xff] %v753
          %758 = vst [vmem:[%s201 + $0x10] sm:$0xff] %v754
          %759 = vst [vmem:[%s201 + $0x18] sm:$0xff] %v755
          %s760 = sadd.s32 %s268, 1
          %v761 = vld [vmem:[#allocation6] sm:$0xff]
          %v762 = vld [vmem:[#allocation6 + $0x8] sm:$0xff]
          %v763 = vld [vmem:[#allocation6 + $0x10] sm:$0xff]
          %v764 = vld [vmem:[#allocation6 + $0x18] sm:$0xff]
          %v765 = vld [vmem:[#allocation6 + $0x20] sm:$0xff]
          %v766 = vld [vmem:[#allocation6 + $0x28] sm:$0xff]
          %v767 = vld [vmem:[#allocation6 + $0x30] sm:$0xff]
          %v768 = vld [vmem:[#allocation6 + $0x38] sm:$0xff]
          %v769 = vld [vmem:[%s167] sm:$0xff]
          %v770 = vld [vmem:[%s167 + $0x8] sm:$0xff]
          %v771 = vld [vmem:[%s167 + $0x10] sm:$0xff]
          %v772 = vld [vmem:[%s167 + $0x18] sm:$0xff]
          %781 = vrot.lane.b32.xlu0 %v761, 1
          %v782 = vpop.permute.xlu0 %781
          %783 = vrot.lane.b32.xlu0 %v762, 1
          %v784 = vpop.permute.xlu0 %783
          %785 = vrot.lane.b32.xlu0 %v763, 1
          %v786 = vpop.permute.xlu0 %785
          %787 = vrot.lane.b32.xlu0 %v764, 1
          %v788 = vpop.permute.xlu0 %787
          %789 = vrot.lane.b32.xlu0 %v765, 1
          %v790 = vpop.permute.xlu0 %789
          %791 = vrot.lane.b32.xlu0 %v766, 1
          %v792 = vpop.permute.xlu0 %791
          %793 = vrot.lane.b32.xlu0 %v767, 1
          %v794 = vpop.permute.xlu0 %793
          %795 = vrot.lane.b32.xlu0 %v768, 1
          %v796 = vpop.permute.xlu0 %795
          %vm797 = vcmask 7168
          %v798 = vsel %vm797, %v782, %v784
          %v799 = vsel %vm797, %v786, %v788
          %v800 = vsel %vm797, %v790, %v792
          %v801 = vsel %vm797, %v794, %v796
          %v806 = vsub.f32 %v769, %v798
          %v807 = vsub.f32 %v770, %v799
          %v808 = vsub.f32 %v771, %v800
          %v809 = vsub.f32 %v772, %v801
          %v810 = vand.u32 2147483647, %v806
          %v811 = vand.u32 2147483647, %v807
          %v812 = vand.u32 2147483647, %v808
          %v813 = vand.u32 2147483647, %v809
          %814 = vst.msk [vmem:[#allocation2 + $0x8] sm:$0xff] %vm285, %v810
          %815 = vst.msk [vmem:[#allocation2 + $0x20] sm:$0xff] %vm285, %v811
          %816 = vst.msk [vmem:[#allocation2 + $0x38] sm:$0xff] %vm285, %v812
          %817 = vst.msk [vmem:[#allocation2 + $0x50] sm:$0xff] %vm285, %v813
          %v818 = vld [vmem:[#allocation2] sm:$0xff]
          %v819 = vld [vmem:[#allocation2 + $0x8] sm:$0xff]
          %v820 = vld [vmem:[#allocation2 + $0x10] sm:$0xff]
          %v821 = vld [vmem:[#allocation2 + $0x18] sm:$0xff]
          %v822 = vld [vmem:[#allocation2 + $0x20] sm:$0xff]
          %v823 = vld [vmem:[#allocation2 + $0x28] sm:$0xff]
          %v824 = vld [vmem:[#allocation2 + $0x30] sm:$0xff]
          %v825 = vld [vmem:[#allocation2 + $0x38] sm:$0xff]
          %v826 = vld [vmem:[#allocation2 + $0x40] sm:$0xff]
          %v827 = vld [vmem:[#allocation2 + $0x48] sm:$0xff]
          %v828 = vld [vmem:[#allocation2 + $0x50] sm:$0xff]
          %v829 = vld [vmem:[#allocation2 + $0x58] sm:$0xff]
          %842 = vrot.lane.b32.xlu0 %v818, 127
          %v843 = vpop.permute.xlu0 %842
          %844 = vrot.lane.b32.xlu0 %v819, 127
          %v845 = vpop.permute.xlu0 %844
          %846 = vrot.lane.b32.xlu0 %v820, 127
          %v847 = vpop.permute.xlu0 %846
          %848 = vrot.lane.b32.xlu0 %v821, 127
          %v849 = vpop.permute.xlu0 %848
          %850 = vrot.lane.b32.xlu0 %v822, 127
          %v851 = vpop.permute.xlu0 %850
          %852 = vrot.lane.b32.xlu0 %v823, 127
          %v853 = vpop.permute.xlu0 %852
          %854 = vrot.lane.b32.xlu0 %v824, 127
          %v855 = vpop.permute.xlu0 %854
          %856 = vrot.lane.b32.xlu0 %v825, 127
          %v857 = vpop.permute.xlu0 %856
          %858 = vrot.lane.b32.xlu0 %v826, 127
          %v859 = vpop.permute.xlu0 %858
          %860 = vrot.lane.b32.xlu0 %v827, 127
          %v861 = vpop.permute.xlu0 %860
          %862 = vrot.lane.b32.xlu0 %v828, 127
          %v863 = vpop.permute.xlu0 %862
          %864 = vrot.lane.b32.xlu0 %v829, 127
          %v865 = vpop.permute.xlu0 %864
          %v866 = vsel %vm338, %v843, %v845
          %v867 = vsel %vm338, %v845, %v847
          %v868 = vsel %vm338, %v849, %v851
          %v869 = vsel %vm338, %v851, %v853
          %v870 = vsel %vm338, %v855, %v857
          %v871 = vsel %vm338, %v857, %v859
          %v872 = vsel %vm338, %v861, %v863
          %v873 = vsel %vm338, %v863, %v865
          %v886 = vadd.f32 %v818, %v866
          %v887 = vadd.f32 %v819, %v867
          %v888 = vadd.f32 %v820, %v847
          %v889 = vadd.f32 %v821, %v868
          %v890 = vadd.f32 %v822, %v869
          %v891 = vadd.f32 %v823, %v853
          %v892 = vadd.f32 %v824, %v870
          %v893 = vadd.f32 %v825, %v871
          %v894 = vadd.f32 %v826, %v859
          %v895 = vadd.f32 %v827, %v872
          %v896 = vadd.f32 %v828, %v873
          %v897 = vadd.f32 %v829, %v865
          %898 = vrot.lane.b32.xlu0 %v818, 126
          %v899 = vpop.permute.xlu0 %898
          %900 = vrot.lane.b32.xlu0 %v819, 126
          %v901 = vpop.permute.xlu0 %900
          %902 = vrot.lane.b32.xlu0 %v820, 126
          %v903 = vpop.permute.xlu0 %902
          %904 = vrot.lane.b32.xlu0 %v821, 126
          %v905 = vpop.permute.xlu0 %904
          %906 = vrot.lane.b32.xlu0 %v822, 126
          %v907 = vpop.permute.xlu0 %906
          %908 = vrot.lane.b32.xlu0 %v823, 126
          %v909 = vpop.permute.xlu0 %908
          %910 = vrot.lane.b32.xlu0 %v824, 126
          %v911 = vpop.permute.xlu0 %910
          %912 = vrot.lane.b32.xlu0 %v825, 126
          %v913 = vpop.permute.xlu0 %912
          %914 = vrot.lane.b32.xlu0 %v826, 126
          %v915 = vpop.permute.xlu0 %914
          %916 = vrot.lane.b32.xlu0 %v827, 126
          %v917 = vpop.permute.xlu0 %916
          %918 = vrot.lane.b32.xlu0 %v828, 126
          %v919 = vpop.permute.xlu0 %918
          %920 = vrot.lane.b32.xlu0 %v829, 126
          %v921 = vpop.permute.xlu0 %920
          %v922 = vsel %vm395, %v899, %v901
          %v923 = vsel %vm395, %v901, %v903
          %v924 = vsel %vm395, %v905, %v907
          %v925 = vsel %vm395, %v907, %v909
          %v926 = vsel %vm395, %v911, %v913
          %v927 = vsel %vm395, %v913, %v915
          %v928 = vsel %vm395, %v917, %v919
          %v929 = vsel %vm395, %v919, %v921
          %v942 = vadd.f32 %v886, %v922
          %v943 = vadd.f32 %v887, %v923
          %v944 = vadd.f32 %v888, %v903
          %v945 = vadd.f32 %v889, %v924
          %v946 = vadd.f32 %v890, %v925
          %v947 = vadd.f32 %v891, %v909
          %v948 = vadd.f32 %v892, %v926
          %v949 = vadd.f32 %v893, %v927
          %v950 = vadd.f32 %v894, %v915
          %v951 = vadd.f32 %v895, %v928
          %v952 = vadd.f32 %v896, %v929
          %v953 = vadd.f32 %v897, %v921
          %954 = vst.msk [vmem:[#allocation3] sm:$0xff] %vm428, %v942
          %955 = vst [vmem:[#allocation3 + $0x8] sm:$0xff] %v943
          %956 = vst.msk [vmem:[#allocation3 + $0x10] sm:$0xff] %vm431, %v944
          %957 = vst.msk [vmem:[#allocation3 + $0x18] sm:$0xff] %vm428, %v945
          %958 = vst [vmem:[#allocation3 + $0x20] sm:$0xff] %v946
          %959 = vst.msk [vmem:[#allocation3 + $0x28] sm:$0xff] %vm431, %v947
          %960 = vst.msk [vmem:[#allocation3 + $0x30] sm:$0xff] %vm428, %v948
          %961 = vst [vmem:[#allocation3 + $0x38] sm:$0xff] %v949
          %962 = vst.msk [vmem:[#allocation3 + $0x40] sm:$0xff] %vm431, %v950
          %963 = vst.msk [vmem:[#allocation3 + $0x48] sm:$0xff] %vm428, %v951
          %964 = vst [vmem:[#allocation3 + $0x50] sm:$0xff] %v952
          %965 = vst.msk [vmem:[#allocation3 + $0x58] sm:$0xff] %vm431, %v953
          %v966 = vld [vmem:[#allocation3] sm:$0xff]
          %v967 = vld [vmem:[#allocation3 + $0x8] sm:$0xff]
          %v968 = vld [vmem:[#allocation3 + $0x18] sm:$0xff]
          %v969 = vld [vmem:[#allocation3 + $0x20] sm:$0xff]
          %v970 = vld [vmem:[#allocation3 + $0x30] sm:$0xff]
          %v971 = vld [vmem:[#allocation3 + $0x38] sm:$0xff]
          %v972 = vld [vmem:[#allocation3 + $0x48] sm:$0xff]
          %v973 = vld [vmem:[#allocation3 + $0x50] sm:$0xff]
          %982 = vrot.lane.b32.xlu0 %v966, 125
          %v983 = vpop.permute.xlu0 %982
          %984 = vrot.lane.b32.xlu0 %v967, 125
          %v985 = vpop.permute.xlu0 %984
          %986 = vrot.lane.b32.xlu0 %v968, 125
          %v987 = vpop.permute.xlu0 %986
          %988 = vrot.lane.b32.xlu0 %v969, 125
          %v989 = vpop.permute.xlu0 %988
          %990 = vrot.lane.b32.xlu0 %v970, 125
          %v991 = vpop.permute.xlu0 %990
          %992 = vrot.lane.b32.xlu0 %v971, 125
          %v993 = vpop.permute.xlu0 %992
          %994 = vrot.lane.b32.xlu0 %v972, 125
          %v995 = vpop.permute.xlu0 %994
          %996 = vrot.lane.b32.xlu0 %v973, 125
          %v997 = vpop.permute.xlu0 %996
          %v998 = vsel %vm474, %v983, %v985
          %v999 = vsel %vm474, %v987, %v989
          %v1000 = vsel %vm474, %v991, %v993
          %v1001 = vsel %vm474, %v995, %v997
          %v1010 = vadd.f32 %v966, %v998
          %v1011 = vadd.f32 %v967, %v985
          %v1012 = vadd.f32 %v968, %v999
          %v1013 = vadd.f32 %v969, %v989
          %v1014 = vadd.f32 %v970, %v1000
          %v1015 = vadd.f32 %v971, %v993
          %v1016 = vadd.f32 %v972, %v1001
          %v1017 = vadd.f32 %v973, %v997
          %1018 = vrot.lane.b32.xlu0 %v966, 122
          %v1019 = vpop.permute.xlu0 %1018
          %1020 = vrot.lane.b32.xlu0 %v967, 122
          %v1021 = vpop.permute.xlu0 %1020
          %1022 = vrot.lane.b32.xlu0 %v968, 122
          %v1023 = vpop.permute.xlu0 %1022
          %1024 = vrot.lane.b32.xlu0 %v969, 122
          %v1025 = vpop.permute.xlu0 %1024
          %1026 = vrot.lane.b32.xlu0 %v970, 122
          %v1027 = vpop.permute.xlu0 %1026
          %1028 = vrot.lane.b32.xlu0 %v971, 122
          %v1029 = vpop.permute.xlu0 %1028
          %1030 = vrot.lane.b32.xlu0 %v972, 122
          %v1031 = vpop.permute.xlu0 %1030
          %1032 = vrot.lane.b32.xlu0 %v973, 122
          %v1033 = vpop.permute.xlu0 %1032
          %v1034 = vsel %vm511, %v1019, %v1021
          %v1035 = vsel %vm511, %v1023, %v1025
          %v1036 = vsel %vm511, %v1027, %v1029
          %v1037 = vsel %vm511, %v1031, %v1033
          %v1046 = vadd.f32 %v1010, %v1034
          %v1047 = vadd.f32 %v1011, %v1021
          %v1048 = vadd.f32 %v1012, %v1035
          %v1049 = vadd.f32 %v1013, %v1025
          %v1050 = vadd.f32 %v1014, %v1036
          %v1051 = vadd.f32 %v1015, %v1029
          %v1052 = vadd.f32 %v1016, %v1037
          %v1053 = vadd.f32 %v1017, %v1033
          %v1054 = vld [vmem:[#allocation3 + $0x8] sm:$0xff]
          %v1055 = vld [vmem:[#allocation3 + $0x10] sm:$0xff]
          %v1056 = vld [vmem:[#allocation3 + $0x20] sm:$0xff]
          %v1057 = vld [vmem:[#allocation3 + $0x28] sm:$0xff]
          %v1058 = vld [vmem:[#allocation3 + $0x38] sm:$0xff]
          %v1059 = vld [vmem:[#allocation3 + $0x40] sm:$0xff]
          %v1060 = vld [vmem:[#allocation3 + $0x50] sm:$0xff]
          %v1061 = vld [vmem:[#allocation3 + $0x58] sm:$0xff]
          %1070 = vrot.lane.b32.xlu0 %v1054, 119
          %v1071 = vpop.permute.xlu0 %1070
          %1072 = vrot.lane.b32.xlu0 %v1055, 119
          %v1073 = vpop.permute.xlu0 %1072
          %1074 = vrot.lane.b32.xlu0 %v1056, 119
          %v1075 = vpop.permute.xlu0 %1074
          %1076 = vrot.lane.b32.xlu0 %v1057, 119
          %v1077 = vpop.permute.xlu0 %1076
          %1078 = vrot.lane.b32.xlu0 %v1058, 119
          %v1079 = vpop.permute.xlu0 %1078
          %1080 = vrot.lane.b32.xlu0 %v1059, 119
          %v1081 = vpop.permute.xlu0 %1080
          %1082 = vrot.lane.b32.xlu0 %v1060, 119
          %v1083 = vpop.permute.xlu0 %1082
          %1084 = vrot.lane.b32.xlu0 %v1061, 119
          %v1085 = vpop.permute.xlu0 %1084
          %v1086 = vsel %vm564, %v1071, %v1073
          %v1087 = vsel %vm564, %v1075, %v1077
          %v1088 = vsel %vm564, %v1079, %v1081
          %v1089 = vsel %vm564, %v1083, %v1085
          %v1098 = vadd.f32 %v1046, %v1071
          %v1099 = vadd.f32 %v1047, %v1086
          %v1100 = vadd.f32 %v1048, %v1075
          %v1101 = vadd.f32 %v1049, %v1087
          %v1102 = vadd.f32 %v1050, %v1079
          %v1103 = vadd.f32 %v1051, %v1088
          %v1104 = vadd.f32 %v1052, %v1083
          %v1105 = vadd.f32 %v1053, %v1089
          %1106 = vrot.lane.b32.xlu0 %v1054, 116
          %v1107 = vpop.permute.xlu0 %1106
          %1108 = vrot.lane.b32.xlu0 %v1055, 116
          %v1109 = vpop.permute.xlu0 %1108
          %1110 = vrot.lane.b32.xlu0 %v1056, 116
          %v1111 = vpop.permute.xlu0 %1110
          %1112 = vrot.lane.b32.xlu0 %v1057, 116
          %v1113 = vpop.permute.xlu0 %1112
          %1114 = vrot.lane.b32.xlu0 %v1058, 116
          %v1115 = vpop.permute.xlu0 %1114
          %1116 = vrot.lane.b32.xlu0 %v1059, 116
          %v1117 = vpop.permute.xlu0 %1116
          %1118 = vrot.lane.b32.xlu0 %v1060, 116
          %v1119 = vpop.permute.xlu0 %1118
          %1120 = vrot.lane.b32.xlu0 %v1061, 116
          %v1121 = vpop.permute.xlu0 %1120
          %v1122 = vsel %vm601, %v1107, %v1109
          %v1123 = vsel %vm601, %v1111, %v1113
          %v1124 = vsel %vm601, %v1115, %v1117
          %v1125 = vsel %vm601, %v1119, %v1121
          %v1134 = vadd.f32 %v1098, %v1107
          %v1135 = vadd.f32 %v1099, %v1122
          %v1136 = vadd.f32 %v1100, %v1111
          %v1137 = vadd.f32 %v1101, %v1123
          %v1138 = vadd.f32 %v1102, %v1115
          %v1139 = vadd.f32 %v1103, %v1124
          %v1140 = vadd.f32 %v1104, %v1119
          %v1141 = vadd.f32 %v1105, %v1125
          %1150 = vrot.lane.b32.xlu0 %v1134, 7
          %v1151 = vpop.permute.xlu0 %1150
          %1152 = vrot.lane.b32.xlu0 %v1135, 7
          %v1153 = vpop.permute.xlu0 %1152
          %1154 = vrot.lane.b32.xlu0 %v1136, 7
          %v1155 = vpop.permute.xlu0 %1154
          %1156 = vrot.lane.b32.xlu0 %v1137, 7
          %v1157 = vpop.permute.xlu0 %1156
          %1158 = vrot.lane.b32.xlu0 %v1138, 7
          %v1159 = vpop.permute.xlu0 %1158
          %1160 = vrot.lane.b32.xlu0 %v1139, 7
          %v1161 = vpop.permute.xlu0 %1160
          %1162 = vrot.lane.b32.xlu0 %v1140, 7
          %v1163 = vpop.permute.xlu0 %1162
          %1164 = vrot.lane.b32.xlu0 %v1141, 7
          %v1165 = vpop.permute.xlu0 %1164
          %v1166 = vsel %vm646, %v1151, %v1153
          %v1167 = vsel %vm646, %v1155, %v1157
          %v1168 = vsel %vm646, %v1159, %v1161
          %v1169 = vsel %vm646, %v1163, %v1165
          %1174 = vst [vmem:[#allocation4 + $0x8] sm:$0xff] %v1166
          %1175 = vst [vmem:[#allocation4 + $0x10] sm:$0xff] %v1167
          %1176 = vst [vmem:[#allocation4 + $0x18] sm:$0xff] %v1168
          %1177 = vst [vmem:[#allocation4 + $0x20] sm:$0xff] %v1169
          %v1178 = vld [vmem:[#allocation4 + $0x1] sm:$0xff]
          %v1179 = vld [vmem:[#allocation4 + $0x9] sm:$0xff]
          %v1180 = vld [vmem:[#allocation4 + $0x11] sm:$0xff]
          %v1181 = vld [vmem:[#allocation4 + $0x19] sm:$0xff]
          %v1182 = vld [vmem:[#allocation4 + $0x21] sm:$0xff]
          %v1183 = vld [vmem:[#allocation4 + $0x29] sm:$0xf]
          %v1184 = vld [vmem:[#allocation4 + $0x2] sm:$0xff]
          %v1185 = vld [vmem:[#allocation4 + $0xa] sm:$0xff]
          %v1186 = vld [vmem:[#allocation4 + $0x12] sm:$0xff]
          %v1187 = vld [vmem:[#allocation4 + $0x1a] sm:$0xff]
          %v1188 = vld [vmem:[#allocation4 + $0x22] sm:$0xff]
          %v1189 = vld [vmem:[#allocation4 + $0x2a] sm:$0xf]
          %v1190 = vadd.f32 %v1178, %v1184
          %v1191 = vadd.f32 %v1179, %v1185
          %v1192 = vadd.f32 %v1180, %v1186
          %v1193 = vadd.f32 %v1181, %v1187
          %v1194 = vadd.f32 %v1182, %v1188
          %v1195 = vadd.f32 %v1183, %v1189
          %v1196 = vld [vmem:[#allocation4 + $0x3] sm:$0xff]
          %v1197 = vld [vmem:[#allocation4 + $0xb] sm:$0xff]
          %v1198 = vld [vmem:[#allocation4 + $0x13] sm:$0xff]
          %v1199 = vld [vmem:[#allocation4 + $0x1b] sm:$0xff]
          %v1200 = vld [vmem:[#allocation4 + $0x23] sm:$0xff]
          %v1201 = vld [vmem:[#allocation4 + $0x2b] sm:$0xf]
          %v1202 = vadd.f32 %v1190, %v1196
          %v1203 = vadd.f32 %v1191, %v1197
          %v1204 = vadd.f32 %v1192, %v1198
          %v1205 = vadd.f32 %v1193, %v1199
          %v1206 = vadd.f32 %v1194, %v1200
          %v1207 = vadd.f32 %v1195, %v1201
          %1208 = vst [vmem:[#allocation5 + $0x1] sm:$0xff] %v1202
          %1209 = vst [vmem:[#allocation5 + $0x9] sm:$0xff] %v1203
          %1210 = vst [vmem:[#allocation5 + $0x11] sm:$0xff] %v1204
          %1211 = vst [vmem:[#allocation5 + $0x19] sm:$0xff] %v1205
          %1212 = vst [vmem:[#allocation5 + $0x21] sm:$0xff] %v1206
          %1213 = vst [vmem:[#allocation5 + $0x29] sm:$0xf] %v1207
          %v1214 = vld [vmem:[#allocation5 + $0x1] sm:$0xff]
          %v1215 = vld [vmem:[#allocation5 + $0x9] sm:$0xff]
          %v1216 = vld [vmem:[#allocation5 + $0x11] sm:$0xff]
          %v1217 = vld [vmem:[#allocation5 + $0x19] sm:$0xff]
          %v1218 = vld [vmem:[#allocation5 + $0x4] sm:$0xff]
          %v1219 = vld [vmem:[#allocation5 + $0xc] sm:$0xff]
          %v1220 = vld [vmem:[#allocation5 + $0x14] sm:$0xff]
          %v1221 = vld [vmem:[#allocation5 + $0x1c] sm:$0xff]
          %v1222 = vadd.f32 %v1214, %v1218
          %v1223 = vadd.f32 %v1215, %v1219
          %v1224 = vadd.f32 %v1216, %v1220
          %v1225 = vadd.f32 %v1217, %v1221
          %v1226 = vld [vmem:[#allocation5 + $0x7] sm:$0xff]
          %v1227 = vld [vmem:[#allocation5 + $0xf] sm:$0xff]
          %v1228 = vld [vmem:[#allocation5 + $0x17] sm:$0xff]
          %v1229 = vld [vmem:[#allocation5 + $0x1f] sm:$0xff]
          %v1230 = vadd.f32 %v1222, %v1226
          %v1231 = vadd.f32 %v1223, %v1227
          %v1232 = vadd.f32 %v1224, %v1228
          %v1233 = vadd.f32 %v1225, %v1229
          %v1234 = vld [vmem:[#allocation5 + $0xa] sm:$0xff]
          %v1235 = vld [vmem:[#allocation5 + $0x12] sm:$0xff]
          %v1236 = vld [vmem:[#allocation5 + $0x1a] sm:$0xff]
          %v1237 = vld [vmem:[#allocation5 + $0x22] sm:$0xff]
          %v1238 = vadd.f32 %v1230, %v1234
          %v1239 = vadd.f32 %v1231, %v1235
          %v1240 = vadd.f32 %v1232, %v1236
          %v1241 = vadd.f32 %v1233, %v1237
          %v1242 = vld [vmem:[#allocation5 + $0xd] sm:$0xff]
          %v1243 = vld [vmem:[#allocation5 + $0x15] sm:$0xff]
          %v1244 = vld [vmem:[#allocation5 + $0x1d] sm:$0xff]
          %v1245 = vld [vmem:[#allocation5 + $0x25] sm:$0xff]
          %v1246 = vadd.f32 %v1238, %v1242
          %v1247 = vadd.f32 %v1239, %v1243
          %v1248 = vadd.f32 %v1240, %v1244
          %v1249 = vadd.f32 %v1241, %v1245
          %v1250 = vld [vmem:[#allocation8] sm:$0xff]
          %v1251 = vld [vmem:[#allocation8 + $0x8] sm:$0xff]
          %v1252 = vld [vmem:[#allocation8 + $0x10] sm:$0xff]
          %v1253 = vld [vmem:[#allocation8 + $0x18] sm:$0xff]
          %vm1254 = vcmp.lt.f32.partialorder %v1246, %v1250
          %vm1255 = vcmp.lt.f32.partialorder %v1247, %v1251
          %vm1256 = vcmp.lt.f32.partialorder %v1248, %v1252
          %vm1257 = vcmp.lt.f32.partialorder %v1249, %v1253
          %v1258 = vsel %vm1254, %v1246, %v1250
          %v1259 = vsel %vm1255, %v1247, %v1251
          %v1260 = vsel %vm1256, %v1248, %v1252
          %v1261 = vsel %vm1257, %v1249, %v1253
          %1262 = vst [vmem:[#allocation8] sm:$0xff] %v1258
          %1263 = vst [vmem:[#allocation8 + $0x8] sm:$0xff] %v1259
          %1264 = vst [vmem:[#allocation8 + $0x10] sm:$0xff] %v1260
          %1265 = vst [vmem:[#allocation8 + $0x18] sm:$0xff] %v1261
          %v1266 = vld [vmem:[%s201] sm:$0xff]
          %v1267 = vld [vmem:[%s201 + $0x8] sm:$0xff]
          %v1268 = vld [vmem:[%s201 + $0x10] sm:$0xff]
          %v1269 = vld [vmem:[%s201 + $0x18] sm:$0xff]
          %v1270 = vstv %s760
          %v1271 = vsel %vm1254, %v1270, %v1266
          %v1272 = vsel %vm1255, %v1270, %v1267
          %v1273 = vsel %vm1256, %v1270, %v1268
          %v1274 = vsel %vm1257, %v1270, %v1269
          %1275 = vst [vmem:[%s201] sm:$0xff] %v1271
          %1276 = vst [vmem:[%s201 + $0x8] sm:$0xff] %v1272
          %1277 = vst [vmem:[%s201 + $0x10] sm:$0xff] %v1273
          %1278 = vst [vmem:[%s201 + $0x18] sm:$0xff] %v1274
          %s1279 = sadd.s32 %s268, 2
          %v1280 = vld [vmem:[#allocation6] sm:$0xff]
          %v1281 = vld [vmem:[#allocation6 + $0x8] sm:$0xff]
          %v1282 = vld [vmem:[#allocation6 + $0x10] sm:$0xff]
          %v1283 = vld [vmem:[#allocation6 + $0x18] sm:$0xff]
          %v1284 = vld [vmem:[#allocation6 + $0x20] sm:$0xff]
          %v1285 = vld [vmem:[#allocation6 + $0x28] sm:$0xff]
          %v1286 = vld [vmem:[#allocation6 + $0x30] sm:$0xff]
          %v1287 = vld [vmem:[#allocation6 + $0x38] sm:$0xff]
          %v1288 = vld [vmem:[%s167] sm:$0xff]
          %v1289 = vld [vmem:[%s167 + $0x8] sm:$0xff]
          %v1290 = vld [vmem:[%s167 + $0x10] sm:$0xff]
          %v1291 = vld [vmem:[%s167 + $0x18] sm:$0xff]
          %1300 = vrot.lane.b32.xlu0 %v1280, 2
          %v1301 = vpop.permute.xlu0 %1300
          %1302 = vrot.lane.b32.xlu0 %v1281, 2
          %v1303 = vpop.permute.xlu0 %1302
          %1304 = vrot.lane.b32.xlu0 %v1282, 2
          %v1305 = vpop.permute.xlu0 %1304
          %1306 = vrot.lane.b32.xlu0 %v1283, 2
          %v1307 = vpop.permute.xlu0 %1306
          %1308 = vrot.lane.b32.xlu0 %v1284, 2
          %v1309 = vpop.permute.xlu0 %1308
          %1310 = vrot.lane.b32.xlu0 %v1285, 2
          %v1311 = vpop.permute.xlu0 %1310
          %1312 = vrot.lane.b32.xlu0 %v1286, 2
          %v1313 = vpop.permute.xlu0 %1312
          %1314 = vrot.lane.b32.xlu0 %v1287, 2
          %v1315 = vpop.permute.xlu0 %1314
          %vm1316 = vcmask 15360
          %v1317 = vsel %vm1316, %v1301, %v1303
          %v1318 = vsel %vm1316, %v1305, %v1307
          %v1319 = vsel %vm1316, %v1309, %v1311
          %v1320 = vsel %vm1316, %v1313, %v1315
          %v1325 = vsub.f32 %v1288, %v1317
          %v1326 = vsub.f32 %v1289, %v1318
          %v1327 = vsub.f32 %v1290, %v1319
          %v1328 = vsub.f32 %v1291, %v1320
          %v1329 = vand.u32 2147483647, %v1325
          %v1330 = vand.u32 2147483647, %v1326
          %v1331 = vand.u32 2147483647, %v1327
          %v1332 = vand.u32 2147483647, %v1328
          %1333 = vst.msk [vmem:[#allocation2 + $0x8] sm:$0xff] %vm285, %v1329
          %1334 = vst.msk [vmem:[#allocation2 + $0x20] sm:$0xff] %vm285, %v1330
          %1335 = vst.msk [vmem:[#allocation2 + $0x38] sm:$0xff] %vm285, %v1331
          %1336 = vst.msk [vmem:[#allocation2 + $0x50] sm:$0xff] %vm285, %v1332
          %v1337 = vld [vmem:[#allocation2] sm:$0xff]
          %v1338 = vld [vmem:[#allocation2 + $0x8] sm:$0xff]
          %v1339 = vld [vmem:[#allocation2 + $0x10] sm:$0xff]
          %v1340 = vld [vmem:[#allocation2 + $0x18] sm:$0xff]
          %v1341 = vld [vmem:[#allocation2 + $0x20] sm:$0xff]
          %v1342 = vld [vmem:[#allocation2 + $0x28] sm:$0xff]
          %v1343 = vld [vmem:[#allocation2 + $0x30] sm:$0xff]
          %v1344 = vld [vmem:[#allocation2 + $0x38] sm:$0xff]
          %v1345 = vld [vmem:[#allocation2 + $0x40] sm:$0xff]
          %v1346 = vld [vmem:[#allocation2 + $0x48] sm:$0xff]
          %v1347 = vld [vmem:[#allocation2 + $0x50] sm:$0xff]
          %v1348 = vld [vmem:[#allocation2 + $0x58] sm:$0xff]
          %1361 = vrot.lane.b32.xlu0 %v1337, 127
          %v1362 = vpop.permute.xlu0 %1361
          %1363 = vrot.lane.b32.xlu0 %v1338, 127
          %v1364 = vpop.permute.xlu0 %1363
          %1365 = vrot.lane.b32.xlu0 %v1339, 127
          %v1366 = vpop.permute.xlu0 %1365
          %1367 = vrot.lane.b32.xlu0 %v1340, 127
          %v1368 = vpop.permute.xlu0 %1367
          %1369 = vrot.lane.b32.xlu0 %v1341, 127
          %v1370 = vpop.permute.xlu0 %1369
          %1371 = vrot.lane.b32.xlu0 %v1342, 127
          %v1372 = vpop.permute.xlu0 %1371
          %1373 = vrot.lane.b32.xlu0 %v1343, 127
          %v1374 = vpop.permute.xlu0 %1373
          %1375 = vrot.lane.b32.xlu0 %v1344, 127
          %v1376 = vpop.permute.xlu0 %1375
          %1377 = vrot.lane.b32.xlu0 %v1345, 127
          %v1378 = vpop.permute.xlu0 %1377
          %1379 = vrot.lane.b32.xlu0 %v1346, 127
          %v1380 = vpop.permute.xlu0 %1379
          %1381 = vrot.lane.b32.xlu0 %v1347, 127
          %v1382 = vpop.permute.xlu0 %1381
          %1383 = vrot.lane.b32.xlu0 %v1348, 127
          %v1384 = vpop.permute.xlu0 %1383
          %v1385 = vsel %vm338, %v1362, %v1364
          %v1386 = vsel %vm338, %v1364, %v1366
          %v1387 = vsel %vm338, %v1368, %v1370
          %v1388 = vsel %vm338, %v1370, %v1372
          %v1389 = vsel %vm338, %v1374, %v1376
          %v1390 = vsel %vm338, %v1376, %v1378
          %v1391 = vsel %vm338, %v1380, %v1382
          %v1392 = vsel %vm338, %v1382, %v1384
          %v1405 = vadd.f32 %v1337, %v1385
          %v1406 = vadd.f32 %v1338, %v1386
          %v1407 = vadd.f32 %v1339, %v1366
          %v1408 = vadd.f32 %v1340, %v1387
          %v1409 = vadd.f32 %v1341, %v1388
          %v1410 = vadd.f32 %v1342, %v1372
          %v1411 = vadd.f32 %v1343, %v1389
          %v1412 = vadd.f32 %v1344, %v1390
          %v1413 = vadd.f32 %v1345, %v1378
          %v1414 = vadd.f32 %v1346, %v1391
          %v1415 = vadd.f32 %v1347, %v1392
          %v1416 = vadd.f32 %v1348, %v1384
          %1417 = vrot.lane.b32.xlu0 %v1337, 126
          %v1418 = vpop.permute.xlu0 %1417
          %1419 = vrot.lane.b32.xlu0 %v1338, 126
          %v1420 = vpop.permute.xlu0 %1419
          %1421 = vrot.lane.b32.xlu0 %v1339, 126
          %v1422 = vpop.permute.xlu0 %1421
          %1423 = vrot.lane.b32.xlu0 %v1340, 126
          %v1424 = vpop.permute.xlu0 %1423
          %1425 = vrot.lane.b32.xlu0 %v1341, 126
          %v1426 = vpop.permute.xlu0 %1425
          %1427 = vrot.lane.b32.xlu0 %v1342, 126
          %v1428 = vpop.permute.xlu0 %1427
          %1429 = vrot.lane.b32.xlu0 %v1343, 126
          %v1430 = vpop.permute.xlu0 %1429
          %1431 = vrot.lane.b32.xlu0 %v1344, 126
          %v1432 = vpop.permute.xlu0 %1431
          %1433 = vrot.lane.b32.xlu0 %v1345, 126
          %v1434 = vpop.permute.xlu0 %1433
          %1435 = vrot.lane.b32.xlu0 %v1346, 126
          %v1436 = vpop.permute.xlu0 %1435
          %1437 = vrot.lane.b32.xlu0 %v1347, 126
          %v1438 = vpop.permute.xlu0 %1437
          %1439 = vrot.lane.b32.xlu0 %v1348, 126
          %v1440 = vpop.permute.xlu0 %1439
          %v1441 = vsel %vm395, %v1418, %v1420
          %v1442 = vsel %vm395, %v1420, %v1422
          %v1443 = vsel %vm395, %v1424, %v1426
          %v1444 = vsel %vm395, %v1426, %v1428
          %v1445 = vsel %vm395, %v1430, %v1432
          %v1446 = vsel %vm395, %v1432, %v1434
          %v1447 = vsel %vm395, %v1436, %v1438
          %v1448 = vsel %vm395, %v1438, %v1440
          %v1461 = vadd.f32 %v1405, %v1441
          %v1462 = vadd.f32 %v1406, %v1442
          %v1463 = vadd.f32 %v1407, %v1422
          %v1464 = vadd.f32 %v1408, %v1443
          %v1465 = vadd.f32 %v1409, %v1444
          %v1466 = vadd.f32 %v1410, %v1428
          %v1467 = vadd.f32 %v1411, %v1445
          %v1468 = vadd.f32 %v1412, %v1446
          %v1469 = vadd.f32 %v1413, %v1434
          %v1470 = vadd.f32 %v1414, %v1447
          %v1471 = vadd.f32 %v1415, %v1448
          %v1472 = vadd.f32 %v1416, %v1440
          %1473 = vst.msk [vmem:[#allocation3] sm:$0xff] %vm428, %v1461
          %1474 = vst [vmem:[#allocation3 + $0x8] sm:$0xff] %v1462
          %1475 = vst.msk [vmem:[#allocation3 + $0x10] sm:$0xff] %vm431, %v1463
          %1476 = vst.msk [vmem:[#allocation3 + $0x18] sm:$0xff] %vm428, %v1464
          %1477 = vst [vmem:[#allocation3 + $0x20] sm:$0xff] %v1465
          %1478 = vst.msk [vmem:[#allocation3 + $0x28] sm:$0xff] %vm431, %v1466
          %1479 = vst.msk [vmem:[#allocation3 + $0x30] sm:$0xff] %vm428, %v1467
          %1480 = vst [vmem:[#allocation3 + $0x38] sm:$0xff] %v1468
          %1481 = vst.msk [vmem:[#allocation3 + $0x40] sm:$0xff] %vm431, %v1469
          %1482 = vst.msk [vmem:[#allocation3 + $0x48] sm:$0xff] %vm428, %v1470
          %1483 = vst [vmem:[#allocation3 + $0x50] sm:$0xff] %v1471
          %1484 = vst.msk [vmem:[#allocation3 + $0x58] sm:$0xff] %vm431, %v1472
          %v1485 = vld [vmem:[#allocation3] sm:$0xff]
          %v1486 = vld [vmem:[#allocation3 + $0x8] sm:$0xff]
          %v1487 = vld [vmem:[#allocation3 + $0x18] sm:$0xff]
          %v1488 = vld [vmem:[#allocation3 + $0x20] sm:$0xff]
          %v1489 = vld [vmem:[#allocation3 + $0x30] sm:$0xff]
          %v1490 = vld [vmem:[#allocation3 + $0x38] sm:$0xff]
          %v1491 = vld [vmem:[#allocation3 + $0x48] sm:$0xff]
          %v1492 = vld [vmem:[#allocation3 + $0x50] sm:$0xff]
          %1501 = vrot.lane.b32.xlu0 %v1485, 125
          %v1502 = vpop.permute.xlu0 %1501
          %1503 = vrot.lane.b32.xlu0 %v1486, 125
          %v1504 = vpop.permute.xlu0 %1503
          %1505 = vrot.lane.b32.xlu0 %v1487, 125
          %v1506 = vpop.permute.xlu0 %1505
          %1507 = vrot.lane.b32.xlu0 %v1488, 125
          %v1508 = vpop.permute.xlu0 %1507
          %1509 = vrot.lane.b32.xlu0 %v1489, 125
          %v1510 = vpop.permute.xlu0 %1509
          %1511 = vrot.lane.b32.xlu0 %v1490, 125
          %v1512 = vpop.permute.xlu0 %1511
          %1513 = vrot.lane.b32.xlu0 %v1491, 125
          %v1514 = vpop.permute.xlu0 %1513
          %1515 = vrot.lane.b32.xlu0 %v1492, 125
          %v1516 = vpop.permute.xlu0 %1515
          %v1517 = vsel %vm474, %v1502, %v1504
          %v1518 = vsel %vm474, %v1506, %v1508
          %v1519 = vsel %vm474, %v1510, %v1512
          %v1520 = vsel %vm474, %v1514, %v1516
          %v1529 = vadd.f32 %v1485, %v1517
          %v1530 = vadd.f32 %v1486, %v1504
          %v1531 = vadd.f32 %v1487, %v1518
          %v1532 = vadd.f32 %v1488, %v1508
          %v1533 = vadd.f32 %v1489, %v1519
          %v1534 = vadd.f32 %v1490, %v1512
          %v1535 = vadd.f32 %v1491, %v1520
          %v1536 = vadd.f32 %v1492, %v1516
          %1537 = vrot.lane.b32.xlu0 %v1485, 122
          %v1538 = vpop.permute.xlu0 %1537
          %1539 = vrot.lane.b32.xlu0 %v1486, 122
          %v1540 = vpop.permute.xlu0 %1539
          %1541 = vrot.lane.b32.xlu0 %v1487, 122
          %v1542 = vpop.permute.xlu0 %1541
          %1543 = vrot.lane.b32.xlu0 %v1488, 122
          %v1544 = vpop.permute.xlu0 %1543
          %1545 = vrot.lane.b32.xlu0 %v1489, 122
          %v1546 = vpop.permute.xlu0 %1545
          %1547 = vrot.lane.b32.xlu0 %v1490, 122
          %v1548 = vpop.permute.xlu0 %1547
          %1549 = vrot.lane.b32.xlu0 %v1491, 122
          %v1550 = vpop.permute.xlu0 %1549
          %1551 = vrot.lane.b32.xlu0 %v1492, 122
          %v1552 = vpop.permute.xlu0 %1551
          %v1553 = vsel %vm511, %v1538, %v1540
          %v1554 = vsel %vm511, %v1542, %v1544
          %v1555 = vsel %vm511, %v1546, %v1548
          %v1556 = vsel %vm511, %v1550, %v1552
          %v1565 = vadd.f32 %v1529, %v1553
          %v1566 = vadd.f32 %v1530, %v1540
          %v1567 = vadd.f32 %v1531, %v1554
          %v1568 = vadd.f32 %v1532, %v1544
          %v1569 = vadd.f32 %v1533, %v1555
          %v1570 = vadd.f32 %v1534, %v1548
          %v1571 = vadd.f32 %v1535, %v1556
          %v1572 = vadd.f32 %v1536, %v1552
          %v1573 = vld [vmem:[#allocation3 + $0x8] sm:$0xff]
          %v1574 = vld [vmem:[#allocation3 + $0x10] sm:$0xff]
          %v1575 = vld [vmem:[#allocation3 + $0x20] sm:$0xff]
          %v1576 = vld [vmem:[#allocation3 + $0x28] sm:$0xff]
          %v1577 = vld [vmem:[#allocation3 + $0x38] sm:$0xff]
          %v1578 = vld [vmem:[#allocation3 + $0x40] sm:$0xff]
          %v1579 = vld [vmem:[#allocation3 + $0x50] sm:$0xff]
          %v1580 = vld [vmem:[#allocation3 + $0x58] sm:$0xff]
          %1589 = vrot.lane.b32.xlu0 %v1573, 119
          %v1590 = vpop.permute.xlu0 %1589
          %1591 = vrot.lane.b32.xlu0 %v1574, 119
          %v1592 = vpop.permute.xlu0 %1591
          %1593 = vrot.lane.b32.xlu0 %v1575, 119
          %v1594 = vpop.permute.xlu0 %1593
          %1595 = vrot.lane.b32.xlu0 %v1576, 119
          %v1596 = vpop.permute.xlu0 %1595
          %1597 = vrot.lane.b32.xlu0 %v1577, 119
          %v1598 = vpop.permute.xlu0 %1597
          %1599 = vrot.lane.b32.xlu0 %v1578, 119
          %v1600 = vpop.permute.xlu0 %1599
          %1601 = vrot.lane.b32.xlu0 %v1579, 119
          %v1602 = vpop.permute.xlu0 %1601
          %1603 = vrot.lane.b32.xlu0 %v1580, 119
          %v1604 = vpop.permute.xlu0 %1603
          %v1605 = vsel %vm564, %v1590, %v1592
          %v1606 = vsel %vm564, %v1594, %v1596
          %v1607 = vsel %vm564, %v1598, %v1600
          %v1608 = vsel %vm564, %v1602, %v1604
          %v1617 = vadd.f32 %v1565, %v1590
          %v1618 = vadd.f32 %v1566, %v1605
          %v1619 = vadd.f32 %v1567, %v1594
          %v1620 = vadd.f32 %v1568, %v1606
          %v1621 = vadd.f32 %v1569, %v1598
          %v1622 = vadd.f32 %v1570, %v1607
          %v1623 = vadd.f32 %v1571, %v1602
          %v1624 = vadd.f32 %v1572, %v1608
          %1625 = vrot.lane.b32.xlu0 %v1573, 116
          %v1626 = vpop.permute.xlu0 %1625
          %1627 = vrot.lane.b32.xlu0 %v1574, 116
          %v1628 = vpop.permute.xlu0 %1627
          %1629 = vrot.lane.b32.xlu0 %v1575, 116
          %v1630 = vpop.permute.xlu0 %1629
          %1631 = vrot.lane.b32.xlu0 %v1576, 116
          %v1632 = vpop.permute.xlu0 %1631
          %1633 = vrot.lane.b32.xlu0 %v1577, 116
          %v1634 = vpop.permute.xlu0 %1633
          %1635 = vrot.lane.b32.xlu0 %v1578, 116
          %v1636 = vpop.permute.xlu0 %1635
          %1637 = vrot.lane.b32.xlu0 %v1579, 116
          %v1638 = vpop.permute.xlu0 %1637
          %1639 = vrot.lane.b32.xlu0 %v1580, 116
          %v1640 = vpop.permute.xlu0 %1639
          %v1641 = vsel %vm601, %v1626, %v1628
          %v1642 = vsel %vm601, %v1630, %v1632
          %v1643 = vsel %vm601, %v1634, %v1636
          %v1644 = vsel %vm601, %v1638, %v1640
          %v1653 = vadd.f32 %v1617, %v1626
          %v1654 = vadd.f32 %v1618, %v1641
          %v1655 = vadd.f32 %v1619, %v1630
          %v1656 = vadd.f32 %v1620, %v1642
          %v1657 = vadd.f32 %v1621, %v1634
          %v1658 = vadd.f32 %v1622, %v1643
          %v1659 = vadd.f32 %v1623, %v1638
          %v1660 = vadd.f32 %v1624, %v1644
          %1669 = vrot.lane.b32.xlu0 %v1653, 7
          %v1670 = vpop.permute.xlu0 %1669
          %1671 = vrot.lane.b32.xlu0 %v1654, 7
          %v1672 = vpop.permute.xlu0 %1671
          %1673 = vrot.lane.b32.xlu0 %v1655, 7
          %v1674 = vpop.permute.xlu0 %1673
          %1675 = vrot.lane.b32.xlu0 %v1656, 7
          %v1676 = vpop.permute.xlu0 %1675
          %1677 = vrot.lane.b32.xlu0 %v1657, 7
          %v1678 = vpop.permute.xlu0 %1677
          %1679 = vrot.lane.b32.xlu0 %v1658, 7
          %v1680 = vpop.permute.xlu0 %1679
          %1681 = vrot.lane.b32.xlu0 %v1659, 7
          %v1682 = vpop.permute.xlu0 %1681
          %1683 = vrot.lane.b32.xlu0 %v1660, 7
          %v1684 = vpop.permute.xlu0 %1683
          %v1685 = vsel %vm646, %v1670, %v1672
          %v1686 = vsel %vm646, %v1674, %v1676
          %v1687 = vsel %vm646, %v1678, %v1680
          %v1688 = vsel %vm646, %v1682, %v1684
          %1693 = vst [vmem:[#allocation4 + $0x8] sm:$0xff] %v1685
          %1694 = vst [vmem:[#allocation4 + $0x10] sm:$0xff] %v1686
          %1695 = vst [vmem:[#allocation4 + $0x18] sm:$0xff] %v1687
          %1696 = vst [vmem:[#allocation4 + $0x20] sm:$0xff] %v1688
          %v1697 = vld [vmem:[#allocation4 + $0x1] sm:$0xff]
          %v1698 = vld [vmem:[#allocation4 + $0x9] sm:$0xff]
          %v1699 = vld [vmem:[#allocation4 + $0x11] sm:$0xff]
          %v1700 = vld [vmem:[#allocation4 + $0x19] sm:$0xff]
          %v1701 = vld [vmem:[#allocation4 + $0x21] sm:$0xff]
          %v1702 = vld [vmem:[#allocation4 + $0x29] sm:$0xf]
          %v1703 = vld [vmem:[#allocation4 + $0x2] sm:$0xff]
          %v1704 = vld [vmem:[#allocation4 + $0xa] sm:$0xff]
          %v1705 = vld [vmem:[#allocation4 + $0x12] sm:$0xff]
          %v1706 = vld [vmem:[#allocation4 + $0x1a] sm:$0xff]
          %v1707 = vld [vmem:[#allocation4 + $0x22] sm:$0xff]
          %v1708 = vld [vmem:[#allocation4 + $0x2a] sm:$0xf]
          %v1709 = vadd.f32 %v1697, %v1703
          %v1710 = vadd.f32 %v1698, %v1704
          %v1711 = vadd.f32 %v1699, %v1705
          %v1712 = vadd.f32 %v1700, %v1706
          %v1713 = vadd.f32 %v1701, %v1707
          %v1714 = vadd.f32 %v1702, %v1708
          %v1715 = vld [vmem:[#allocation4 + $0x3] sm:$0xff]
          %v1716 = vld [vmem:[#allocation4 + $0xb] sm:$0xff]
          %v1717 = vld [vmem:[#allocation4 + $0x13] sm:$0xff]
          %v1718 = vld [vmem:[#allocation4 + $0x1b] sm:$0xff]
          %v1719 = vld [vmem:[#allocation4 + $0x23] sm:$0xff]
          %v1720 = vld [vmem:[#allocation4 + $0x2b] sm:$0xf]
          %v1721 = vadd.f32 %v1709, %v1715
          %v1722 = vadd.f32 %v1710, %v1716
          %v1723 = vadd.f32 %v1711, %v1717
          %v1724 = vadd.f32 %v1712, %v1718
          %v1725 = vadd.f32 %v1713, %v1719
          %v1726 = vadd.f32 %v1714, %v1720
          %1727 = vst [vmem:[#allocation5 + $0x1] sm:$0xff] %v1721
          %1728 = vst [vmem:[#allocation5 + $0x9] sm:$0xff] %v1722
          %1729 = vst [vmem:[#allocation5 + $0x11] sm:$0xff] %v1723
          %1730 = vst [vmem:[#allocation5 + $0x19] sm:$0xff] %v1724
          %1731 = vst [vmem:[#allocation5 + $0x21] sm:$0xff] %v1725
          %1732 = vst [vmem:[#allocation5 + $0x29] sm:$0xf] %v1726
          %v1733 = vld [vmem:[#allocation5 + $0x1] sm:$0xff]
          %v1734 = vld [vmem:[#allocation5 + $0x9] sm:$0xff]
          %v1735 = vld [vmem:[#allocation5 + $0x11] sm:$0xff]
          %v1736 = vld [vmem:[#allocation5 + $0x19] sm:$0xff]
          %v1737 = vld [vmem:[#allocation5 + $0x4] sm:$0xff]
          %v1738 = vld [vmem:[#allocation5 + $0xc] sm:$0xff]
          %v1739 = vld [vmem:[#allocation5 + $0x14] sm:$0xff]
          %v1740 = vld [vmem:[#allocation5 + $0x1c] sm:$0xff]
          %v1741 = vadd.f32 %v1733, %v1737
          %v1742 = vadd.f32 %v1734, %v1738
          %v1743 = vadd.f32 %v1735, %v1739
          %v1744 = vadd.f32 %v1736, %v1740
          %v1745 = vld [vmem:[#allocation5 + $0x7] sm:$0xff]
          %v1746 = vld [vmem:[#allocation5 + $0xf] sm:$0xff]
          %v1747 = vld [vmem:[#allocation5 + $0x17] sm:$0xff]
          %v1748 = vld [vmem:[#allocation5 + $0x1f] sm:$0xff]
          %v1749 = vadd.f32 %v1741, %v1745
          %v1750 = vadd.f32 %v1742, %v1746
          %v1751 = vadd.f32 %v1743, %v1747
          %v1752 = vadd.f32 %v1744, %v1748
          %v1753 = vld [vmem:[#allocation5 + $0xa] sm:$0xff]
          %v1754 = vld [vmem:[#allocation5 + $0x12] sm:$0xff]
          %v1755 = vld [vmem:[#allocation5 + $0x1a] sm:$0xff]
          %v1756 = vld [vmem:[#allocation5 + $0x22] sm:$0xff]
          %v1757 = vadd.f32 %v1749, %v1753
          %v1758 = vadd.f32 %v1750, %v1754
          %v1759 = vadd.f32 %v1751, %v1755
          %v1760 = vadd.f32 %v1752, %v1756
          %v1761 = vld [vmem:[#allocation5 + $0xd] sm:$0xff]
          %v1762 = vld [vmem:[#allocation5 + $0x15] sm:$0xff]
          %v1763 = vld [vmem:[#allocation5 + $0x1d] sm:$0xff]
          %v1764 = vld [vmem:[#allocation5 + $0x25] sm:$0xff]
          %v1765 = vadd.f32 %v1757, %v1761
          %v1766 = vadd.f32 %v1758, %v1762
          %v1767 = vadd.f32 %v1759, %v1763
          %v1768 = vadd.f32 %v1760, %v1764
          %v1769 = vld [vmem:[#allocation8] sm:$0xff]
          %v1770 = vld [vmem:[#allocation8 + $0x8] sm:$0xff]
          %v1771 = vld [vmem:[#allocation8 + $0x10] sm:$0xff]
          %v1772 = vld [vmem:[#allocation8 + $0x18] sm:$0xff]
          %vm1773 = vcmp.lt.f32.partialorder %v1765, %v1769
          %vm1774 = vcmp.lt.f32.partialorder %v1766, %v1770
          %vm1775 = vcmp.lt.f32.partialorder %v1767, %v1771
          %vm1776 = vcmp.lt.f32.partialorder %v1768, %v1772
          %v1777 = vsel %vm1773, %v1765, %v1769
          %v1778 = vsel %vm1774, %v1766, %v1770
          %v1779 = vsel %vm1775, %v1767, %v1771
          %v1780 = vsel %vm1776, %v1768, %v1772
          %1781 = vst [vmem:[#allocation8] sm:$0xff] %v1777
          %1782 = vst [vmem:[#allocation8 + $0x8] sm:$0xff] %v1778
          %1783 = vst [vmem:[#allocation8 + $0x10] sm:$0xff] %v1779
          %1784 = vst [vmem:[#allocation8 + $0x18] sm:$0xff] %v1780
          %v1785 = vld [vmem:[%s201] sm:$0xff]
          %v1786 = vld [vmem:[%s201 + $0x8] sm:$0xff]
          %v1787 = vld [vmem:[%s201 + $0x10] sm:$0xff]
          %v1788 = vld [vmem:[%s201 + $0x18] sm:$0xff]
          %v1789 = vstv %s1279
          %v1790 = vsel %vm1773, %v1789, %v1785
          %v1791 = vsel %vm1774, %v1789, %v1786
          %v1792 = vsel %vm1775, %v1789, %v1787
          %v1793 = vsel %vm1776, %v1789, %v1788
          %1794 = vst [vmem:[%s201] sm:$0xff] %v1790
          %1795 = vst [vmem:[%s201 + $0x8] sm:$0xff] %v1791
          %1796 = vst [vmem:[%s201 + $0x10] sm:$0xff] %v1792
          %1797 = vst [vmem:[%s201 + $0x18] sm:$0xff] %v1793
          %s1798 = sadd.s32 %s268, 3
          %v1799 = vld [vmem:[#allocation6] sm:$0xff]
          %v1800 = vld [vmem:[#allocation6 + $0x8] sm:$0xff]
          %v1801 = vld [vmem:[#allocation6 + $0x10] sm:$0xff]
          %v1802 = vld [vmem:[#allocation6 + $0x18] sm:$0xff]
          %v1803 = vld [vmem:[#allocation6 + $0x20] sm:$0xff]
          %v1804 = vld [vmem:[#allocation6 + $0x28] sm:$0xff]
          %v1805 = vld [vmem:[#allocation6 + $0x30] sm:$0xff]
          %v1806 = vld [vmem:[#allocation6 + $0x38] sm:$0xff]
          %v1807 = vld [vmem:[%s167] sm:$0xff]
          %v1808 = vld [vmem:[%s167 + $0x8] sm:$0xff]
          %v1809 = vld [vmem:[%s167 + $0x10] sm:$0xff]
          %v1810 = vld [vmem:[%s167 + $0x18] sm:$0xff]
          %1819 = vrot.lane.b32.xlu0 %v1799, 3
          %v1820 = vpop.permute.xlu0 %1819
          %1821 = vrot.lane.b32.xlu0 %v1800, 3
          %v1822 = vpop.permute.xlu0 %1821
          %1823 = vrot.lane.b32.xlu0 %v1801, 3
          %v1824 = vpop.permute.xlu0 %1823
          %1825 = vrot.lane.b32.xlu0 %v1802, 3
          %v1826 = vpop.permute.xlu0 %1825
          %1827 = vrot.lane.b32.xlu0 %v1803, 3
          %v1828 = vpop.permute.xlu0 %1827
          %1829 = vrot.lane.b32.xlu0 %v1804, 3
          %v1830 = vpop.permute.xlu0 %1829
          %1831 = vrot.lane.b32.xlu0 %v1805, 3
          %v1832 = vpop.permute.xlu0 %1831
          %1833 = vrot.lane.b32.xlu0 %v1806, 3
          %v1834 = vpop.permute.xlu0 %1833
          %vm1835 = vcmask 23552
          %v1836 = vsel %vm1835, %v1820, %v1822
          %v1837 = vsel %vm1835, %v1824, %v1826
          %v1838 = vsel %vm1835, %v1828, %v1830
          %v1839 = vsel %vm1835, %v1832, %v1834
          %v1844 = vsub.f32 %v1807, %v1836
          %v1845 = vsub.f32 %v1808, %v1837
          %v1846 = vsub.f32 %v1809, %v1838
          %v1847 = vsub.f32 %v1810, %v1839
          %v1848 = vand.u32 2147483647, %v1844
          %v1849 = vand.u32 2147483647, %v1845
          %v1850 = vand.u32 2147483647, %v1846
          %v1851 = vand.u32 2147483647, %v1847
          %1852 = vst.msk [vmem:[#allocation2 + $0x8] sm:$0xff] %vm285, %v1848
          %1853 = vst.msk [vmem:[#allocation2 + $0x20] sm:$0xff] %vm285, %v1849
          %1854 = vst.msk [vmem:[#allocation2 + $0x38] sm:$0xff] %vm285, %v1850
          %1855 = vst.msk [vmem:[#allocation2 + $0x50] sm:$0xff] %vm285, %v1851
          %v1856 = vld [vmem:[#allocation2] sm:$0xff]
          %v1857 = vld [vmem:[#allocation2 + $0x8] sm:$0xff]
          %v1858 = vld [vmem:[#allocation2 + $0x10] sm:$0xff]
          %v1859 = vld [vmem:[#allocation2 + $0x18] sm:$0xff]
          %v1860 = vld [vmem:[#allocation2 + $0x20] sm:$0xff]
          %v1861 = vld [vmem:[#allocation2 + $0x28] sm:$0xff]
          %v1862 = vld [vmem:[#allocation2 + $0x30] sm:$0xff]
          %v1863 = vld [vmem:[#allocation2 + $0x38] sm:$0xff]
          %v1864 = vld [vmem:[#allocation2 + $0x40] sm:$0xff]
          %v1865 = vld [vmem:[#allocation2 + $0x48] sm:$0xff]
          %v1866 = vld [vmem:[#allocation2 + $0x50] sm:$0xff]
          %v1867 = vld [vmem:[#allocation2 + $0x58] sm:$0xff]
          %1880 = vrot.lane.b32.xlu0 %v1856, 127
          %v1881 = vpop.permute.xlu0 %1880
          %1882 = vrot.lane.b32.xlu0 %v1857, 127
          %v1883 = vpop.permute.xlu0 %1882
          %1884 = vrot.lane.b32.xlu0 %v1858, 127
          %v1885 = vpop.permute.xlu0 %1884
          %1886 = vrot.lane.b32.xlu0 %v1859, 127
          %v1887 = vpop.permute.xlu0 %1886
          %1888 = vrot.lane.b32.xlu0 %v1860, 127
          %v1889 = vpop.permute.xlu0 %1888
          %1890 = vrot.lane.b32.xlu0 %v1861, 127
          %v1891 = vpop.permute.xlu0 %1890
          %1892 = vrot.lane.b32.xlu0 %v1862, 127
          %v1893 = vpop.permute.xlu0 %1892
          %1894 = vrot.lane.b32.xlu0 %v1863, 127
          %v1895 = vpop.permute.xlu0 %1894
          %1896 = vrot.lane.b32.xlu0 %v1864, 127
          %v1897 = vpop.permute.xlu0 %1896
          %1898 = vrot.lane.b32.xlu0 %v1865, 127
          %v1899 = vpop.permute.xlu0 %1898
          %1900 = vrot.lane.b32.xlu0 %v1866, 127
          %v1901 = vpop.permute.xlu0 %1900
          %1902 = vrot.lane.b32.xlu0 %v1867, 127
          %v1903 = vpop.permute.xlu0 %1902
          %v1904 = vsel %vm338, %v1881, %v1883
          %v1905 = vsel %vm338, %v1883, %v1885
          %v1906 = vsel %vm338, %v1887, %v1889
          %v1907 = vsel %vm338, %v1889, %v1891
          %v1908 = vsel %vm338, %v1893, %v1895
          %v1909 = vsel %vm338, %v1895, %v1897
          %v1910 = vsel %vm338, %v1899, %v1901
          %v1911 = vsel %vm338, %v1901, %v1903
          %v1924 = vadd.f32 %v1856, %v1904
          %v1925 = vadd.f32 %v1857, %v1905
          %v1926 = vadd.f32 %v1858, %v1885
          %v1927 = vadd.f32 %v1859, %v1906
          %v1928 = vadd.f32 %v1860, %v1907
          %v1929 = vadd.f32 %v1861, %v1891
          %v1930 = vadd.f32 %v1862, %v1908
          %v1931 = vadd.f32 %v1863, %v1909
          %v1932 = vadd.f32 %v1864, %v1897
          %v1933 = vadd.f32 %v1865, %v1910
          %v1934 = vadd.f32 %v1866, %v1911
          %v1935 = vadd.f32 %v1867, %v1903
          %1936 = vrot.lane.b32.xlu0 %v1856, 126
          %v1937 = vpop.permute.xlu0 %1936
          %1938 = vrot.lane.b32.xlu0 %v1857, 126
          %v1939 = vpop.permute.xlu0 %1938
          %1940 = vrot.lane.b32.xlu0 %v1858, 126
          %v1941 = vpop.permute.xlu0 %1940
          %1942 = vrot.lane.b32.xlu0 %v1859, 126
          %v1943 = vpop.permute.xlu0 %1942
          %1944 = vrot.lane.b32.xlu0 %v1860, 126
          %v1945 = vpop.permute.xlu0 %1944
          %1946 = vrot.lane.b32.xlu0 %v1861, 126
          %v1947 = vpop.permute.xlu0 %1946
          %1948 = vrot.lane.b32.xlu0 %v1862, 126
          %v1949 = vpop.permute.xlu0 %1948
          %1950 = vrot.lane.b32.xlu0 %v1863, 126
          %v1951 = vpop.permute.xlu0 %1950
          %1952 = vrot.lane.b32.xlu0 %v1864, 126
          %v1953 = vpop.permute.xlu0 %1952
          %1954 = vrot.lane.b32.xlu0 %v1865, 126
          %v1955 = vpop.permute.xlu0 %1954
          %1956 = vrot.lane.b32.xlu0 %v1866, 126
          %v1957 = vpop.permute.xlu0 %1956
          %1958 = vrot.lane.b32.xlu0 %v1867, 126
          %v1959 = vpop.permute.xlu0 %1958
          %v1960 = vsel %vm395, %v1937, %v1939
          %v1961 = vsel %vm395, %v1939, %v1941
          %v1962 = vsel %vm395, %v1943, %v1945
          %v1963 = vsel %vm395, %v1945, %v1947
          %v1964 = vsel %vm395, %v1949, %v1951
          %v1965 = vsel %vm395, %v1951, %v1953
          %v1966 = vsel %vm395, %v1955, %v1957
          %v1967 = vsel %vm395, %v1957, %v1959
          %v1980 = vadd.f32 %v1924, %v1960
          %v1981 = vadd.f32 %v1925, %v1961
          %v1982 = vadd.f32 %v1926, %v1941
          %v1983 = vadd.f32 %v1927, %v1962
          %v1984 = vadd.f32 %v1928, %v1963
          %v1985 = vadd.f32 %v1929, %v1947
          %v1986 = vadd.f32 %v1930, %v1964
          %v1987 = vadd.f32 %v1931, %v1965
          %v1988 = vadd.f32 %v1932, %v1953
          %v1989 = vadd.f32 %v1933, %v1966
          %v1990 = vadd.f32 %v1934, %v1967
          %v1991 = vadd.f32 %v1935, %v1959
          %1992 = vst.msk [vmem:[#allocation3] sm:$0xff] %vm428, %v1980
          %1993 = vst [vmem:[#allocation3 + $0x8] sm:$0xff] %v1981
          %1994 = vst.msk [vmem:[#allocation3 + $0x10] sm:$0xff] %vm431, %v1982
          %1995 = vst.msk [vmem:[#allocation3 + $0x18] sm:$0xff] %vm428, %v1983
          %1996 = vst [vmem:[#allocation3 + $0x20] sm:$0xff] %v1984
          %1997 = vst.msk [vmem:[#allocation3 + $0x28] sm:$0xff] %vm431, %v1985
          %1998 = vst.msk [vmem:[#allocation3 + $0x30] sm:$0xff] %vm428, %v1986
          %1999 = vst [vmem:[#allocation3 + $0x38] sm:$0xff] %v1987
          %2000 = vst.msk [vmem:[#allocation3 + $0x40] sm:$0xff] %vm431, %v1988
          %2001 = vst.msk [vmem:[#allocation3 + $0x48] sm:$0xff] %vm428, %v1989
          %2002 = vst [vmem:[#allocation3 + $0x50] sm:$0xff] %v1990
          %2003 = vst.msk [vmem:[#allocation3 + $0x58] sm:$0xff] %vm431, %v1991
          %v2004 = vld [vmem:[#allocation3] sm:$0xff]
          %v2005 = vld [vmem:[#allocation3 + $0x8] sm:$0xff]
          %v2006 = vld [vmem:[#allocation3 + $0x18] sm:$0xff]
          %v2007 = vld [vmem:[#allocation3 + $0x20] sm:$0xff]
          %v2008 = vld [vmem:[#allocation3 + $0x30] sm:$0xff]
          %v2009 = vld [vmem:[#allocation3 + $0x38] sm:$0xff]
          %v2010 = vld [vmem:[#allocation3 + $0x48] sm:$0xff]
          %v2011 = vld [vmem:[#allocation3 + $0x50] sm:$0xff]
          %2020 = vrot.lane.b32.xlu0 %v2004, 125
          %v2021 = vpop.permute.xlu0 %2020
          %2022 = vrot.lane.b32.xlu0 %v2005, 125
          %v2023 = vpop.permute.xlu0 %2022
          %2024 = vrot.lane.b32.xlu0 %v2006, 125
          %v2025 = vpop.permute.xlu0 %2024
          %2026 = vrot.lane.b32.xlu0 %v2007, 125
          %v2027 = vpop.permute.xlu0 %2026
          %2028 = vrot.lane.b32.xlu0 %v2008, 125
          %v2029 = vpop.permute.xlu0 %2028
          %2030 = vrot.lane.b32.xlu0 %v2009, 125
          %v2031 = vpop.permute.xlu0 %2030
          %2032 = vrot.lane.b32.xlu0 %v2010, 125
          %v2033 = vpop.permute.xlu0 %2032
          %2034 = vrot.lane.b32.xlu0 %v2011, 125
          %v2035 = vpop.permute.xlu0 %2034
          %v2036 = vsel %vm474, %v2021, %v2023
          %v2037 = vsel %vm474, %v2025, %v2027
          %v2038 = vsel %vm474, %v2029, %v2031
          %v2039 = vsel %vm474, %v2033, %v2035
          %v2048 = vadd.f32 %v2004, %v2036
          %v2049 = vadd.f32 %v2005, %v2023
          %v2050 = vadd.f32 %v2006, %v2037
          %v2051 = vadd.f32 %v2007, %v2027
          %v2052 = vadd.f32 %v2008, %v2038
          %v2053 = vadd.f32 %v2009, %v2031
          %v2054 = vadd.f32 %v2010, %v2039
          %v2055 = vadd.f32 %v2011, %v2035
          %2056 = vrot.lane.b32.xlu0 %v2004, 122
          %v2057 = vpop.permute.xlu0 %2056
          %2058 = vrot.lane.b32.xlu0 %v2005, 122
          %v2059 = vpop.permute.xlu0 %2058
          %2060 = vrot.lane.b32.xlu0 %v2006, 122
          %v2061 = vpop.permute.xlu0 %2060
          %2062 = vrot.lane.b32.xlu0 %v2007, 122
          %v2063 = vpop.permute.xlu0 %2062
          %2064 = vrot.lane.b32.xlu0 %v2008, 122
          %v2065 = vpop.permute.xlu0 %2064
          %2066 = vrot.lane.b32.xlu0 %v2009, 122
          %v2067 = vpop.permute.xlu0 %2066
          %2068 = vrot.lane.b32.xlu0 %v2010, 122
          %v2069 = vpop.permute.xlu0 %2068
          %2070 = vrot.lane.b32.xlu0 %v2011, 122
          %v2071 = vpop.permute.xlu0 %2070
          %v2072 = vsel %vm511, %v2057, %v2059
          %v2073 = vsel %vm511, %v2061, %v2063
          %v2074 = vsel %vm511, %v2065, %v2067
          %v2075 = vsel %vm511, %v2069, %v2071
          %v2084 = vadd.f32 %v2048, %v2072
          %v2085 = vadd.f32 %v2049, %v2059
          %v2086 = vadd.f32 %v2050, %v2073
          %v2087 = vadd.f32 %v2051, %v2063
          %v2088 = vadd.f32 %v2052, %v2074
          %v2089 = vadd.f32 %v2053, %v2067
          %v2090 = vadd.f32 %v2054, %v2075
          %v2091 = vadd.f32 %v2055, %v2071
          %v2092 = vld [vmem:[#allocation3 + $0x8] sm:$0xff]
          %v2093 = vld [vmem:[#allocation3 + $0x10] sm:$0xff]
          %v2094 = vld [vmem:[#allocation3 + $0x20] sm:$0xff]
          %v2095 = vld [vmem:[#allocation3 + $0x28] sm:$0xff]
          %v2096 = vld [vmem:[#allocation3 + $0x38] sm:$0xff]
          %v2097 = vld [vmem:[#allocation3 + $0x40] sm:$0xff]
          %v2098 = vld [vmem:[#allocation3 + $0x50] sm:$0xff]
          %v2099 = vld [vmem:[#allocation3 + $0x58] sm:$0xff]
          %2108 = vrot.lane.b32.xlu0 %v2092, 119
          %v2109 = vpop.permute.xlu0 %2108
          %2110 = vrot.lane.b32.xlu0 %v2093, 119
          %v2111 = vpop.permute.xlu0 %2110
          %2112 = vrot.lane.b32.xlu0 %v2094, 119
          %v2113 = vpop.permute.xlu0 %2112
          %2114 = vrot.lane.b32.xlu0 %v2095, 119
          %v2115 = vpop.permute.xlu0 %2114
          %2116 = vrot.lane.b32.xlu0 %v2096, 119
          %v2117 = vpop.permute.xlu0 %2116
          %2118 = vrot.lane.b32.xlu0 %v2097, 119
          %v2119 = vpop.permute.xlu0 %2118
          %2120 = vrot.lane.b32.xlu0 %v2098, 119
          %v2121 = vpop.permute.xlu0 %2120
          %2122 = vrot.lane.b32.xlu0 %v2099, 119
          %v2123 = vpop.permute.xlu0 %2122
          %v2124 = vsel %vm564, %v2109, %v2111
          %v2125 = vsel %vm564, %v2113, %v2115
          %v2126 = vsel %vm564, %v2117, %v2119
          %v2127 = vsel %vm564, %v2121, %v2123
          %v2136 = vadd.f32 %v2084, %v2109
          %v2137 = vadd.f32 %v2085, %v2124
          %v2138 = vadd.f32 %v2086, %v2113
          %v2139 = vadd.f32 %v2087, %v2125
          %v2140 = vadd.f32 %v2088, %v2117
          %v2141 = vadd.f32 %v2089, %v2126
          %v2142 = vadd.f32 %v2090, %v2121
          %v2143 = vadd.f32 %v2091, %v2127
          %2144 = vrot.lane.b32.xlu0 %v2092, 116
          %v2145 = vpop.permute.xlu0 %2144
          %2146 = vrot.lane.b32.xlu0 %v2093, 116
          %v2147 = vpop.permute.xlu0 %2146
          %2148 = vrot.lane.b32.xlu0 %v2094, 116
          %v2149 = vpop.permute.xlu0 %2148
          %2150 = vrot.lane.b32.xlu0 %v2095, 116
          %v2151 = vpop.permute.xlu0 %2150
          %2152 = vrot.lane.b32.xlu0 %v2096, 116
          %v2153 = vpop.permute.xlu0 %2152
          %2154 = vrot.lane.b32.xlu0 %v2097, 116
          %v2155 = vpop.permute.xlu0 %2154
          %2156 = vrot.lane.b32.xlu0 %v2098, 116
          %v2157 = vpop.permute.xlu0 %2156
          %2158 = vrot.lane.b32.xlu0 %v2099, 116
          %v2159 = vpop.permute.xlu0 %2158
          %v2160 = vsel %vm601, %v2145, %v2147
          %v2161 = vsel %vm601, %v2149, %v2151
          %v2162 = vsel %vm601, %v2153, %v2155
          %v2163 = vsel %vm601, %v2157, %v2159
          %v2172 = vadd.f32 %v2136, %v2145
          %v2173 = vadd.f32 %v2137, %v2160
          %v2174 = vadd.f32 %v2138, %v2149
          %v2175 = vadd.f32 %v2139, %v2161
          %v2176 = vadd.f32 %v2140, %v2153
          %v2177 = vadd.f32 %v2141, %v2162
          %v2178 = vadd.f32 %v2142, %v2157
          %v2179 = vadd.f32 %v2143, %v2163
          %2188 = vrot.lane.b32.xlu0 %v2172, 7
          %v2189 = vpop.permute.xlu0 %2188
          %2190 = vrot.lane.b32.xlu0 %v2173, 7
          %v2191 = vpop.permute.xlu0 %2190
          %2192 = vrot.lane.b32.xlu0 %v2174, 7
          %v2193 = vpop.permute.xlu0 %2192
          %2194 = vrot.lane.b32.xlu0 %v2175, 7
          %v2195 = vpop.permute.xlu0 %2194
          %2196 = vrot.lane.b32.xlu0 %v2176, 7
          %v2197 = vpop.permute.xlu0 %2196
          %2198 = vrot.lane.b32.xlu0 %v2177, 7
          %v2199 = vpop.permute.xlu0 %2198
          %2200 = vrot.lane.b32.xlu0 %v2178, 7
          %v2201 = vpop.permute.xlu0 %2200
          %2202 = vrot.lane.b32.xlu0 %v2179, 7
          %v2203 = vpop.permute.xlu0 %2202
          %v2204 = vsel %vm646, %v2189, %v2191
          %v2205 = vsel %vm646, %v2193, %v2195
          %v2206 = vsel %vm646, %v2197, %v2199
          %v2207 = vsel %vm646, %v2201, %v2203
          %2212 = vst [vmem:[#allocation4 + $0x8] sm:$0xff] %v2204
          %2213 = vst [vmem:[#allocation4 + $0x10] sm:$0xff] %v2205
          %2214 = vst [vmem:[#allocation4 + $0x18] sm:$0xff] %v2206
          %2215 = vst [vmem:[#allocation4 + $0x20] sm:$0xff] %v2207
          %v2216 = vld [vmem:[#allocation4 + $0x1] sm:$0xff]
          %v2217 = vld [vmem:[#allocation4 + $0x9] sm:$0xff]
          %v2218 = vld [vmem:[#allocation4 + $0x11] sm:$0xff]
          %v2219 = vld [vmem:[#allocation4 + $0x19] sm:$0xff]
          %v2220 = vld [vmem:[#allocation4 + $0x21] sm:$0xff]
          %v2221 = vld [vmem:[#allocation4 + $0x29] sm:$0xf]
          %v2222 = vld [vmem:[#allocation4 + $0x2] sm:$0xff]
          %v2223 = vld [vmem:[#allocation4 + $0xa] sm:$0xff]
          %v2224 = vld [vmem:[#allocation4 + $0x12] sm:$0xff]
          %v2225 = vld [vmem:[#allocation4 + $0x1a] sm:$0xff]
          %v2226 = vld [vmem:[#allocation4 + $0x22] sm:$0xff]
          %v2227 = vld [vmem:[#allocation4 + $0x2a] sm:$0xf]
          %v2228 = vadd.f32 %v2216, %v2222
          %v2229 = vadd.f32 %v2217, %v2223
          %v2230 = vadd.f32 %v2218, %v2224
          %v2231 = vadd.f32 %v2219, %v2225
          %v2232 = vadd.f32 %v2220, %v2226
          %v2233 = vadd.f32 %v2221, %v2227
          %v2234 = vld [vmem:[#allocation4 + $0x3] sm:$0xff]
          %v2235 = vld [vmem:[#allocation4 + $0xb] sm:$0xff]
          %v2236 = vld [vmem:[#allocation4 + $0x13] sm:$0xff]
          %v2237 = vld [vmem:[#allocation4 + $0x1b] sm:$0xff]
          %v2238 = vld [vmem:[#allocation4 + $0x23] sm:$0xff]
          %v2239 = vld [vmem:[#allocation4 + $0x2b] sm:$0xf]
          %v2240 = vadd.f32 %v2228, %v2234
          %v2241 = vadd.f32 %v2229, %v2235
          %v2242 = vadd.f32 %v2230, %v2236
          %v2243 = vadd.f32 %v2231, %v2237
          %v2244 = vadd.f32 %v2232, %v2238
          %v2245 = vadd.f32 %v2233, %v2239
          %2246 = vst [vmem:[#allocation5 + $0x1] sm:$0xff] %v2240
          %2247 = vst [vmem:[#allocation5 + $0x9] sm:$0xff] %v2241
          %2248 = vst [vmem:[#allocation5 + $0x11] sm:$0xff] %v2242
          %2249 = vst [vmem:[#allocation5 + $0x19] sm:$0xff] %v2243
          %2250 = vst [vmem:[#allocation5 + $0x21] sm:$0xff] %v2244
          %2251 = vst [vmem:[#allocation5 + $0x29] sm:$0xf] %v2245
          %v2252 = vld [vmem:[#allocation5 + $0x1] sm:$0xff]
          %v2253 = vld [vmem:[#allocation5 + $0x9] sm:$0xff]
          %v2254 = vld [vmem:[#allocation5 + $0x11] sm:$0xff]
          %v2255 = vld [vmem:[#allocation5 + $0x19] sm:$0xff]
          %v2256 = vld [vmem:[#allocation5 + $0x4] sm:$0xff]
          %v2257 = vld [vmem:[#allocation5 + $0xc] sm:$0xff]
          %v2258 = vld [vmem:[#allocation5 + $0x14] sm:$0xff]
          %v2259 = vld [vmem:[#allocation5 + $0x1c] sm:$0xff]
          %v2260 = vadd.f32 %v2252, %v2256
          %v2261 = vadd.f32 %v2253, %v2257
          %v2262 = vadd.f32 %v2254, %v2258
          %v2263 = vadd.f32 %v2255, %v2259
          %v2264 = vld [vmem:[#allocation5 + $0x7] sm:$0xff]
          %v2265 = vld [vmem:[#allocation5 + $0xf] sm:$0xff]
          %v2266 = vld [vmem:[#allocation5 + $0x17] sm:$0xff]
          %v2267 = vld [vmem:[#allocation5 + $0x1f] sm:$0xff]
          %v2268 = vadd.f32 %v2260, %v2264
          %v2269 = vadd.f32 %v2261, %v2265
          %v2270 = vadd.f32 %v2262, %v2266
          %v2271 = vadd.f32 %v2263, %v2267
          %v2272 = vld [vmem:[#allocation5 + $0xa] sm:$0xff]
          %v2273 = vld [vmem:[#allocation5 + $0x12] sm:$0xff]
          %v2274 = vld [vmem:[#allocation5 + $0x1a] sm:$0xff]
          %v2275 = vld [vmem:[#allocation5 + $0x22] sm:$0xff]
          %v2276 = vadd.f32 %v2268, %v2272
          %v2277 = vadd.f32 %v2269, %v2273
          %v2278 = vadd.f32 %v2270, %v2274
          %v2279 = vadd.f32 %v2271, %v2275
          %v2280 = vld [vmem:[#allocation5 + $0xd] sm:$0xff]
          %v2281 = vld [vmem:[#allocation5 + $0x15] sm:$0xff]
          %v2282 = vld [vmem:[#allocation5 + $0x1d] sm:$0xff]
          %v2283 = vld [vmem:[#allocation5 + $0x25] sm:$0xff]
          %v2284 = vadd.f32 %v2276, %v2280
          %v2285 = vadd.f32 %v2277, %v2281
          %v2286 = vadd.f32 %v2278, %v2282
          %v2287 = vadd.f32 %v2279, %v2283
          %v2288 = vld [vmem:[#allocation8] sm:$0xff]
          %v2289 = vld [vmem:[#allocation8 + $0x8] sm:$0xff]
          %v2290 = vld [vmem:[#allocation8 + $0x10] sm:$0xff]
          %v2291 = vld [vmem:[#allocation8 + $0x18] sm:$0xff]
          %vm2292 = vcmp.lt.f32.partialorder %v2284, %v2288
          %vm2293 = vcmp.lt.f32.partialorder %v2285, %v2289
          %vm2294 = vcmp.lt.f32.partialorder %v2286, %v2290
          %vm2295 = vcmp.lt.f32.partialorder %v2287, %v2291
          %v2296 = vsel %vm2292, %v2284, %v2288
          %v2297 = vsel %vm2293, %v2285, %v2289
          %v2298 = vsel %vm2294, %v2286, %v2290
          %v2299 = vsel %vm2295, %v2287, %v2291
          %2300 = vst [vmem:[#allocation8] sm:$0xff] %v2296
          %2301 = vst [vmem:[#allocation8 + $0x8] sm:$0xff] %v2297
          %2302 = vst [vmem:[#allocation8 + $0x10] sm:$0xff] %v2298
          %2303 = vst [vmem:[#allocation8 + $0x18] sm:$0xff] %v2299
          %v2304 = vld [vmem:[%s201] sm:$0xff]
          %v2305 = vld [vmem:[%s201 + $0x8] sm:$0xff]
          %v2306 = vld [vmem:[%s201 + $0x10] sm:$0xff]
          %v2307 = vld [vmem:[%s201 + $0x18] sm:$0xff]
          %v2308 = vstv %s1798
          %v2309 = vsel %vm2292, %v2308, %v2304
          %v2310 = vsel %vm2293, %v2308, %v2305
          %v2311 = vsel %vm2294, %v2308, %v2306
          %v2312 = vsel %vm2295, %v2308, %v2307
          %2313 = vst [vmem:[%s201] sm:$0xff] %v2309
          %2314 = vst [vmem:[%s201 + $0x8] sm:$0xff] %v2310
          %2315 = vst [vmem:[%s201 + $0x10] sm:$0xff] %v2311
          %2316 = vst [vmem:[%s201 + $0x18] sm:$0xff] %v2312
          %v2317 = vld [vmem:[#allocation6] sm:$0xff]
          %v2318 = vld [vmem:[#allocation6 + $0x8] sm:$0xff]
          %v2319 = vld [vmem:[#allocation6 + $0x10] sm:$0xff]
          %v2320 = vld [vmem:[#allocation6 + $0x18] sm:$0xff]
          %v2321 = vld [vmem:[#allocation6 + $0x20] sm:$0xff]
          %v2322 = vld [vmem:[#allocation6 + $0x28] sm:$0xff]
          %v2323 = vld [vmem:[#allocation6 + $0x30] sm:$0xff]
          %v2324 = vld [vmem:[#allocation6 + $0x38] sm:$0xff]
          %2333 = vrot.lane.b32.xlu0 %v2317, 4
          %v2334 = vpop.permute.xlu0 %2333
          %2335 = vrot.lane.b32.xlu0 %v2318, 4
          %v2336 = vpop.permute.xlu0 %2335
          %2337 = vrot.lane.b32.xlu0 %v2319, 4
          %v2338 = vpop.permute.xlu0 %2337
          %2339 = vrot.lane.b32.xlu0 %v2320, 4
          %v2340 = vpop.permute.xlu0 %2339
          %2341 = vrot.lane.b32.xlu0 %v2321, 4
          %v2342 = vpop.permute.xlu0 %2341
          %2343 = vrot.lane.b32.xlu0 %v2322, 4
          %v2344 = vpop.permute.xlu0 %2343
          %2345 = vrot.lane.b32.xlu0 %v2323, 4
          %v2346 = vpop.permute.xlu0 %2345
          %2347 = vrot.lane.b32.xlu0 %v2324, 4
          %v2348 = vpop.permute.xlu0 %2347
          %vm2349 = vcmask 31744
          %v2350 = vsel %vm2349, %v2334, %v2336
          %v2351 = vsel %vm2349, %v2338, %v2340
          %v2352 = vsel %vm2349, %v2342, %v2344
          %v2353 = vsel %vm2349, %v2346, %v2348
          %2358 = vst [vmem:[#allocation7 + $0x8] sm:$0xff] %v2350
          %2359 = vst [vmem:[#allocation7 + $0x18] sm:$0xff] %v2351
          %2360 = vst [vmem:[#allocation7 + $0x28] sm:$0xff] %v2352
          %2361 = vst [vmem:[#allocation7 + $0x38] sm:$0xff] %v2353
          %s2362 = sadd.s32 %s268, 4
          %v2363 = vld [vmem:[#allocation7 + $0x8] sm:$0xff]
          %v2364 = vld [vmem:[#allocation7 + $0x18] sm:$0xff]
          %v2365 = vld [vmem:[#allocation7 + $0x28] sm:$0xff]
          %v2366 = vld [vmem:[#allocation7 + $0x38] sm:$0xff]
          %v2367 = vld [vmem:[%s167] sm:$0xff]
          %v2368 = vld [vmem:[%s167 + $0x8] sm:$0xff]
          %v2369 = vld [vmem:[%s167 + $0x10] sm:$0xff]
          %v2370 = vld [vmem:[%s167 + $0x18] sm:$0xff]
          %v2371 = vsub.f32 %v2367, %v2363
          %v2372 = vsub.f32 %v2368, %v2364
          %v2373 = vsub.f32 %v2369, %v2365
          %v2374 = vsub.f32 %v2370, %v2366
          %v2375 = vand.u32 2147483647, %v2371
          %v2376 = vand.u32 2147483647, %v2372
          %v2377 = vand.u32 2147483647, %v2373
          %v2378 = vand.u32 2147483647, %v2374
          %2379 = vst.msk [vmem:[#allocation2 + $0x8] sm:$0xff] %vm285, %v2375
          %2380 = vst.msk [vmem:[#allocation2 + $0x20] sm:$0xff] %vm285, %v2376
          %2381 = vst.msk [vmem:[#allocation2 + $0x38] sm:$0xff] %vm285, %v2377
          %2382 = vst.msk [vmem:[#allocation2 + $0x50] sm:$0xff] %vm285, %v2378
          %v2383 = vld [vmem:[#allocation2] sm:$0xff]
          %v2384 = vld [vmem:[#allocation2 + $0x8] sm:$0xff]
          %v2385 = vld [vmem:[#allocation2 + $0x10] sm:$0xff]
          %v2386 = vld [vmem:[#allocation2 + $0x18] sm:$0xff]
          %v2387 = vld [vmem:[#allocation2 + $0x20] sm:$0xff]
          %v2388 = vld [vmem:[#allocation2 + $0x28] sm:$0xff]
          %v2389 = vld [vmem:[#allocation2 + $0x30] sm:$0xff]
          %v2390 = vld [vmem:[#allocation2 + $0x38] sm:$0xff]
          %v2391 = vld [vmem:[#allocation2 + $0x40] sm:$0xff]
          %v2392 = vld [vmem:[#allocation2 + $0x48] sm:$0xff]
          %v2393 = vld [vmem:[#allocation2 + $0x50] sm:$0xff]
          %v2394 = vld [vmem:[#allocation2 + $0x58] sm:$0xff]
          %2407 = vrot.lane.b32.xlu0 %v2383, 127
          %v2408 = vpop.permute.xlu0 %2407
          %2409 = vrot.lane.b32.xlu0 %v2384, 127
          %v2410 = vpop.permute.xlu0 %2409
          %2411 = vrot.lane.b32.xlu0 %v2385, 127
          %v2412 = vpop.permute.xlu0 %2411
          %2413 = vrot.lane.b32.xlu0 %v2386, 127
          %v2414 = vpop.permute.xlu0 %2413
          %2415 = vrot.lane.b32.xlu0 %v2387, 127
          %v2416 = vpop.permute.xlu0 %2415
          %2417 = vrot.lane.b32.xlu0 %v2388, 127
          %v2418 = vpop.permute.xlu0 %2417
          %2419 = vrot.lane.b32.xlu0 %v2389, 127
          %v2420 = vpop.permute.xlu0 %2419
          %2421 = vrot.lane.b32.xlu0 %v2390, 127
          %v2422 = vpop.permute.xlu0 %2421
          %2423 = vrot.lane.b32.xlu0 %v2391, 127
          %v2424 = vpop.permute.xlu0 %2423
          %2425 = vrot.lane.b32.xlu0 %v2392, 127
          %v2426 = vpop.permute.xlu0 %2425
          %2427 = vrot.lane.b32.xlu0 %v2393, 127
          %v2428 = vpop.permute.xlu0 %2427
          %2429 = vrot.lane.b32.xlu0 %v2394, 127
          %v2430 = vpop.permute.xlu0 %2429
          %v2431 = vsel %vm338, %v2408, %v2410
          %v2432 = vsel %vm338, %v2410, %v2412
          %v2433 = vsel %vm338, %v2414, %v2416
          %v2434 = vsel %vm338, %v2416, %v2418
          %v2435 = vsel %vm338, %v2420, %v2422
          %v2436 = vsel %vm338, %v2422, %v2424
          %v2437 = vsel %vm338, %v2426, %v2428
          %v2438 = vsel %vm338, %v2428, %v2430
          %v2451 = vadd.f32 %v2383, %v2431
          %v2452 = vadd.f32 %v2384, %v2432
          %v2453 = vadd.f32 %v2385, %v2412
          %v2454 = vadd.f32 %v2386, %v2433
          %v2455 = vadd.f32 %v2387, %v2434
          %v2456 = vadd.f32 %v2388, %v2418
          %v2457 = vadd.f32 %v2389, %v2435
          %v2458 = vadd.f32 %v2390, %v2436
          %v2459 = vadd.f32 %v2391, %v2424
          %v2460 = vadd.f32 %v2392, %v2437
          %v2461 = vadd.f32 %v2393, %v2438
          %v2462 = vadd.f32 %v2394, %v2430
          %2463 = vrot.lane.b32.xlu0 %v2383, 126
          %v2464 = vpop.permute.xlu0 %2463
          %2465 = vrot.lane.b32.xlu0 %v2384, 126
          %v2466 = vpop.permute.xlu0 %2465
          %2467 = vrot.lane.b32.xlu0 %v2385, 126
          %v2468 = vpop.permute.xlu0 %2467
          %2469 = vrot.lane.b32.xlu0 %v2386, 126
          %v2470 = vpop.permute.xlu0 %2469
          %2471 = vrot.lane.b32.xlu0 %v2387, 126
          %v2472 = vpop.permute.xlu0 %2471
          %2473 = vrot.lane.b32.xlu0 %v2388, 126
          %v2474 = vpop.permute.xlu0 %2473
          %2475 = vrot.lane.b32.xlu0 %v2389, 126
          %v2476 = vpop.permute.xlu0 %2475
          %2477 = vrot.lane.b32.xlu0 %v2390, 126
          %v2478 = vpop.permute.xlu0 %2477
          %2479 = vrot.lane.b32.xlu0 %v2391, 126
          %v2480 = vpop.permute.xlu0 %2479
          %2481 = vrot.lane.b32.xlu0 %v2392, 126
          %v2482 = vpop.permute.xlu0 %2481
          %2483 = vrot.lane.b32.xlu0 %v2393, 126
          %v2484 = vpop.permute.xlu0 %2483
          %2485 = vrot.lane.b32.xlu0 %v2394, 126
          %v2486 = vpop.permute.xlu0 %2485
          %v2487 = vsel %vm395, %v2464, %v2466
          %v2488 = vsel %vm395, %v2466, %v2468
          %v2489 = vsel %vm395, %v2470, %v2472
          %v2490 = vsel %vm395, %v2472, %v2474
          %v2491 = vsel %vm395, %v2476, %v2478
          %v2492 = vsel %vm395, %v2478, %v2480
          %v2493 = vsel %vm395, %v2482, %v2484
          %v2494 = vsel %vm395, %v2484, %v2486
          %v2507 = vadd.f32 %v2451, %v2487
          %v2508 = vadd.f32 %v2452, %v2488
          %v2509 = vadd.f32 %v2453, %v2468
          %v2510 = vadd.f32 %v2454, %v2489
          %v2511 = vadd.f32 %v2455, %v2490
          %v2512 = vadd.f32 %v2456, %v2474
          %v2513 = vadd.f32 %v2457, %v2491
          %v2514 = vadd.f32 %v2458, %v2492
          %v2515 = vadd.f32 %v2459, %v2480
          %v2516 = vadd.f32 %v2460, %v2493
          %v2517 = vadd.f32 %v2461, %v2494
          %v2518 = vadd.f32 %v2462, %v2486
          %2519 = vst.msk [vmem:[#allocation3] sm:$0xff] %vm428, %v2507
          %2520 = vst [vmem:[#allocation3 + $0x8] sm:$0xff] %v2508
          %2521 = vst.msk [vmem:[#allocation3 + $0x10] sm:$0xff] %vm431, %v2509
          %2522 = vst.msk [vmem:[#allocation3 + $0x18] sm:$0xff] %vm428, %v2510
          %2523 = vst [vmem:[#allocation3 + $0x20] sm:$0xff] %v2511
          %2524 = vst.msk [vmem:[#allocation3 + $0x28] sm:$0xff] %vm431, %v2512
          %2525 = vst.msk [vmem:[#allocation3 + $0x30] sm:$0xff] %vm428, %v2513
          %2526 = vst [vmem:[#allocation3 + $0x38] sm:$0xff] %v2514
          %2527 = vst.msk [vmem:[#allocation3 + $0x40] sm:$0xff] %vm431, %v2515
          %2528 = vst.msk [vmem:[#allocation3 + $0x48] sm:$0xff] %vm428, %v2516
          %2529 = vst [vmem:[#allocation3 + $0x50] sm:$0xff] %v2517
          %2530 = vst.msk [vmem:[#allocation3 + $0x58] sm:$0xff] %vm431, %v2518
          %v2531 = vld [vmem:[#allocation3] sm:$0xff]
          %v2532 = vld [vmem:[#allocation3 + $0x8] sm:$0xff]
          %v2533 = vld [vmem:[#allocation3 + $0x18] sm:$0xff]
          %v2534 = vld [vmem:[#allocation3 + $0x20] sm:$0xff]
          %v2535 = vld [vmem:[#allocation3 + $0x30] sm:$0xff]
          %v2536 = vld [vmem:[#allocation3 + $0x38] sm:$0xff]
          %v2537 = vld [vmem:[#allocation3 + $0x48] sm:$0xff]
          %v2538 = vld [vmem:[#allocation3 + $0x50] sm:$0xff]
          %2547 = vrot.lane.b32.xlu0 %v2531, 125
          %v2548 = vpop.permute.xlu0 %2547
          %2549 = vrot.lane.b32.xlu0 %v2532, 125
          %v2550 = vpop.permute.xlu0 %2549
          %2551 = vrot.lane.b32.xlu0 %v2533, 125
          %v2552 = vpop.permute.xlu0 %2551
          %2553 = vrot.lane.b32.xlu0 %v2534, 125
          %v2554 = vpop.permute.xlu0 %2553
          %2555 = vrot.lane.b32.xlu0 %v2535, 125
          %v2556 = vpop.permute.xlu0 %2555
          %2557 = vrot.lane.b32.xlu0 %v2536, 125
          %v2558 = vpop.permute.xlu0 %2557
          %2559 = vrot.lane.b32.xlu0 %v2537, 125
          %v2560 = vpop.permute.xlu0 %2559
          %2561 = vrot.lane.b32.xlu0 %v2538, 125
          %v2562 = vpop.permute.xlu0 %2561
          %v2563 = vsel %vm474, %v2548, %v2550
          %v2564 = vsel %vm474, %v2552, %v2554
          %v2565 = vsel %vm474, %v2556, %v2558
          %v2566 = vsel %vm474, %v2560, %v2562
          %v2575 = vadd.f32 %v2531, %v2563
          %v2576 = vadd.f32 %v2532, %v2550
          %v2577 = vadd.f32 %v2533, %v2564
          %v2578 = vadd.f32 %v2534, %v2554
          %v2579 = vadd.f32 %v2535, %v2565
          %v2580 = vadd.f32 %v2536, %v2558
          %v2581 = vadd.f32 %v2537, %v2566
          %v2582 = vadd.f32 %v2538, %v2562
          %2583 = vrot.lane.b32.xlu0 %v2531, 122
          %v2584 = vpop.permute.xlu0 %2583
          %2585 = vrot.lane.b32.xlu0 %v2532, 122
          %v2586 = vpop.permute.xlu0 %2585
          %2587 = vrot.lane.b32.xlu0 %v2533, 122
          %v2588 = vpop.permute.xlu0 %2587
          %2589 = vrot.lane.b32.xlu0 %v2534, 122
          %v2590 = vpop.permute.xlu0 %2589
          %2591 = vrot.lane.b32.xlu0 %v2535, 122
          %v2592 = vpop.permute.xlu0 %2591
          %2593 = vrot.lane.b32.xlu0 %v2536, 122
          %v2594 = vpop.permute.xlu0 %2593
          %2595 = vrot.lane.b32.xlu0 %v2537, 122
          %v2596 = vpop.permute.xlu0 %2595
          %2597 = vrot.lane.b32.xlu0 %v2538, 122
          %v2598 = vpop.permute.xlu0 %2597
          %v2599 = vsel %vm511, %v2584, %v2586
          %v2600 = vsel %vm511, %v2588, %v2590
          %v2601 = vsel %vm511, %v2592, %v2594
          %v2602 = vsel %vm511, %v2596, %v2598
          %v2611 = vadd.f32 %v2575, %v2599
          %v2612 = vadd.f32 %v2576, %v2586
          %v2613 = vadd.f32 %v2577, %v2600
          %v2614 = vadd.f32 %v2578, %v2590
          %v2615 = vadd.f32 %v2579, %v2601
          %v2616 = vadd.f32 %v2580, %v2594
          %v2617 = vadd.f32 %v2581, %v2602
          %v2618 = vadd.f32 %v2582, %v2598
          %v2619 = vld [vmem:[#allocation3 + $0x8] sm:$0xff]
          %v2620 = vld [vmem:[#allocation3 + $0x10] sm:$0xff]
          %v2621 = vld [vmem:[#allocation3 + $0x20] sm:$0xff]
          %v2622 = vld [vmem:[#allocation3 + $0x28] sm:$0xff]
          %v2623 = vld [vmem:[#allocation3 + $0x38] sm:$0xff]
          %v2624 = vld [vmem:[#allocation3 + $0x40] sm:$0xff]
          %v2625 = vld [vmem:[#allocation3 + $0x50] sm:$0xff]
          %v2626 = vld [vmem:[#allocation3 + $0x58] sm:$0xff]
          %2635 = vrot.lane.b32.xlu0 %v2619, 119
          %v2636 = vpop.permute.xlu0 %2635
          %2637 = vrot.lane.b32.xlu0 %v2620, 119
          %v2638 = vpop.permute.xlu0 %2637
          %2639 = vrot.lane.b32.xlu0 %v2621, 119
          %v2640 = vpop.permute.xlu0 %2639
          %2641 = vrot.lane.b32.xlu0 %v2622, 119
          %v2642 = vpop.permute.xlu0 %2641
          %2643 = vrot.lane.b32.xlu0 %v2623, 119
          %v2644 = vpop.permute.xlu0 %2643
          %2645 = vrot.lane.b32.xlu0 %v2624, 119
          %v2646 = vpop.permute.xlu0 %2645
          %2647 = vrot.lane.b32.xlu0 %v2625, 119
          %v2648 = vpop.permute.xlu0 %2647
          %2649 = vrot.lane.b32.xlu0 %v2626, 119
          %v2650 = vpop.permute.xlu0 %2649
          %v2651 = vsel %vm564, %v2636, %v2638
          %v2652 = vsel %vm564, %v2640, %v2642
          %v2653 = vsel %vm564, %v2644, %v2646
          %v2654 = vsel %vm564, %v2648, %v2650
          %v2663 = vadd.f32 %v2611, %v2636
          %v2664 = vadd.f32 %v2612, %v2651
          %v2665 = vadd.f32 %v2613, %v2640
          %v2666 = vadd.f32 %v2614, %v2652
          %v2667 = vadd.f32 %v2615, %v2644
          %v2668 = vadd.f32 %v2616, %v2653
          %v2669 = vadd.f32 %v2617, %v2648
          %v2670 = vadd.f32 %v2618, %v2654
          %2671 = vrot.lane.b32.xlu0 %v2619, 116
          %v2672 = vpop.permute.xlu0 %2671
          %2673 = vrot.lane.b32.xlu0 %v2620, 116
          %v2674 = vpop.permute.xlu0 %2673
          %2675 = vrot.lane.b32.xlu0 %v2621, 116
          %v2676 = vpop.permute.xlu0 %2675
          %2677 = vrot.lane.b32.xlu0 %v2622, 116
          %v2678 = vpop.permute.xlu0 %2677
          %2679 = vrot.lane.b32.xlu0 %v2623, 116
          %v2680 = vpop.permute.xlu0 %2679
          %2681 = vrot.lane.b32.xlu0 %v2624, 116
          %v2682 = vpop.permute.xlu0 %2681
          %2683 = vrot.lane.b32.xlu0 %v2625, 116
          %v2684 = vpop.permute.xlu0 %2683
          %2685 = vrot.lane.b32.xlu0 %v2626, 116
          %v2686 = vpop.permute.xlu0 %2685
          %v2687 = vsel %vm601, %v2672, %v2674
          %v2688 = vsel %vm601, %v2676, %v2678
          %v2689 = vsel %vm601, %v2680, %v2682
          %v2690 = vsel %vm601, %v2684, %v2686
          %v2699 = vadd.f32 %v2663, %v2672
          %v2700 = vadd.f32 %v2664, %v2687
          %v2701 = vadd.f32 %v2665, %v2676
          %v2702 = vadd.f32 %v2666, %v2688
          %v2703 = vadd.f32 %v2667, %v2680
          %v2704 = vadd.f32 %v2668, %v2689
          %v2705 = vadd.f32 %v2669, %v2684
          %v2706 = vadd.f32 %v2670, %v2690
          %2715 = vrot.lane.b32.xlu0 %v2699, 7
          %v2716 = vpop.permute.xlu0 %2715
          %2717 = vrot.lane.b32.xlu0 %v2700, 7
          %v2718 = vpop.permute.xlu0 %2717
          %2719 = vrot.lane.b32.xlu0 %v2701, 7
          %v2720 = vpop.permute.xlu0 %2719
          %2721 = vrot.lane.b32.xlu0 %v2702, 7
          %v2722 = vpop.permute.xlu0 %2721
          %2723 = vrot.lane.b32.xlu0 %v2703, 7
          %v2724 = vpop.permute.xlu0 %2723
          %2725 = vrot.lane.b32.xlu0 %v2704, 7
          %v2726 = vpop.permute.xlu0 %2725
          %2727 = vrot.lane.b32.xlu0 %v2705, 7
          %v2728 = vpop.permute.xlu0 %2727
          %2729 = vrot.lane.b32.xlu0 %v2706, 7
          %v2730 = vpop.permute.xlu0 %2729
          %v2731 = vsel %vm646, %v2716, %v2718
          %v2732 = vsel %vm646, %v2720, %v2722
          %v2733 = vsel %vm646, %v2724, %v2726
          %v2734 = vsel %vm646, %v2728, %v2730
          %2739 = vst [vmem:[#allocation4 + $0x8] sm:$0xff] %v2731
          %2740 = vst [vmem:[#allocation4 + $0x10] sm:$0xff] %v2732
          %2741 = vst [vmem:[#allocation4 + $0x18] sm:$0xff] %v2733
          %2742 = vst [vmem:[#allocation4 + $0x20] sm:$0xff] %v2734
          %v2743 = vld [vmem:[#allocation4 + $0x1] sm:$0xff]
          %v2744 = vld [vmem:[#allocation4 + $0x9] sm:$0xff]
          %v2745 = vld [vmem:[#allocation4 + $0x11] sm:$0xff]
          %v2746 = vld [vmem:[#allocation4 + $0x19] sm:$0xff]
          %v2747 = vld [vmem:[#allocation4 + $0x21] sm:$0xff]
          %v2748 = vld [vmem:[#allocation4 + $0x29] sm:$0xf]
          %v2749 = vld [vmem:[#allocation4 + $0x2] sm:$0xff]
          %v2750 = vld [vmem:[#allocation4 + $0xa] sm:$0xff]
          %v2751 = vld [vmem:[#allocation4 + $0x12] sm:$0xff]
          %v2752 = vld [vmem:[#allocation4 + $0x1a] sm:$0xff]
          %v2753 = vld [vmem:[#allocation4 + $0x22] sm:$0xff]
          %v2754 = vld [vmem:[#allocation4 + $0x2a] sm:$0xf]
          %v2755 = vadd.f32 %v2743, %v2749
          %v2756 = vadd.f32 %v2744, %v2750
          %v2757 = vadd.f32 %v2745, %v2751
          %v2758 = vadd.f32 %v2746, %v2752
          %v2759 = vadd.f32 %v2747, %v2753
          %v2760 = vadd.f32 %v2748, %v2754
          %v2761 = vld [vmem:[#allocation4 + $0x3] sm:$0xff]
          %v2762 = vld [vmem:[#allocation4 + $0xb] sm:$0xff]
          %v2763 = vld [vmem:[#allocation4 + $0x13] sm:$0xff]
          %v2764 = vld [vmem:[#allocation4 + $0x1b] sm:$0xff]
          %v2765 = vld [vmem:[#allocation4 + $0x23] sm:$0xff]
          %v2766 = vld [vmem:[#allocation4 + $0x2b] sm:$0xf]
          %v2767 = vadd.f32 %v2755, %v2761
          %v2768 = vadd.f32 %v2756, %v2762
          %v2769 = vadd.f32 %v2757, %v2763
          %v2770 = vadd.f32 %v2758, %v2764
          %v2771 = vadd.f32 %v2759, %v2765
          %v2772 = vadd.f32 %v2760, %v2766
          %2773 = vst [vmem:[#allocation5 + $0x1] sm:$0xff] %v2767
          %2774 = vst [vmem:[#allocation5 + $0x9] sm:$0xff] %v2768
          %2775 = vst [vmem:[#allocation5 + $0x11] sm:$0xff] %v2769
          %2776 = vst [vmem:[#allocation5 + $0x19] sm:$0xff] %v2770
          %2777 = vst [vmem:[#allocation5 + $0x21] sm:$0xff] %v2771
          %2778 = vst [vmem:[#allocation5 + $0x29] sm:$0xf] %v2772
          %v2779 = vld [vmem:[#allocation5 + $0x1] sm:$0xff]
          %v2780 = vld [vmem:[#allocation5 + $0x9] sm:$0xff]
          %v2781 = vld [vmem:[#allocation5 + $0x11] sm:$0xff]
          %v2782 = vld [vmem:[#allocation5 + $0x19] sm:$0xff]
          %v2783 = vld [vmem:[#allocation5 + $0x4] sm:$0xff]
          %v2784 = vld [vmem:[#allocation5 + $0xc] sm:$0xff]
          %v2785 = vld [vmem:[#allocation5 + $0x14] sm:$0xff]
          %v2786 = vld [vmem:[#allocation5 + $0x1c] sm:$0xff]
          %v2787 = vadd.f32 %v2779, %v2783
          %v2788 = vadd.f32 %v2780, %v2784
          %v2789 = vadd.f32 %v2781, %v2785
          %v2790 = vadd.f32 %v2782, %v2786
          %v2791 = vld [vmem:[#allocation5 + $0x7] sm:$0xff]
          %v2792 = vld [vmem:[#allocation5 + $0xf] sm:$0xff]
          %v2793 = vld [vmem:[#allocation5 + $0x17] sm:$0xff]
          %v2794 = vld [vmem:[#allocation5 + $0x1f] sm:$0xff]
          %v2795 = vadd.f32 %v2787, %v2791
          %v2796 = vadd.f32 %v2788, %v2792
          %v2797 = vadd.f32 %v2789, %v2793
          %v2798 = vadd.f32 %v2790, %v2794
          %v2799 = vld [vmem:[#allocation5 + $0xa] sm:$0xff]
          %v2800 = vld [vmem:[#allocation5 + $0x12] sm:$0xff]
          %v2801 = vld [vmem:[#allocation5 + $0x1a] sm:$0xff]
          %v2802 = vld [vmem:[#allocation5 + $0x22] sm:$0xff]
          %v2803 = vadd.f32 %v2795, %v2799
          %v2804 = vadd.f32 %v2796, %v2800
          %v2805 = vadd.f32 %v2797, %v2801
          %v2806 = vadd.f32 %v2798, %v2802
          %v2807 = vld [vmem:[#allocation5 + $0xd] sm:$0xff]
          %v2808 = vld [vmem:[#allocation5 + $0x15] sm:$0xff]
          %v2809 = vld [vmem:[#allocation5 + $0x1d] sm:$0xff]
          %v2810 = vld [vmem:[#allocation5 + $0x25] sm:$0xff]
          %v2811 = vadd.f32 %v2803, %v2807
          %v2812 = vadd.f32 %v2804, %v2808
          %v2813 = vadd.f32 %v2805, %v2809
          %v2814 = vadd.f32 %v2806, %v2810
          %v2815 = vld [vmem:[#allocation8] sm:$0xff]
          %v2816 = vld [vmem:[#allocation8 + $0x8] sm:$0xff]
          %v2817 = vld [vmem:[#allocation8 + $0x10] sm:$0xff]
          %v2818 = vld [vmem:[#allocation8 + $0x18] sm:$0xff]
          %vm2819 = vcmp.lt.f32.partialorder %v2811, %v2815
          %vm2820 = vcmp.lt.f32.partialorder %v2812, %v2816
          %vm2821 = vcmp.lt.f32.partialorder %v2813, %v2817
          %vm2822 = vcmp.lt.f32.partialorder %v2814, %v2818
          %v2823 = vsel %vm2819, %v2811, %v2815
          %v2824 = vsel %vm2820, %v2812, %v2816
          %v2825 = vsel %vm2821, %v2813, %v2817
          %v2826 = vsel %vm2822, %v2814, %v2818
          %2827 = vst [vmem:[#allocation8] sm:$0xff] %v2823
          %2828 = vst [vmem:[#allocation8 + $0x8] sm:$0xff] %v2824
          %2829 = vst [vmem:[#allocation8 + $0x10] sm:$0xff] %v2825
          %2830 = vst [vmem:[#allocation8 + $0x18] sm:$0xff] %v2826
          %v2831 = vld [vmem:[%s201] sm:$0xff]
          %v2832 = vld [vmem:[%s201 + $0x8] sm:$0xff]
          %v2833 = vld [vmem:[%s201 + $0x10] sm:$0xff]
          %v2834 = vld [vmem:[%s201 + $0x18] sm:$0xff]
          %v2835 = vstv %s2362
          %v2836 = vsel %vm2819, %v2835, %v2831
          %v2837 = vsel %vm2820, %v2835, %v2832
          %v2838 = vsel %vm2821, %v2835, %v2833
          %v2839 = vsel %vm2822, %v2835, %v2834
          %2840 = vst [vmem:[%s201] sm:$0xff] %v2836
          %2841 = vst [vmem:[%s201 + $0x8] sm:$0xff] %v2837
          %2842 = vst [vmem:[%s201 + $0x10] sm:$0xff] %v2838
          %2843 = vst [vmem:[%s201 + $0x18] sm:$0xff] %v2839
          %s2844 = sadd.s32 %s268, 5
          %v2845 = vld [vmem:[#allocation7] sm:$0xff]
          %v2846 = vld [vmem:[#allocation7 + $0x8] sm:$0xff]
          %v2847 = vld [vmem:[#allocation7 + $0x10] sm:$0xff]
          %v2848 = vld [vmem:[#allocation7 + $0x18] sm:$0xff]
          %v2849 = vld [vmem:[#allocation7 + $0x20] sm:$0xff]
          %v2850 = vld [vmem:[#allocation7 + $0x28] sm:$0xff]
          %v2851 = vld [vmem:[#allocation7 + $0x30] sm:$0xff]
          %v2852 = vld [vmem:[#allocation7 + $0x38] sm:$0xff]
          %v2853 = vld [vmem:[%s167] sm:$0xff]
          %v2854 = vld [vmem:[%s167 + $0x8] sm:$0xff]
          %v2855 = vld [vmem:[%s167 + $0x10] sm:$0xff]
          %v2856 = vld [vmem:[%s167 + $0x18] sm:$0xff]
          %2865 = vrot.lane.b32.xlu0 %v2845, 1
          %v2866 = vpop.permute.xlu0 %2865
          %2867 = vrot.lane.b32.xlu0 %v2846, 1
          %v2868 = vpop.permute.xlu0 %2867
          %2869 = vrot.lane.b32.xlu0 %v2847, 1
          %v2870 = vpop.permute.xlu0 %2869
          %2871 = vrot.lane.b32.xlu0 %v2848, 1
          %v2872 = vpop.permute.xlu0 %2871
          %2873 = vrot.lane.b32.xlu0 %v2849, 1
          %v2874 = vpop.permute.xlu0 %2873
          %2875 = vrot.lane.b32.xlu0 %v2850, 1
          %v2876 = vpop.permute.xlu0 %2875
          %2877 = vrot.lane.b32.xlu0 %v2851, 1
          %v2878 = vpop.permute.xlu0 %2877
          %2879 = vrot.lane.b32.xlu0 %v2852, 1
          %v2880 = vpop.permute.xlu0 %2879
          %v2881 = vsel %vm797, %v2866, %v2868
          %v2882 = vsel %vm797, %v2870, %v2872
          %v2883 = vsel %vm797, %v2874, %v2876
          %v2884 = vsel %vm797, %v2878, %v2880
          %v2889 = vsub.f32 %v2853, %v2881
          %v2890 = vsub.f32 %v2854, %v2882
          %v2891 = vsub.f32 %v2855, %v2883
          %v2892 = vsub.f32 %v2856, %v2884
          %v2893 = vand.u32 2147483647, %v2889
          %v2894 = vand.u32 2147483647, %v2890
          %v2895 = vand.u32 2147483647, %v2891
          %v2896 = vand.u32 2147483647, %v2892
          %2897 = vst.msk [vmem:[#allocation2 + $0x8] sm:$0xff] %vm285, %v2893
          %2898 = vst.msk [vmem:[#allocation2 + $0x20] sm:$0xff] %vm285, %v2894
          %2899 = vst.msk [vmem:[#allocation2 + $0x38] sm:$0xff] %vm285, %v2895
          %2900 = vst.msk [vmem:[#allocation2 + $0x50] sm:$0xff] %vm285, %v2896
          %v2901 = vld [vmem:[#allocation2] sm:$0xff]
          %v2902 = vld [vmem:[#allocation2 + $0x8] sm:$0xff]
          %v2903 = vld [vmem:[#allocation2 + $0x10] sm:$0xff]
          %v2904 = vld [vmem:[#allocation2 + $0x18] sm:$0xff]
          %v2905 = vld [vmem:[#allocation2 + $0x20] sm:$0xff]
          %v2906 = vld [vmem:[#allocation2 + $0x28] sm:$0xff]
          %v2907 = vld [vmem:[#allocation2 + $0x30] sm:$0xff]
          %v2908 = vld [vmem:[#allocation2 + $0x38] sm:$0xff]
          %v2909 = vld [vmem:[#allocation2 + $0x40] sm:$0xff]
          %v2910 = vld [vmem:[#allocation2 + $0x48] sm:$0xff]
          %v2911 = vld [vmem:[#allocation2 + $0x50] sm:$0xff]
          %v2912 = vld [vmem:[#allocation2 + $0x58] sm:$0xff]
          %2925 = vrot.lane.b32.xlu0 %v2901, 127
          %v2926 = vpop.permute.xlu0 %2925
          %2927 = vrot.lane.b32.xlu0 %v2902, 127
          %v2928 = vpop.permute.xlu0 %2927
          %2929 = vrot.lane.b32.xlu0 %v2903, 127
          %v2930 = vpop.permute.xlu0 %2929
          %2931 = vrot.lane.b32.xlu0 %v2904, 127
          %v2932 = vpop.permute.xlu0 %2931
          %2933 = vrot.lane.b32.xlu0 %v2905, 127
          %v2934 = vpop.permute.xlu0 %2933
          %2935 = vrot.lane.b32.xlu0 %v2906, 127
          %v2936 = vpop.permute.xlu0 %2935
          %2937 = vrot.lane.b32.xlu0 %v2907, 127
          %v2938 = vpop.permute.xlu0 %2937
          %2939 = vrot.lane.b32.xlu0 %v2908, 127
          %v2940 = vpop.permute.xlu0 %2939
          %2941 = vrot.lane.b32.xlu0 %v2909, 127
          %v2942 = vpop.permute.xlu0 %2941
          %2943 = vrot.lane.b32.xlu0 %v2910, 127
          %v2944 = vpop.permute.xlu0 %2943
          %2945 = vrot.lane.b32.xlu0 %v2911, 127
          %v2946 = vpop.permute.xlu0 %2945
          %2947 = vrot.lane.b32.xlu0 %v2912, 127
          %v2948 = vpop.permute.xlu0 %2947
          %v2949 = vsel %vm338, %v2926, %v2928
          %v2950 = vsel %vm338, %v2928, %v2930
          %v2951 = vsel %vm338, %v2932, %v2934
          %v2952 = vsel %vm338, %v2934, %v2936
          %v2953 = vsel %vm338, %v2938, %v2940
          %v2954 = vsel %vm338, %v2940, %v2942
          %v2955 = vsel %vm338, %v2944, %v2946
          %v2956 = vsel %vm338, %v2946, %v2948
          %v2969 = vadd.f32 %v2901, %v2949
          %v2970 = vadd.f32 %v2902, %v2950
          %v2971 = vadd.f32 %v2903, %v2930
          %v2972 = vadd.f32 %v2904, %v2951
          %v2973 = vadd.f32 %v2905, %v2952
          %v2974 = vadd.f32 %v2906, %v2936
          %v2975 = vadd.f32 %v2907, %v2953
          %v2976 = vadd.f32 %v2908, %v2954
          %v2977 = vadd.f32 %v2909, %v2942
          %v2978 = vadd.f32 %v2910, %v2955
          %v2979 = vadd.f32 %v2911, %v2956
          %v2980 = vadd.f32 %v2912, %v2948
          %2981 = vrot.lane.b32.xlu0 %v2901, 126
          %v2982 = vpop.permute.xlu0 %2981
          %2983 = vrot.lane.b32.xlu0 %v2902, 126
          %v2984 = vpop.permute.xlu0 %2983
          %2985 = vrot.lane.b32.xlu0 %v2903, 126
          %v2986 = vpop.permute.xlu0 %2985
          %2987 = vrot.lane.b32.xlu0 %v2904, 126
          %v2988 = vpop.permute.xlu0 %2987
          %2989 = vrot.lane.b32.xlu0 %v2905, 126
          %v2990 = vpop.permute.xlu0 %2989
          %2991 = vrot.lane.b32.xlu0 %v2906, 126
          %v2992 = vpop.permute.xlu0 %2991
          %2993 = vrot.lane.b32.xlu0 %v2907, 126
          %v2994 = vpop.permute.xlu0 %2993
          %2995 = vrot.lane.b32.xlu0 %v2908, 126
          %v2996 = vpop.permute.xlu0 %2995
          %2997 = vrot.lane.b32.xlu0 %v2909, 126
          %v2998 = vpop.permute.xlu0 %2997
          %2999 = vrot.lane.b32.xlu0 %v2910, 126
          %v3000 = vpop.permute.xlu0 %2999
          %3001 = vrot.lane.b32.xlu0 %v2911, 126
          %v3002 = vpop.permute.xlu0 %3001
          %3003 = vrot.lane.b32.xlu0 %v2912, 126
          %v3004 = vpop.permute.xlu0 %3003
          %v3005 = vsel %vm395, %v2982, %v2984
          %v3006 = vsel %vm395, %v2984, %v2986
          %v3007 = vsel %vm395, %v2988, %v2990
          %v3008 = vsel %vm395, %v2990, %v2992
          %v3009 = vsel %vm395, %v2994, %v2996
          %v3010 = vsel %vm395, %v2996, %v2998
          %v3011 = vsel %vm395, %v3000, %v3002
          %v3012 = vsel %vm395, %v3002, %v3004
          %v3025 = vadd.f32 %v2969, %v3005
          %v3026 = vadd.f32 %v2970, %v3006
          %v3027 = vadd.f32 %v2971, %v2986
          %v3028 = vadd.f32 %v2972, %v3007
          %v3029 = vadd.f32 %v2973, %v3008
          %v3030 = vadd.f32 %v2974, %v2992
          %v3031 = vadd.f32 %v2975, %v3009
          %v3032 = vadd.f32 %v2976, %v3010
          %v3033 = vadd.f32 %v2977, %v2998
          %v3034 = vadd.f32 %v2978, %v3011
          %v3035 = vadd.f32 %v2979, %v3012
          %v3036 = vadd.f32 %v2980, %v3004
          %3037 = vst.msk [vmem:[#allocation3] sm:$0xff] %vm428, %v3025
          %3038 = vst [vmem:[#allocation3 + $0x8] sm:$0xff] %v3026
          %3039 = vst.msk [vmem:[#allocation3 + $0x10] sm:$0xff] %vm431, %v3027
          %3040 = vst.msk [vmem:[#allocation3 + $0x18] sm:$0xff] %vm428, %v3028
          %3041 = vst [vmem:[#allocation3 + $0x20] sm:$0xff] %v3029
          %3042 = vst.msk [vmem:[#allocation3 + $0x28] sm:$0xff] %vm431, %v3030
          %3043 = vst.msk [vmem:[#allocation3 + $0x30] sm:$0xff] %vm428, %v3031
          %3044 = vst [vmem:[#allocation3 + $0x38] sm:$0xff] %v3032
          %3045 = vst.msk [vmem:[#allocation3 + $0x40] sm:$0xff] %vm431, %v3033
          %3046 = vst.msk [vmem:[#allocation3 + $0x48] sm:$0xff] %vm428, %v3034
          %3047 = vst [vmem:[#allocation3 + $0x50] sm:$0xff] %v3035
          %3048 = vst.msk [vmem:[#allocation3 + $0x58] sm:$0xff] %vm431, %v3036
          %v3049 = vld [vmem:[#allocation3] sm:$0xff]
          %v3050 = vld [vmem:[#allocation3 + $0x8] sm:$0xff]
          %v3051 = vld [vmem:[#allocation3 + $0x18] sm:$0xff]
          %v3052 = vld [vmem:[#allocation3 + $0x20] sm:$0xff]
          %v3053 = vld [vmem:[#allocation3 + $0x30] sm:$0xff]
          %v3054 = vld [vmem:[#allocation3 + $0x38] sm:$0xff]
          %v3055 = vld [vmem:[#allocation3 + $0x48] sm:$0xff]
          %v3056 = vld [vmem:[#allocation3 + $0x50] sm:$0xff]
          %3065 = vrot.lane.b32.xlu0 %v3049, 125
          %v3066 = vpop.permute.xlu0 %3065
          %3067 = vrot.lane.b32.xlu0 %v3050, 125
          %v3068 = vpop.permute.xlu0 %3067
          %3069 = vrot.lane.b32.xlu0 %v3051, 125
          %v3070 = vpop.permute.xlu0 %3069
          %3071 = vrot.lane.b32.xlu0 %v3052, 125
          %v3072 = vpop.permute.xlu0 %3071
          %3073 = vrot.lane.b32.xlu0 %v3053, 125
          %v3074 = vpop.permute.xlu0 %3073
          %3075 = vrot.lane.b32.xlu0 %v3054, 125
          %v3076 = vpop.permute.xlu0 %3075
          %3077 = vrot.lane.b32.xlu0 %v3055, 125
          %v3078 = vpop.permute.xlu0 %3077
          %3079 = vrot.lane.b32.xlu0 %v3056, 125
          %v3080 = vpop.permute.xlu0 %3079
          %v3081 = vsel %vm474, %v3066, %v3068
          %v3082 = vsel %vm474, %v3070, %v3072
          %v3083 = vsel %vm474, %v3074, %v3076
          %v3084 = vsel %vm474, %v3078, %v3080
          %v3093 = vadd.f32 %v3049, %v3081
          %v3094 = vadd.f32 %v3050, %v3068
          %v3095 = vadd.f32 %v3051, %v3082
          %v3096 = vadd.f32 %v3052, %v3072
          %v3097 = vadd.f32 %v3053, %v3083
          %v3098 = vadd.f32 %v3054, %v3076
          %v3099 = vadd.f32 %v3055, %v3084
          %v3100 = vadd.f32 %v3056, %v3080
          %3101 = vrot.lane.b32.xlu0 %v3049, 122
          %v3102 = vpop.permute.xlu0 %3101
          %3103 = vrot.lane.b32.xlu0 %v3050, 122
          %v3104 = vpop.permute.xlu0 %3103
          %3105 = vrot.lane.b32.xlu0 %v3051, 122
          %v3106 = vpop.permute.xlu0 %3105
          %3107 = vrot.lane.b32.xlu0 %v3052, 122
          %v3108 = vpop.permute.xlu0 %3107
          %3109 = vrot.lane.b32.xlu0 %v3053, 122
          %v3110 = vpop.permute.xlu0 %3109
          %3111 = vrot.lane.b32.xlu0 %v3054, 122
          %v3112 = vpop.permute.xlu0 %3111
          %3113 = vrot.lane.b32.xlu0 %v3055, 122
          %v3114 = vpop.permute.xlu0 %3113
          %3115 = vrot.lane.b32.xlu0 %v3056, 122
          %v3116 = vpop.permute.xlu0 %3115
          %v3117 = vsel %vm511, %v3102, %v3104
          %v3118 = vsel %vm511, %v3106, %v3108
          %v3119 = vsel %vm511, %v3110, %v3112
          %v3120 = vsel %vm511, %v3114, %v3116
          %v3129 = vadd.f32 %v3093, %v3117
          %v3130 = vadd.f32 %v3094, %v3104
          %v3131 = vadd.f32 %v3095, %v3118
          %v3132 = vadd.f32 %v3096, %v3108
          %v3133 = vadd.f32 %v3097, %v3119
          %v3134 = vadd.f32 %v3098, %v3112
          %v3135 = vadd.f32 %v3099, %v3120
          %v3136 = vadd.f32 %v3100, %v3116
          %v3137 = vld [vmem:[#allocation3 + $0x8] sm:$0xff]
          %v3138 = vld [vmem:[#allocation3 + $0x10] sm:$0xff]
          %v3139 = vld [vmem:[#allocation3 + $0x20] sm:$0xff]
          %v3140 = vld [vmem:[#allocation3 + $0x28] sm:$0xff]
          %v3141 = vld [vmem:[#allocation3 + $0x38] sm:$0xff]
          %v3142 = vld [vmem:[#allocation3 + $0x40] sm:$0xff]
          %v3143 = vld [vmem:[#allocation3 + $0x50] sm:$0xff]
          %v3144 = vld [vmem:[#allocation3 + $0x58] sm:$0xff]
          %3153 = vrot.lane.b32.xlu0 %v3137, 119
          %v3154 = vpop.permute.xlu0 %3153
          %3155 = vrot.lane.b32.xlu0 %v3138, 119
          %v3156 = vpop.permute.xlu0 %3155
          %3157 = vrot.lane.b32.xlu0 %v3139, 119
          %v3158 = vpop.permute.xlu0 %3157
          %3159 = vrot.lane.b32.xlu0 %v3140, 119
          %v3160 = vpop.permute.xlu0 %3159
          %3161 = vrot.lane.b32.xlu0 %v3141, 119
          %v3162 = vpop.permute.xlu0 %3161
          %3163 = vrot.lane.b32.xlu0 %v3142, 119
          %v3164 = vpop.permute.xlu0 %3163
          %3165 = vrot.lane.b32.xlu0 %v3143, 119
          %v3166 = vpop.permute.xlu0 %3165
          %3167 = vrot.lane.b32.xlu0 %v3144, 119
          %v3168 = vpop.permute.xlu0 %3167
          %v3169 = vsel %vm564, %v3154, %v3156
          %v3170 = vsel %vm564, %v3158, %v3160
          %v3171 = vsel %vm564, %v3162, %v3164
          %v3172 = vsel %vm564, %v3166, %v3168
          %v3181 = vadd.f32 %v3129, %v3154
          %v3182 = vadd.f32 %v3130, %v3169
          %v3183 = vadd.f32 %v3131, %v3158
          %v3184 = vadd.f32 %v3132, %v3170
          %v3185 = vadd.f32 %v3133, %v3162
          %v3186 = vadd.f32 %v3134, %v3171
          %v3187 = vadd.f32 %v3135, %v3166
          %v3188 = vadd.f32 %v3136, %v3172
          %3189 = vrot.lane.b32.xlu0 %v3137, 116
          %v3190 = vpop.permute.xlu0 %3189
          %3191 = vrot.lane.b32.xlu0 %v3138, 116
          %v3192 = vpop.permute.xlu0 %3191
          %3193 = vrot.lane.b32.xlu0 %v3139, 116
          %v3194 = vpop.permute.xlu0 %3193
          %3195 = vrot.lane.b32.xlu0 %v3140, 116
          %v3196 = vpop.permute.xlu0 %3195
          %3197 = vrot.lane.b32.xlu0 %v3141, 116
          %v3198 = vpop.permute.xlu0 %3197
          %3199 = vrot.lane.b32.xlu0 %v3142, 116
          %v3200 = vpop.permute.xlu0 %3199
          %3201 = vrot.lane.b32.xlu0 %v3143, 116
          %v3202 = vpop.permute.xlu0 %3201
          %3203 = vrot.lane.b32.xlu0 %v3144, 116
          %v3204 = vpop.permute.xlu0 %3203
          %v3205 = vsel %vm601, %v3190, %v3192
          %v3206 = vsel %vm601, %v3194, %v3196
          %v3207 = vsel %vm601, %v3198, %v3200
          %v3208 = vsel %vm601, %v3202, %v3204
          %v3217 = vadd.f32 %v3181, %v3190
          %v3218 = vadd.f32 %v3182, %v3205
          %v3219 = vadd.f32 %v3183, %v3194
          %v3220 = vadd.f32 %v3184, %v3206
          %v3221 = vadd.f32 %v3185, %v3198
          %v3222 = vadd.f32 %v3186, %v3207
          %v3223 = vadd.f32 %v3187, %v3202
          %v3224 = vadd.f32 %v3188, %v3208
          %3233 = vrot.lane.b32.xlu0 %v3217, 7
          %v3234 = vpop.permute.xlu0 %3233
          %3235 = vrot.lane.b32.xlu0 %v3218, 7
          %v3236 = vpop.permute.xlu0 %3235
          %3237 = vrot.lane.b32.xlu0 %v3219, 7
          %v3238 = vpop.permute.xlu0 %3237
          %3239 = vrot.lane.b32.xlu0 %v3220, 7
          %v3240 = vpop.permute.xlu0 %3239
          %3241 = vrot.lane.b32.xlu0 %v3221, 7
          %v3242 = vpop.permute.xlu0 %3241
          %3243 = vrot.lane.b32.xlu0 %v3222, 7
          %v3244 = vpop.permute.xlu0 %3243
          %3245 = vrot.lane.b32.xlu0 %v3223, 7
          %v3246 = vpop.permute.xlu0 %3245
          %3247 = vrot.lane.b32.xlu0 %v3224, 7
          %v3248 = vpop.permute.xlu0 %3247
          %v3249 = vsel %vm646, %v3234, %v3236
          %v3250 = vsel %vm646, %v3238, %v3240
          %v3251 = vsel %vm646, %v3242, %v3244
          %v3252 = vsel %vm646, %v3246, %v3248
          %3257 = vst [vmem:[#allocation4 + $0x8] sm:$0xff] %v3249
          %3258 = vst [vmem:[#allocation4 + $0x10] sm:$0xff] %v3250
          %3259 = vst [vmem:[#allocation4 + $0x18] sm:$0xff] %v3251
          %3260 = vst [vmem:[#allocation4 + $0x20] sm:$0xff] %v3252
          %v3261 = vld [vmem:[#allocation4 + $0x1] sm:$0xff]
          %v3262 = vld [vmem:[#allocation4 + $0x9] sm:$0xff]
          %v3263 = vld [vmem:[#allocation4 + $0x11] sm:$0xff]
          %v3264 = vld [vmem:[#allocation4 + $0x19] sm:$0xff]
          %v3265 = vld [vmem:[#allocation4 + $0x21] sm:$0xff]
          %v3266 = vld [vmem:[#allocation4 + $0x29] sm:$0xf]
          %v3267 = vld [vmem:[#allocation4 + $0x2] sm:$0xff]
          %v3268 = vld [vmem:[#allocation4 + $0xa] sm:$0xff]
          %v3269 = vld [vmem:[#allocation4 + $0x12] sm:$0xff]
          %v3270 = vld [vmem:[#allocation4 + $0x1a] sm:$0xff]
          %v3271 = vld [vmem:[#allocation4 + $0x22] sm:$0xff]
          %v3272 = vld [vmem:[#allocation4 + $0x2a] sm:$0xf]
          %v3273 = vadd.f32 %v3261, %v3267
          %v3274 = vadd.f32 %v3262, %v3268
          %v3275 = vadd.f32 %v3263, %v3269
          %v3276 = vadd.f32 %v3264, %v3270
          %v3277 = vadd.f32 %v3265, %v3271
          %v3278 = vadd.f32 %v3266, %v3272
          %v3279 = vld [vmem:[#allocation4 + $0x3] sm:$0xff]
          %v3280 = vld [vmem:[#allocation4 + $0xb] sm:$0xff]
          %v3281 = vld [vmem:[#allocation4 + $0x13] sm:$0xff]
          %v3282 = vld [vmem:[#allocation4 + $0x1b] sm:$0xff]
          %v3283 = vld [vmem:[#allocation4 + $0x23] sm:$0xff]
          %v3284 = vld [vmem:[#allocation4 + $0x2b] sm:$0xf]
          %v3285 = vadd.f32 %v3273, %v3279
          %v3286 = vadd.f32 %v3274, %v3280
          %v3287 = vadd.f32 %v3275, %v3281
          %v3288 = vadd.f32 %v3276, %v3282
          %v3289 = vadd.f32 %v3277, %v3283
          %v3290 = vadd.f32 %v3278, %v3284
          %3291 = vst [vmem:[#allocation5 + $0x1] sm:$0xff] %v3285
          %3292 = vst [vmem:[#allocation5 + $0x9] sm:$0xff] %v3286
          %3293 = vst [vmem:[#allocation5 + $0x11] sm:$0xff] %v3287
          %3294 = vst [vmem:[#allocation5 + $0x19] sm:$0xff] %v3288
          %3295 = vst [vmem:[#allocation5 + $0x21] sm:$0xff] %v3289
          %3296 = vst [vmem:[#allocation5 + $0x29] sm:$0xf] %v3290
          %v3297 = vld [vmem:[#allocation5 + $0x1] sm:$0xff]
          %v3298 = vld [vmem:[#allocation5 + $0x9] sm:$0xff]
          %v3299 = vld [vmem:[#allocation5 + $0x11] sm:$0xff]
          %v3300 = vld [vmem:[#allocation5 + $0x19] sm:$0xff]
          %v3301 = vld [vmem:[#allocation5 + $0x4] sm:$0xff]
          %v3302 = vld [vmem:[#allocation5 + $0xc] sm:$0xff]
          %v3303 = vld [vmem:[#allocation5 + $0x14] sm:$0xff]
          %v3304 = vld [vmem:[#allocation5 + $0x1c] sm:$0xff]
          %v3305 = vadd.f32 %v3297, %v3301
          %v3306 = vadd.f32 %v3298, %v3302
          %v3307 = vadd.f32 %v3299, %v3303
          %v3308 = vadd.f32 %v3300, %v3304
          %v3309 = vld [vmem:[#allocation5 + $0x7] sm:$0xff]
          %v3310 = vld [vmem:[#allocation5 + $0xf] sm:$0xff]
          %v3311 = vld [vmem:[#allocation5 + $0x17] sm:$0xff]
          %v3312 = vld [vmem:[#allocation5 + $0x1f] sm:$0xff]
          %v3313 = vadd.f32 %v3305, %v3309
          %v3314 = vadd.f32 %v3306, %v3310
          %v3315 = vadd.f32 %v3307, %v3311
          %v3316 = vadd.f32 %v3308, %v3312
          %v3317 = vld [vmem:[#allocation5 + $0xa] sm:$0xff]
          %v3318 = vld [vmem:[#allocation5 + $0x12] sm:$0xff]
          %v3319 = vld [vmem:[#allocation5 + $0x1a] sm:$0xff]
          %v3320 = vld [vmem:[#allocation5 + $0x22] sm:$0xff]
          %v3321 = vadd.f32 %v3313, %v3317
          %v3322 = vadd.f32 %v3314, %v3318
          %v3323 = vadd.f32 %v3315, %v3319
          %v3324 = vadd.f32 %v3316, %v3320
          %v3325 = vld [vmem:[#allocation5 + $0xd] sm:$0xff]
          %v3326 = vld [vmem:[#allocation5 + $0x15] sm:$0xff]
          %v3327 = vld [vmem:[#allocation5 + $0x1d] sm:$0xff]
          %v3328 = vld [vmem:[#allocation5 + $0x25] sm:$0xff]
          %v3329 = vadd.f32 %v3321, %v3325
          %v3330 = vadd.f32 %v3322, %v3326
          %v3331 = vadd.f32 %v3323, %v3327
          %v3332 = vadd.f32 %v3324, %v3328
          %v3333 = vld [vmem:[#allocation8] sm:$0xff]
          %v3334 = vld [vmem:[#allocation8 + $0x8] sm:$0xff]
          %v3335 = vld [vmem:[#allocation8 + $0x10] sm:$0xff]
          %v3336 = vld [vmem:[#allocation8 + $0x18] sm:$0xff]
          %vm3337 = vcmp.lt.f32.partialorder %v3329, %v3333
          %vm3338 = vcmp.lt.f32.partialorder %v3330, %v3334
          %vm3339 = vcmp.lt.f32.partialorder %v3331, %v3335
          %vm3340 = vcmp.lt.f32.partialorder %v3332, %v3336
          %v3341 = vsel %vm3337, %v3329, %v3333
          %v3342 = vsel %vm3338, %v3330, %v3334
          %v3343 = vsel %vm3339, %v3331, %v3335
          %v3344 = vsel %vm3340, %v3332, %v3336
          %3345 = vst [vmem:[#allocation8] sm:$0xff] %v3341
          %3346 = vst [vmem:[#allocation8 + $0x8] sm:$0xff] %v3342
          %3347 = vst [vmem:[#allocation8 + $0x10] sm:$0xff] %v3343
          %3348 = vst [vmem:[#allocation8 + $0x18] sm:$0xff] %v3344
          %v3349 = vld [vmem:[%s201] sm:$0xff]
          %v3350 = vld [vmem:[%s201 + $0x8] sm:$0xff]
          %v3351 = vld [vmem:[%s201 + $0x10] sm:$0xff]
          %v3352 = vld [vmem:[%s201 + $0x18] sm:$0xff]
          %v3353 = vstv %s2844
          %v3354 = vsel %vm3337, %v3353, %v3349
          %v3355 = vsel %vm3338, %v3353, %v3350
          %v3356 = vsel %vm3339, %v3353, %v3351
          %v3357 = vsel %vm3340, %v3353, %v3352
          %3358 = vst [vmem:[%s201] sm:$0xff] %v3354
          %3359 = vst [vmem:[%s201 + $0x8] sm:$0xff] %v3355
          %3360 = vst [vmem:[%s201 + $0x10] sm:$0xff] %v3356
          %3361 = vst [vmem:[%s201 + $0x18] sm:$0xff] %v3357
          %s3362 = sadd.s32 %s268, 6
          %v3363 = vld [vmem:[#allocation7] sm:$0xff]
          %v3364 = vld [vmem:[#allocation7 + $0x8] sm:$0xff]
          %v3365 = vld [vmem:[#allocation7 + $0x10] sm:$0xff]
          %v3366 = vld [vmem:[#allocation7 + $0x18] sm:$0xff]
          %v3367 = vld [vmem:[#allocation7 + $0x20] sm:$0xff]
          %v3368 = vld [vmem:[#allocation7 + $0x28] sm:$0xff]
          %v3369 = vld [vmem:[#allocation7 + $0x30] sm:$0xff]
          %v3370 = vld [vmem:[#allocation7 + $0x38] sm:$0xff]
          %v3371 = vld [vmem:[%s167] sm:$0xff]
          %v3372 = vld [vmem:[%s167 + $0x8] sm:$0xff]
          %v3373 = vld [vmem:[%s167 + $0x10] sm:$0xff]
          %v3374 = vld [vmem:[%s167 + $0x18] sm:$0xff]
          %3383 = vrot.lane.b32.xlu0 %v3363, 2
          %v3384 = vpop.permute.xlu0 %3383
          %3385 = vrot.lane.b32.xlu0 %v3364, 2
          %v3386 = vpop.permute.xlu0 %3385
          %3387 = vrot.lane.b32.xlu0 %v3365, 2
          %v3388 = vpop.permute.xlu0 %3387
          %3389 = vrot.lane.b32.xlu0 %v3366, 2
          %v3390 = vpop.permute.xlu0 %3389
          %3391 = vrot.lane.b32.xlu0 %v3367, 2
          %v3392 = vpop.permute.xlu0 %3391
          %3393 = vrot.lane.b32.xlu0 %v3368, 2
          %v3394 = vpop.permute.xlu0 %3393
          %3395 = vrot.lane.b32.xlu0 %v3369, 2
          %v3396 = vpop.permute.xlu0 %3395
          %3397 = vrot.lane.b32.xlu0 %v3370, 2
          %v3398 = vpop.permute.xlu0 %3397
          %v3399 = vsel %vm1316, %v3384, %v3386
          %v3400 = vsel %vm1316, %v3388, %v3390
          %v3401 = vsel %vm1316, %v3392, %v3394
          %v3402 = vsel %vm1316, %v3396, %v3398
          %v3407 = vsub.f32 %v3371, %v3399
          %v3408 = vsub.f32 %v3372, %v3400
          %v3409 = vsub.f32 %v3373, %v3401
          %v3410 = vsub.f32 %v3374, %v3402
          %v3411 = vand.u32 2147483647, %v3407
          %v3412 = vand.u32 2147483647, %v3408
          %v3413 = vand.u32 2147483647, %v3409
          %v3414 = vand.u32 2147483647, %v3410
          %3415 = vst.msk [vmem:[#allocation2 + $0x8] sm:$0xff] %vm285, %v3411
          %3416 = vst.msk [vmem:[#allocation2 + $0x20] sm:$0xff] %vm285, %v3412
          %3417 = vst.msk [vmem:[#allocation2 + $0x38] sm:$0xff] %vm285, %v3413
          %3418 = vst.msk [vmem:[#allocation2 + $0x50] sm:$0xff] %vm285, %v3414
          %v3419 = vld [vmem:[#allocation2] sm:$0xff]
          %v3420 = vld [vmem:[#allocation2 + $0x8] sm:$0xff]
          %v3421 = vld [vmem:[#allocation2 + $0x10] sm:$0xff]
          %v3422 = vld [vmem:[#allocation2 + $0x18] sm:$0xff]
          %v3423 = vld [vmem:[#allocation2 + $0x20] sm:$0xff]
          %v3424 = vld [vmem:[#allocation2 + $0x28] sm:$0xff]
          %v3425 = vld [vmem:[#allocation2 + $0x30] sm:$0xff]
          %v3426 = vld [vmem:[#allocation2 + $0x38] sm:$0xff]
          %v3427 = vld [vmem:[#allocation2 + $0x40] sm:$0xff]
          %v3428 = vld [vmem:[#allocation2 + $0x48] sm:$0xff]
          %v3429 = vld [vmem:[#allocation2 + $0x50] sm:$0xff]
          %v3430 = vld [vmem:[#allocation2 + $0x58] sm:$0xff]
          %3443 = vrot.lane.b32.xlu0 %v3419, 127
          %v3444 = vpop.permute.xlu0 %3443
          %3445 = vrot.lane.b32.xlu0 %v3420, 127
          %v3446 = vpop.permute.xlu0 %3445
          %3447 = vrot.lane.b32.xlu0 %v3421, 127
          %v3448 = vpop.permute.xlu0 %3447
          %3449 = vrot.lane.b32.xlu0 %v3422, 127
          %v3450 = vpop.permute.xlu0 %3449
          %3451 = vrot.lane.b32.xlu0 %v3423, 127
          %v3452 = vpop.permute.xlu0 %3451
          %3453 = vrot.lane.b32.xlu0 %v3424, 127
          %v3454 = vpop.permute.xlu0 %3453
          %3455 = vrot.lane.b32.xlu0 %v3425, 127
          %v3456 = vpop.permute.xlu0 %3455
          %3457 = vrot.lane.b32.xlu0 %v3426, 127
          %v3458 = vpop.permute.xlu0 %3457
          %3459 = vrot.lane.b32.xlu0 %v3427, 127
          %v3460 = vpop.permute.xlu0 %3459
          %3461 = vrot.lane.b32.xlu0 %v3428, 127
          %v3462 = vpop.permute.xlu0 %3461
          %3463 = vrot.lane.b32.xlu0 %v3429, 127
          %v3464 = vpop.permute.xlu0 %3463
          %3465 = vrot.lane.b32.xlu0 %v3430, 127
          %v3466 = vpop.permute.xlu0 %3465
          %v3467 = vsel %vm338, %v3444, %v3446
          %v3468 = vsel %vm338, %v3446, %v3448
          %v3469 = vsel %vm338, %v3450, %v3452
          %v3470 = vsel %vm338, %v3452, %v3454
          %v3471 = vsel %vm338, %v3456, %v3458
          %v3472 = vsel %vm338, %v3458, %v3460
          %v3473 = vsel %vm338, %v3462, %v3464
          %v3474 = vsel %vm338, %v3464, %v3466
          %v3487 = vadd.f32 %v3419, %v3467
          %v3488 = vadd.f32 %v3420, %v3468
          %v3489 = vadd.f32 %v3421, %v3448
          %v3490 = vadd.f32 %v3422, %v3469
          %v3491 = vadd.f32 %v3423, %v3470
          %v3492 = vadd.f32 %v3424, %v3454
          %v3493 = vadd.f32 %v3425, %v3471
          %v3494 = vadd.f32 %v3426, %v3472
          %v3495 = vadd.f32 %v3427, %v3460
          %v3496 = vadd.f32 %v3428, %v3473
          %v3497 = vadd.f32 %v3429, %v3474
          %v3498 = vadd.f32 %v3430, %v3466
          %3499 = vrot.lane.b32.xlu0 %v3419, 126
          %v3500 = vpop.permute.xlu0 %3499
          %3501 = vrot.lane.b32.xlu0 %v3420, 126
          %v3502 = vpop.permute.xlu0 %3501
          %3503 = vrot.lane.b32.xlu0 %v3421, 126
          %v3504 = vpop.permute.xlu0 %3503
          %3505 = vrot.lane.b32.xlu0 %v3422, 126
          %v3506 = vpop.permute.xlu0 %3505
          %3507 = vrot.lane.b32.xlu0 %v3423, 126
          %v3508 = vpop.permute.xlu0 %3507
          %3509 = vrot.lane.b32.xlu0 %v3424, 126
          %v3510 = vpop.permute.xlu0 %3509
          %3511 = vrot.lane.b32.xlu0 %v3425, 126
          %v3512 = vpop.permute.xlu0 %3511
          %3513 = vrot.lane.b32.xlu0 %v3426, 126
          %v3514 = vpop.permute.xlu0 %3513
          %3515 = vrot.lane.b32.xlu0 %v3427, 126
          %v3516 = vpop.permute.xlu0 %3515
          %3517 = vrot.lane.b32.xlu0 %v3428, 126
          %v3518 = vpop.permute.xlu0 %3517
          %3519 = vrot.lane.b32.xlu0 %v3429, 126
          %v3520 = vpop.permute.xlu0 %3519
          %3521 = vrot.lane.b32.xlu0 %v3430, 126
          %v3522 = vpop.permute.xlu0 %3521
          %v3523 = vsel %vm395, %v3500, %v3502
          %v3524 = vsel %vm395, %v3502, %v3504
          %v3525 = vsel %vm395, %v3506, %v3508
          %v3526 = vsel %vm395, %v3508, %v3510
          %v3527 = vsel %vm395, %v3512, %v3514
          %v3528 = vsel %vm395, %v3514, %v3516
          %v3529 = vsel %vm395, %v3518, %v3520
          %v3530 = vsel %vm395, %v3520, %v3522
          %v3543 = vadd.f32 %v3487, %v3523
          %v3544 = vadd.f32 %v3488, %v3524
          %v3545 = vadd.f32 %v3489, %v3504
          %v3546 = vadd.f32 %v3490, %v3525
          %v3547 = vadd.f32 %v3491, %v3526
          %v3548 = vadd.f32 %v3492, %v3510
          %v3549 = vadd.f32 %v3493, %v3527
          %v3550 = vadd.f32 %v3494, %v3528
          %v3551 = vadd.f32 %v3495, %v3516
          %v3552 = vadd.f32 %v3496, %v3529
          %v3553 = vadd.f32 %v3497, %v3530
          %v3554 = vadd.f32 %v3498, %v3522
          %3555 = vst.msk [vmem:[#allocation3] sm:$0xff] %vm428, %v3543
          %3556 = vst [vmem:[#allocation3 + $0x8] sm:$0xff] %v3544
          %3557 = vst.msk [vmem:[#allocation3 + $0x10] sm:$0xff] %vm431, %v3545
          %3558 = vst.msk [vmem:[#allocation3 + $0x18] sm:$0xff] %vm428, %v3546
          %3559 = vst [vmem:[#allocation3 + $0x20] sm:$0xff] %v3547
          %3560 = vst.msk [vmem:[#allocation3 + $0x28] sm:$0xff] %vm431, %v3548
          %3561 = vst.msk [vmem:[#allocation3 + $0x30] sm:$0xff] %vm428, %v3549
          %3562 = vst [vmem:[#allocation3 + $0x38] sm:$0xff] %v3550
          %3563 = vst.msk [vmem:[#allocation3 + $0x40] sm:$0xff] %vm431, %v3551
          %3564 = vst.msk [vmem:[#allocation3 + $0x48] sm:$0xff] %vm428, %v3552
          %3565 = vst [vmem:[#allocation3 + $0x50] sm:$0xff] %v3553
          %3566 = vst.msk [vmem:[#allocation3 + $0x58] sm:$0xff] %vm431, %v3554
          %v3567 = vld [vmem:[#allocation3] sm:$0xff]
          %v3568 = vld [vmem:[#allocation3 + $0x8] sm:$0xff]
          %v3569 = vld [vmem:[#allocation3 + $0x18] sm:$0xff]
          %v3570 = vld [vmem:[#allocation3 + $0x20] sm:$0xff]
          %v3571 = vld [vmem:[#allocation3 + $0x30] sm:$0xff]
          %v3572 = vld [vmem:[#allocation3 + $0x38] sm:$0xff]
          %v3573 = vld [vmem:[#allocation3 + $0x48] sm:$0xff]
          %v3574 = vld [vmem:[#allocation3 + $0x50] sm:$0xff]
          %3583 = vrot.lane.b32.xlu0 %v3567, 125
          %v3584 = vpop.permute.xlu0 %3583
          %3585 = vrot.lane.b32.xlu0 %v3568, 125
          %v3586 = vpop.permute.xlu0 %3585
          %3587 = vrot.lane.b32.xlu0 %v3569, 125
          %v3588 = vpop.permute.xlu0 %3587
          %3589 = vrot.lane.b32.xlu0 %v3570, 125
          %v3590 = vpop.permute.xlu0 %3589
          %3591 = vrot.lane.b32.xlu0 %v3571, 125
          %v3592 = vpop.permute.xlu0 %3591
          %3593 = vrot.lane.b32.xlu0 %v3572, 125
          %v3594 = vpop.permute.xlu0 %3593
          %3595 = vrot.lane.b32.xlu0 %v3573, 125
          %v3596 = vpop.permute.xlu0 %3595
          %3597 = vrot.lane.b32.xlu0 %v3574, 125
          %v3598 = vpop.permute.xlu0 %3597
          %v3599 = vsel %vm474, %v3584, %v3586
          %v3600 = vsel %vm474, %v3588, %v3590
          %v3601 = vsel %vm474, %v3592, %v3594
          %v3602 = vsel %vm474, %v3596, %v3598
          %v3611 = vadd.f32 %v3567, %v3599
          %v3612 = vadd.f32 %v3568, %v3586
          %v3613 = vadd.f32 %v3569, %v3600
          %v3614 = vadd.f32 %v3570, %v3590
          %v3615 = vadd.f32 %v3571, %v3601
          %v3616 = vadd.f32 %v3572, %v3594
          %v3617 = vadd.f32 %v3573, %v3602
          %v3618 = vadd.f32 %v3574, %v3598
          %3619 = vrot.lane.b32.xlu0 %v3567, 122
          %v3620 = vpop.permute.xlu0 %3619
          %3621 = vrot.lane.b32.xlu0 %v3568, 122
          %v3622 = vpop.permute.xlu0 %3621
          %3623 = vrot.lane.b32.xlu0 %v3569, 122
          %v3624 = vpop.permute.xlu0 %3623
          %3625 = vrot.lane.b32.xlu0 %v3570, 122
          %v3626 = vpop.permute.xlu0 %3625
          %3627 = vrot.lane.b32.xlu0 %v3571, 122
          %v3628 = vpop.permute.xlu0 %3627
          %3629 = vrot.lane.b32.xlu0 %v3572, 122
          %v3630 = vpop.permute.xlu0 %3629
          %3631 = vrot.lane.b32.xlu0 %v3573, 122
          %v3632 = vpop.permute.xlu0 %3631
          %3633 = vrot.lane.b32.xlu0 %v3574, 122
          %v3634 = vpop.permute.xlu0 %3633
          %v3635 = vsel %vm511, %v3620, %v3622
          %v3636 = vsel %vm511, %v3624, %v3626
          %v3637 = vsel %vm511, %v3628, %v3630
          %v3638 = vsel %vm511, %v3632, %v3634
          %v3647 = vadd.f32 %v3611, %v3635
          %v3648 = vadd.f32 %v3612, %v3622
          %v3649 = vadd.f32 %v3613, %v3636
          %v3650 = vadd.f32 %v3614, %v3626
          %v3651 = vadd.f32 %v3615, %v3637
          %v3652 = vadd.f32 %v3616, %v3630
          %v3653 = vadd.f32 %v3617, %v3638
          %v3654 = vadd.f32 %v3618, %v3634
          %v3655 = vld [vmem:[#allocation3 + $0x8] sm:$0xff]
          %v3656 = vld [vmem:[#allocation3 + $0x10] sm:$0xff]
          %v3657 = vld [vmem:[#allocation3 + $0x20] sm:$0xff]
          %v3658 = vld [vmem:[#allocation3 + $0x28] sm:$0xff]
          %v3659 = vld [vmem:[#allocation3 + $0x38] sm:$0xff]
          %v3660 = vld [vmem:[#allocation3 + $0x40] sm:$0xff]
          %v3661 = vld [vmem:[#allocation3 + $0x50] sm:$0xff]
          %v3662 = vld [vmem:[#allocation3 + $0x58] sm:$0xff]
          %3671 = vrot.lane.b32.xlu0 %v3655, 119
          %v3672 = vpop.permute.xlu0 %3671
          %3673 = vrot.lane.b32.xlu0 %v3656, 119
          %v3674 = vpop.permute.xlu0 %3673
          %3675 = vrot.lane.b32.xlu0 %v3657, 119
          %v3676 = vpop.permute.xlu0 %3675
          %3677 = vrot.lane.b32.xlu0 %v3658, 119
          %v3678 = vpop.permute.xlu0 %3677
          %3679 = vrot.lane.b32.xlu0 %v3659, 119
          %v3680 = vpop.permute.xlu0 %3679
          %3681 = vrot.lane.b32.xlu0 %v3660, 119
          %v3682 = vpop.permute.xlu0 %3681
          %3683 = vrot.lane.b32.xlu0 %v3661, 119
          %v3684 = vpop.permute.xlu0 %3683
          %3685 = vrot.lane.b32.xlu0 %v3662, 119
          %v3686 = vpop.permute.xlu0 %3685
          %v3687 = vsel %vm564, %v3672, %v3674
          %v3688 = vsel %vm564, %v3676, %v3678
          %v3689 = vsel %vm564, %v3680, %v3682
          %v3690 = vsel %vm564, %v3684, %v3686
          %v3699 = vadd.f32 %v3647, %v3672
          %v3700 = vadd.f32 %v3648, %v3687
          %v3701 = vadd.f32 %v3649, %v3676
          %v3702 = vadd.f32 %v3650, %v3688
          %v3703 = vadd.f32 %v3651, %v3680
          %v3704 = vadd.f32 %v3652, %v3689
          %v3705 = vadd.f32 %v3653, %v3684
          %v3706 = vadd.f32 %v3654, %v3690
          %3707 = vrot.lane.b32.xlu0 %v3655, 116
          %v3708 = vpop.permute.xlu0 %3707
          %3709 = vrot.lane.b32.xlu0 %v3656, 116
          %v3710 = vpop.permute.xlu0 %3709
          %3711 = vrot.lane.b32.xlu0 %v3657, 116
          %v3712 = vpop.permute.xlu0 %3711
          %3713 = vrot.lane.b32.xlu0 %v3658, 116
          %v3714 = vpop.permute.xlu0 %3713
          %3715 = vrot.lane.b32.xlu0 %v3659, 116
          %v3716 = vpop.permute.xlu0 %3715
          %3717 = vrot.lane.b32.xlu0 %v3660, 116
          %v3718 = vpop.permute.xlu0 %3717
          %3719 = vrot.lane.b32.xlu0 %v3661, 116
          %v3720 = vpop.permute.xlu0 %3719
          %3721 = vrot.lane.b32.xlu0 %v3662, 116
          %v3722 = vpop.permute.xlu0 %3721
          %v3723 = vsel %vm601, %v3708, %v3710
          %v3724 = vsel %vm601, %v3712, %v3714
          %v3725 = vsel %vm601, %v3716, %v3718
          %v3726 = vsel %vm601, %v3720, %v3722
          %v3735 = vadd.f32 %v3699, %v3708
          %v3736 = vadd.f32 %v3700, %v3723
          %v3737 = vadd.f32 %v3701, %v3712
          %v3738 = vadd.f32 %v3702, %v3724
          %v3739 = vadd.f32 %v3703, %v3716
          %v3740 = vadd.f32 %v3704, %v3725
          %v3741 = vadd.f32 %v3705, %v3720
          %v3742 = vadd.f32 %v3706, %v3726
          %3751 = vrot.lane.b32.xlu0 %v3735, 7
          %v3752 = vpop.permute.xlu0 %3751
          %3753 = vrot.lane.b32.xlu0 %v3736, 7
          %v3754 = vpop.permute.xlu0 %3753
          %3755 = vrot.lane.b32.xlu0 %v3737, 7
          %v3756 = vpop.permute.xlu0 %3755
          %3757 = vrot.lane.b32.xlu0 %v3738, 7
          %v3758 = vpop.permute.xlu0 %3757
          %3759 = vrot.lane.b32.xlu0 %v3739, 7
          %v3760 = vpop.permute.xlu0 %3759
          %3761 = vrot.lane.b32.xlu0 %v3740, 7
          %v3762 = vpop.permute.xlu0 %3761
          %3763 = vrot.lane.b32.xlu0 %v3741, 7
          %v3764 = vpop.permute.xlu0 %3763
          %3765 = vrot.lane.b32.xlu0 %v3742, 7
          %v3766 = vpop.permute.xlu0 %3765
          %v3767 = vsel %vm646, %v3752, %v3754
          %v3768 = vsel %vm646, %v3756, %v3758
          %v3769 = vsel %vm646, %v3760, %v3762
          %v3770 = vsel %vm646, %v3764, %v3766
          %3775 = vst [vmem:[#allocation4 + $0x8] sm:$0xff] %v3767
          %3776 = vst [vmem:[#allocation4 + $0x10] sm:$0xff] %v3768
          %3777 = vst [vmem:[#allocation4 + $0x18] sm:$0xff] %v3769
          %3778 = vst [vmem:[#allocation4 + $0x20] sm:$0xff] %v3770
          %v3779 = vld [vmem:[#allocation4 + $0x1] sm:$0xff]
          %v3780 = vld [vmem:[#allocation4 + $0x9] sm:$0xff]
          %v3781 = vld [vmem:[#allocation4 + $0x11] sm:$0xff]
          %v3782 = vld [vmem:[#allocation4 + $0x19] sm:$0xff]
          %v3783 = vld [vmem:[#allocation4 + $0x21] sm:$0xff]
          %v3784 = vld [vmem:[#allocation4 + $0x29] sm:$0xf]
          %v3785 = vld [vmem:[#allocation4 + $0x2] sm:$0xff]
          %v3786 = vld [vmem:[#allocation4 + $0xa] sm:$0xff]
          %v3787 = vld [vmem:[#allocation4 + $0x12] sm:$0xff]
          %v3788 = vld [vmem:[#allocation4 + $0x1a] sm:$0xff]
          %v3789 = vld [vmem:[#allocation4 + $0x22] sm:$0xff]
          %v3790 = vld [vmem:[#allocation4 + $0x2a] sm:$0xf]
          %v3791 = vadd.f32 %v3779, %v3785
          %v3792 = vadd.f32 %v3780, %v3786
          %v3793 = vadd.f32 %v3781, %v3787
          %v3794 = vadd.f32 %v3782, %v3788
          %v3795 = vadd.f32 %v3783, %v3789
          %v3796 = vadd.f32 %v3784, %v3790
          %v3797 = vld [vmem:[#allocation4 + $0x3] sm:$0xff]
          %v3798 = vld [vmem:[#allocation4 + $0xb] sm:$0xff]
          %v3799 = vld [vmem:[#allocation4 + $0x13] sm:$0xff]
          %v3800 = vld [vmem:[#allocation4 + $0x1b] sm:$0xff]
          %v3801 = vld [vmem:[#allocation4 + $0x23] sm:$0xff]
          %v3802 = vld [vmem:[#allocation4 + $0x2b] sm:$0xf]
          %v3803 = vadd.f32 %v3791, %v3797
          %v3804 = vadd.f32 %v3792, %v3798
          %v3805 = vadd.f32 %v3793, %v3799
          %v3806 = vadd.f32 %v3794, %v3800
          %v3807 = vadd.f32 %v3795, %v3801
          %v3808 = vadd.f32 %v3796, %v3802
          %3809 = vst [vmem:[#allocation5 + $0x1] sm:$0xff] %v3803
          %3810 = vst [vmem:[#allocation5 + $0x9] sm:$0xff] %v3804
          %3811 = vst [vmem:[#allocation5 + $0x11] sm:$0xff] %v3805
          %3812 = vst [vmem:[#allocation5 + $0x19] sm:$0xff] %v3806
          %3813 = vst [vmem:[#allocation5 + $0x21] sm:$0xff] %v3807
          %3814 = vst [vmem:[#allocation5 + $0x29] sm:$0xf] %v3808
          %v3815 = vld [vmem:[#allocation5 + $0x1] sm:$0xff]
          %v3816 = vld [vmem:[#allocation5 + $0x9] sm:$0xff]
          %v3817 = vld [vmem:[#allocation5 + $0x11] sm:$0xff]
          %v3818 = vld [vmem:[#allocation5 + $0x19] sm:$0xff]
          %v3819 = vld [vmem:[#allocation5 + $0x4] sm:$0xff]
          %v3820 = vld [vmem:[#allocation5 + $0xc] sm:$0xff]
          %v3821 = vld [vmem:[#allocation5 + $0x14] sm:$0xff]
          %v3822 = vld [vmem:[#allocation5 + $0x1c] sm:$0xff]
          %v3823 = vadd.f32 %v3815, %v3819
          %v3824 = vadd.f32 %v3816, %v3820
          %v3825 = vadd.f32 %v3817, %v3821
          %v3826 = vadd.f32 %v3818, %v3822
          %v3827 = vld [vmem:[#allocation5 + $0x7] sm:$0xff]
          %v3828 = vld [vmem:[#allocation5 + $0xf] sm:$0xff]
          %v3829 = vld [vmem:[#allocation5 + $0x17] sm:$0xff]
          %v3830 = vld [vmem:[#allocation5 + $0x1f] sm:$0xff]
          %v3831 = vadd.f32 %v3823, %v3827
          %v3832 = vadd.f32 %v3824, %v3828
          %v3833 = vadd.f32 %v3825, %v3829
          %v3834 = vadd.f32 %v3826, %v3830
          %v3835 = vld [vmem:[#allocation5 + $0xa] sm:$0xff]
          %v3836 = vld [vmem:[#allocation5 + $0x12] sm:$0xff]
          %v3837 = vld [vmem:[#allocation5 + $0x1a] sm:$0xff]
          %v3838 = vld [vmem:[#allocation5 + $0x22] sm:$0xff]
          %v3839 = vadd.f32 %v3831, %v3835
          %v3840 = vadd.f32 %v3832, %v3836
          %v3841 = vadd.f32 %v3833, %v3837
          %v3842 = vadd.f32 %v3834, %v3838
          %v3843 = vld [vmem:[#allocation5 + $0xd] sm:$0xff]
          %v3844 = vld [vmem:[#allocation5 + $0x15] sm:$0xff]
          %v3845 = vld [vmem:[#allocation5 + $0x1d] sm:$0xff]
          %v3846 = vld [vmem:[#allocation5 + $0x25] sm:$0xff]
          %v3847 = vadd.f32 %v3839, %v3843
          %v3848 = vadd.f32 %v3840, %v3844
          %v3849 = vadd.f32 %v3841, %v3845
          %v3850 = vadd.f32 %v3842, %v3846
          %v3851 = vld [vmem:[#allocation8] sm:$0xff]
          %v3852 = vld [vmem:[#allocation8 + $0x8] sm:$0xff]
          %v3853 = vld [vmem:[#allocation8 + $0x10] sm:$0xff]
          %v3854 = vld [vmem:[#allocation8 + $0x18] sm:$0xff]
          %vm3855 = vcmp.lt.f32.partialorder %v3847, %v3851
          %vm3856 = vcmp.lt.f32.partialorder %v3848, %v3852
          %vm3857 = vcmp.lt.f32.partialorder %v3849, %v3853
          %vm3858 = vcmp.lt.f32.partialorder %v3850, %v3854
          %v3859 = vsel %vm3855, %v3847, %v3851
          %v3860 = vsel %vm3856, %v3848, %v3852
          %v3861 = vsel %vm3857, %v3849, %v3853
          %v3862 = vsel %vm3858, %v3850, %v3854
          %3863 = vst [vmem:[#allocation8] sm:$0xff] %v3859
          %3864 = vst [vmem:[#allocation8 + $0x8] sm:$0xff] %v3860
          %3865 = vst [vmem:[#allocation8 + $0x10] sm:$0xff] %v3861
          %3866 = vst [vmem:[#allocation8 + $0x18] sm:$0xff] %v3862
          %v3867 = vld [vmem:[%s201] sm:$0xff]
          %v3868 = vld [vmem:[%s201 + $0x8] sm:$0xff]
          %v3869 = vld [vmem:[%s201 + $0x10] sm:$0xff]
          %v3870 = vld [vmem:[%s201 + $0x18] sm:$0xff]
          %v3871 = vstv %s3362
          %v3872 = vsel %vm3855, %v3871, %v3867
          %v3873 = vsel %vm3856, %v3871, %v3868
          %v3874 = vsel %vm3857, %v3871, %v3869
          %v3875 = vsel %vm3858, %v3871, %v3870
          %3876 = vst [vmem:[%s201] sm:$0xff] %v3872
          %3877 = vst [vmem:[%s201 + $0x8] sm:$0xff] %v3873
          %3878 = vst [vmem:[%s201 + $0x10] sm:$0xff] %v3874
          %3879 = vst [vmem:[%s201 + $0x18] sm:$0xff] %v3875
          %s3880 = sadd.s32 %s268, 7
          %v3881 = vld [vmem:[#allocation7] sm:$0xff]
          %v3882 = vld [vmem:[#allocation7 + $0x8] sm:$0xff]
          %v3883 = vld [vmem:[#allocation7 + $0x10] sm:$0xff]
          %v3884 = vld [vmem:[#allocation7 + $0x18] sm:$0xff]
          %v3885 = vld [vmem:[#allocation7 + $0x20] sm:$0xff]
          %v3886 = vld [vmem:[#allocation7 + $0x28] sm:$0xff]
          %v3887 = vld [vmem:[#allocation7 + $0x30] sm:$0xff]
          %v3888 = vld [vmem:[#allocation7 + $0x38] sm:$0xff]
          %v3889 = vld [vmem:[%s167] sm:$0xff]
          %v3890 = vld [vmem:[%s167 + $0x8] sm:$0xff]
          %v3891 = vld [vmem:[%s167 + $0x10] sm:$0xff]
          %v3892 = vld [vmem:[%s167 + $0x18] sm:$0xff]
          %3901 = vrot.lane.b32.xlu0 %v3881, 3
          %v3902 = vpop.permute.xlu0 %3901
          %3903 = vrot.lane.b32.xlu0 %v3882, 3
          %v3904 = vpop.permute.xlu0 %3903
          %3905 = vrot.lane.b32.xlu0 %v3883, 3
          %v3906 = vpop.permute.xlu0 %3905
          %3907 = vrot.lane.b32.xlu0 %v3884, 3
          %v3908 = vpop.permute.xlu0 %3907
          %3909 = vrot.lane.b32.xlu0 %v3885, 3
          %v3910 = vpop.permute.xlu0 %3909
          %3911 = vrot.lane.b32.xlu0 %v3886, 3
          %v3912 = vpop.permute.xlu0 %3911
          %3913 = vrot.lane.b32.xlu0 %v3887, 3
          %v3914 = vpop.permute.xlu0 %3913
          %3915 = vrot.lane.b32.xlu0 %v3888, 3
          %v3916 = vpop.permute.xlu0 %3915
          %v3917 = vsel %vm1835, %v3902, %v3904
          %v3918 = vsel %vm1835, %v3906, %v3908
          %v3919 = vsel %vm1835, %v3910, %v3912
          %v3920 = vsel %vm1835, %v3914, %v3916
          %v3925 = vsub.f32 %v3889, %v3917
          %v3926 = vsub.f32 %v3890, %v3918
          %v3927 = vsub.f32 %v3891, %v3919
          %v3928 = vsub.f32 %v3892, %v3920
          %v3929 = vand.u32 2147483647, %v3925
          %v3930 = vand.u32 2147483647, %v3926
          %v3931 = vand.u32 2147483647, %v3927
          %v3932 = vand.u32 2147483647, %v3928
          %3933 = vst.msk [vmem:[#allocation2 + $0x8] sm:$0xff] %vm285, %v3929
          %3934 = vst.msk [vmem:[#allocation2 + $0x20] sm:$0xff] %vm285, %v3930
          %3935 = vst.msk [vmem:[#allocation2 + $0x38] sm:$0xff] %vm285, %v3931
          %3936 = vst.msk [vmem:[#allocation2 + $0x50] sm:$0xff] %vm285, %v3932
          %v3937 = vld [vmem:[#allocation2] sm:$0xff]
          %v3938 = vld [vmem:[#allocation2 + $0x8] sm:$0xff]
          %v3939 = vld [vmem:[#allocation2 + $0x10] sm:$0xff]
          %v3940 = vld [vmem:[#allocation2 + $0x18] sm:$0xff]
          %v3941 = vld [vmem:[#allocation2 + $0x20] sm:$0xff]
          %v3942 = vld [vmem:[#allocation2 + $0x28] sm:$0xff]
          %v3943 = vld [vmem:[#allocation2 + $0x30] sm:$0xff]
          %v3944 = vld [vmem:[#allocation2 + $0x38] sm:$0xff]
          %v3945 = vld [vmem:[#allocation2 + $0x40] sm:$0xff]
          %v3946 = vld [vmem:[#allocation2 + $0x48] sm:$0xff]
          %v3947 = vld [vmem:[#allocation2 + $0x50] sm:$0xff]
          %v3948 = vld [vmem:[#allocation2 + $0x58] sm:$0xff]
          %3961 = vrot.lane.b32.xlu0 %v3937, 127
          %v3962 = vpop.permute.xlu0 %3961
          %3963 = vrot.lane.b32.xlu0 %v3938, 127
          %v3964 = vpop.permute.xlu0 %3963
          %3965 = vrot.lane.b32.xlu0 %v3939, 127
          %v3966 = vpop.permute.xlu0 %3965
          %3967 = vrot.lane.b32.xlu0 %v3940, 127
          %v3968 = vpop.permute.xlu0 %3967
          %3969 = vrot.lane.b32.xlu0 %v3941, 127
          %v3970 = vpop.permute.xlu0 %3969
          %3971 = vrot.lane.b32.xlu0 %v3942, 127
          %v3972 = vpop.permute.xlu0 %3971
          %3973 = vrot.lane.b32.xlu0 %v3943, 127
          %v3974 = vpop.permute.xlu0 %3973
          %3975 = vrot.lane.b32.xlu0 %v3944, 127
          %v3976 = vpop.permute.xlu0 %3975
          %3977 = vrot.lane.b32.xlu0 %v3945, 127
          %v3978 = vpop.permute.xlu0 %3977
          %3979 = vrot.lane.b32.xlu0 %v3946, 127
          %v3980 = vpop.permute.xlu0 %3979
          %3981 = vrot.lane.b32.xlu0 %v3947, 127
          %v3982 = vpop.permute.xlu0 %3981
          %3983 = vrot.lane.b32.xlu0 %v3948, 127
          %v3984 = vpop.permute.xlu0 %3983
          %v3985 = vsel %vm338, %v3962, %v3964
          %v3986 = vsel %vm338, %v3964, %v3966
          %v3987 = vsel %vm338, %v3968, %v3970
          %v3988 = vsel %vm338, %v3970, %v3972
          %v3989 = vsel %vm338, %v3974, %v3976
          %v3990 = vsel %vm338, %v3976, %v3978
          %v3991 = vsel %vm338, %v3980, %v3982
          %v3992 = vsel %vm338, %v3982, %v3984
          %v4005 = vadd.f32 %v3937, %v3985
          %v4006 = vadd.f32 %v3938, %v3986
          %v4007 = vadd.f32 %v3939, %v3966
          %v4008 = vadd.f32 %v3940, %v3987
          %v4009 = vadd.f32 %v3941, %v3988
          %v4010 = vadd.f32 %v3942, %v3972
          %v4011 = vadd.f32 %v3943, %v3989
          %v4012 = vadd.f32 %v3944, %v3990
          %v4013 = vadd.f32 %v3945, %v3978
          %v4014 = vadd.f32 %v3946, %v3991
          %v4015 = vadd.f32 %v3947, %v3992
          %v4016 = vadd.f32 %v3948, %v3984
          %4017 = vrot.lane.b32.xlu0 %v3937, 126
          %v4018 = vpop.permute.xlu0 %4017
          %4019 = vrot.lane.b32.xlu0 %v3938, 126
          %v4020 = vpop.permute.xlu0 %4019
          %4021 = vrot.lane.b32.xlu0 %v3939, 126
          %v4022 = vpop.permute.xlu0 %4021
          %4023 = vrot.lane.b32.xlu0 %v3940, 126
          %v4024 = vpop.permute.xlu0 %4023
          %4025 = vrot.lane.b32.xlu0 %v3941, 126
          %v4026 = vpop.permute.xlu0 %4025
          %4027 = vrot.lane.b32.xlu0 %v3942, 126
          %v4028 = vpop.permute.xlu0 %4027
          %4029 = vrot.lane.b32.xlu0 %v3943, 126
          %v4030 = vpop.permute.xlu0 %4029
          %4031 = vrot.lane.b32.xlu0 %v3944, 126
          %v4032 = vpop.permute.xlu0 %4031
          %4033 = vrot.lane.b32.xlu0 %v3945, 126
          %v4034 = vpop.permute.xlu0 %4033
          %4035 = vrot.lane.b32.xlu0 %v3946, 126
          %v4036 = vpop.permute.xlu0 %4035
          %4037 = vrot.lane.b32.xlu0 %v3947, 126
          %v4038 = vpop.permute.xlu0 %4037
          %4039 = vrot.lane.b32.xlu0 %v3948, 126
          %v4040 = vpop.permute.xlu0 %4039
          %v4041 = vsel %vm395, %v4018, %v4020
          %v4042 = vsel %vm395, %v4020, %v4022
          %v4043 = vsel %vm395, %v4024, %v4026
          %v4044 = vsel %vm395, %v4026, %v4028
          %v4045 = vsel %vm395, %v4030, %v4032
          %v4046 = vsel %vm395, %v4032, %v4034
          %v4047 = vsel %vm395, %v4036, %v4038
          %v4048 = vsel %vm395, %v4038, %v4040
          %v4061 = vadd.f32 %v4005, %v4041
          %v4062 = vadd.f32 %v4006, %v4042
          %v4063 = vadd.f32 %v4007, %v4022
          %v4064 = vadd.f32 %v4008, %v4043
          %v4065 = vadd.f32 %v4009, %v4044
          %v4066 = vadd.f32 %v4010, %v4028
          %v4067 = vadd.f32 %v4011, %v4045
          %v4068 = vadd.f32 %v4012, %v4046
          %v4069 = vadd.f32 %v4013, %v4034
          %v4070 = vadd.f32 %v4014, %v4047
          %v4071 = vadd.f32 %v4015, %v4048
          %v4072 = vadd.f32 %v4016, %v4040
          %4073 = vst.msk [vmem:[#allocation3] sm:$0xff] %vm428, %v4061
          %4074 = vst [vmem:[#allocation3 + $0x8] sm:$0xff] %v4062
          %4075 = vst.msk [vmem:[#allocation3 + $0x10] sm:$0xff] %vm431, %v4063
          %4076 = vst.msk [vmem:[#allocation3 + $0x18] sm:$0xff] %vm428, %v4064
          %4077 = vst [vmem:[#allocation3 + $0x20] sm:$0xff] %v4065
          %4078 = vst.msk [vmem:[#allocation3 + $0x28] sm:$0xff] %vm431, %v4066
          %4079 = vst.msk [vmem:[#allocation3 + $0x30] sm:$0xff] %vm428, %v4067
          %4080 = vst [vmem:[#allocation3 + $0x38] sm:$0xff] %v4068
          %4081 = vst.msk [vmem:[#allocation3 + $0x40] sm:$0xff] %vm431, %v4069
          %4082 = vst.msk [vmem:[#allocation3 + $0x48] sm:$0xff] %vm428, %v4070
          %4083 = vst [vmem:[#allocation3 + $0x50] sm:$0xff] %v4071
          %4084 = vst.msk [vmem:[#allocation3 + $0x58] sm:$0xff] %vm431, %v4072
          %v4085 = vld [vmem:[#allocation3] sm:$0xff]
          %v4086 = vld [vmem:[#allocation3 + $0x8] sm:$0xff]
          %v4087 = vld [vmem:[#allocation3 + $0x18] sm:$0xff]
          %v4088 = vld [vmem:[#allocation3 + $0x20] sm:$0xff]
          %v4089 = vld [vmem:[#allocation3 + $0x30] sm:$0xff]
          %v4090 = vld [vmem:[#allocation3 + $0x38] sm:$0xff]
          %v4091 = vld [vmem:[#allocation3 + $0x48] sm:$0xff]
          %v4092 = vld [vmem:[#allocation3 + $0x50] sm:$0xff]
          %4101 = vrot.lane.b32.xlu0 %v4085, 125
          %v4102 = vpop.permute.xlu0 %4101
          %4103 = vrot.lane.b32.xlu0 %v4086, 125
          %v4104 = vpop.permute.xlu0 %4103
          %4105 = vrot.lane.b32.xlu0 %v4087, 125
          %v4106 = vpop.permute.xlu0 %4105
          %4107 = vrot.lane.b32.xlu0 %v4088, 125
          %v4108 = vpop.permute.xlu0 %4107
          %4109 = vrot.lane.b32.xlu0 %v4089, 125
          %v4110 = vpop.permute.xlu0 %4109
          %4111 = vrot.lane.b32.xlu0 %v4090, 125
          %v4112 = vpop.permute.xlu0 %4111
          %4113 = vrot.lane.b32.xlu0 %v4091, 125
          %v4114 = vpop.permute.xlu0 %4113
          %4115 = vrot.lane.b32.xlu0 %v4092, 125
          %v4116 = vpop.permute.xlu0 %4115
          %v4117 = vsel %vm474, %v4102, %v4104
          %v4118 = vsel %vm474, %v4106, %v4108
          %v4119 = vsel %vm474, %v4110, %v4112
          %v4120 = vsel %vm474, %v4114, %v4116
          %v4129 = vadd.f32 %v4085, %v4117
          %v4130 = vadd.f32 %v4086, %v4104
          %v4131 = vadd.f32 %v4087, %v4118
          %v4132 = vadd.f32 %v4088, %v4108
          %v4133 = vadd.f32 %v4089, %v4119
          %v4134 = vadd.f32 %v4090, %v4112
          %v4135 = vadd.f32 %v4091, %v4120
          %v4136 = vadd.f32 %v4092, %v4116
          %4137 = vrot.lane.b32.xlu0 %v4085, 122
          %v4138 = vpop.permute.xlu0 %4137
          %4139 = vrot.lane.b32.xlu0 %v4086, 122
          %v4140 = vpop.permute.xlu0 %4139
          %4141 = vrot.lane.b32.xlu0 %v4087, 122
          %v4142 = vpop.permute.xlu0 %4141
          %4143 = vrot.lane.b32.xlu0 %v4088, 122
          %v4144 = vpop.permute.xlu0 %4143
          %4145 = vrot.lane.b32.xlu0 %v4089, 122
          %v4146 = vpop.permute.xlu0 %4145
          %4147 = vrot.lane.b32.xlu0 %v4090, 122
          %v4148 = vpop.permute.xlu0 %4147
          %4149 = vrot.lane.b32.xlu0 %v4091, 122
          %v4150 = vpop.permute.xlu0 %4149
          %4151 = vrot.lane.b32.xlu0 %v4092, 122
          %v4152 = vpop.permute.xlu0 %4151
          %v4153 = vsel %vm511, %v4138, %v4140
          %v4154 = vsel %vm511, %v4142, %v4144
          %v4155 = vsel %vm511, %v4146, %v4148
          %v4156 = vsel %vm511, %v4150, %v4152
          %v4165 = vadd.f32 %v4129, %v4153
          %v4166 = vadd.f32 %v4130, %v4140
          %v4167 = vadd.f32 %v4131, %v4154
          %v4168 = vadd.f32 %v4132, %v4144
          %v4169 = vadd.f32 %v4133, %v4155
          %v4170 = vadd.f32 %v4134, %v4148
          %v4171 = vadd.f32 %v4135, %v4156
          %v4172 = vadd.f32 %v4136, %v4152
          %v4173 = vld [vmem:[#allocation3 + $0x8] sm:$0xff]
          %v4174 = vld [vmem:[#allocation3 + $0x10] sm:$0xff]
          %v4175 = vld [vmem:[#allocation3 + $0x20] sm:$0xff]
          %v4176 = vld [vmem:[#allocation3 + $0x28] sm:$0xff]
          %v4177 = vld [vmem:[#allocation3 + $0x38] sm:$0xff]
          %v4178 = vld [vmem:[#allocation3 + $0x40] sm:$0xff]
          %v4179 = vld [vmem:[#allocation3 + $0x50] sm:$0xff]
          %v4180 = vld [vmem:[#allocation3 + $0x58] sm:$0xff]
          %4189 = vrot.lane.b32.xlu0 %v4173, 119
          %v4190 = vpop.permute.xlu0 %4189
          %4191 = vrot.lane.b32.xlu0 %v4174, 119
          %v4192 = vpop.permute.xlu0 %4191
          %4193 = vrot.lane.b32.xlu0 %v4175, 119
          %v4194 = vpop.permute.xlu0 %4193
          %4195 = vrot.lane.b32.xlu0 %v4176, 119
          %v4196 = vpop.permute.xlu0 %4195
          %4197 = vrot.lane.b32.xlu0 %v4177, 119
          %v4198 = vpop.permute.xlu0 %4197
          %4199 = vrot.lane.b32.xlu0 %v4178, 119
          %v4200 = vpop.permute.xlu0 %4199
          %4201 = vrot.lane.b32.xlu0 %v4179, 119
          %v4202 = vpop.permute.xlu0 %4201
          %4203 = vrot.lane.b32.xlu0 %v4180, 119
          %v4204 = vpop.permute.xlu0 %4203
          %v4205 = vsel %vm564, %v4190, %v4192
          %v4206 = vsel %vm564, %v4194, %v4196
          %v4207 = vsel %vm564, %v4198, %v4200
          %v4208 = vsel %vm564, %v4202, %v4204
          %v4217 = vadd.f32 %v4165, %v4190
          %v4218 = vadd.f32 %v4166, %v4205
          %v4219 = vadd.f32 %v4167, %v4194
          %v4220 = vadd.f32 %v4168, %v4206
          %v4221 = vadd.f32 %v4169, %v4198
          %v4222 = vadd.f32 %v4170, %v4207
          %v4223 = vadd.f32 %v4171, %v4202
          %v4224 = vadd.f32 %v4172, %v4208
          %4225 = vrot.lane.b32.xlu0 %v4173, 116
          %v4226 = vpop.permute.xlu0 %4225
          %4227 = vrot.lane.b32.xlu0 %v4174, 116
          %v4228 = vpop.permute.xlu0 %4227
          %4229 = vrot.lane.b32.xlu0 %v4175, 116
          %v4230 = vpop.permute.xlu0 %4229
          %4231 = vrot.lane.b32.xlu0 %v4176, 116
          %v4232 = vpop.permute.xlu0 %4231
          %4233 = vrot.lane.b32.xlu0 %v4177, 116
          %v4234 = vpop.permute.xlu0 %4233
          %4235 = vrot.lane.b32.xlu0 %v4178, 116
          %v4236 = vpop.permute.xlu0 %4235
          %4237 = vrot.lane.b32.xlu0 %v4179, 116
          %v4238 = vpop.permute.xlu0 %4237
          %4239 = vrot.lane.b32.xlu0 %v4180, 116
          %v4240 = vpop.permute.xlu0 %4239
          %v4241 = vsel %vm601, %v4226, %v4228
          %v4242 = vsel %vm601, %v4230, %v4232
          %v4243 = vsel %vm601, %v4234, %v4236
          %v4244 = vsel %vm601, %v4238, %v4240
          %v4253 = vadd.f32 %v4217, %v4226
          %v4254 = vadd.f32 %v4218, %v4241
          %v4255 = vadd.f32 %v4219, %v4230
          %v4256 = vadd.f32 %v4220, %v4242
          %v4257 = vadd.f32 %v4221, %v4234
          %v4258 = vadd.f32 %v4222, %v4243
          %v4259 = vadd.f32 %v4223, %v4238
          %v4260 = vadd.f32 %v4224, %v4244
          %4269 = vrot.lane.b32.xlu0 %v4253, 7
          %v4270 = vpop.permute.xlu0 %4269
          %4271 = vrot.lane.b32.xlu0 %v4254, 7
          %v4272 = vpop.permute.xlu0 %4271
          %4273 = vrot.lane.b32.xlu0 %v4255, 7
          %v4274 = vpop.permute.xlu0 %4273
          %4275 = vrot.lane.b32.xlu0 %v4256, 7
          %v4276 = vpop.permute.xlu0 %4275
          %4277 = vrot.lane.b32.xlu0 %v4257, 7
          %v4278 = vpop.permute.xlu0 %4277
          %4279 = vrot.lane.b32.xlu0 %v4258, 7
          %v4280 = vpop.permute.xlu0 %4279
          %4281 = vrot.lane.b32.xlu0 %v4259, 7
          %v4282 = vpop.permute.xlu0 %4281
          %4283 = vrot.lane.b32.xlu0 %v4260, 7
          %v4284 = vpop.permute.xlu0 %4283
          %v4285 = vsel %vm646, %v4270, %v4272
          %v4286 = vsel %vm646, %v4274, %v4276
          %v4287 = vsel %vm646, %v4278, %v4280
          %v4288 = vsel %vm646, %v4282, %v4284
          %4293 = vst [vmem:[#allocation4 + $0x8] sm:$0xff] %v4285
          %4294 = vst [vmem:[#allocation4 + $0x10] sm:$0xff] %v4286
          %4295 = vst [vmem:[#allocation4 + $0x18] sm:$0xff] %v4287
          %4296 = vst [vmem:[#allocation4 + $0x20] sm:$0xff] %v4288
          %v4297 = vld [vmem:[#allocation4 + $0x1] sm:$0xff]
          %v4298 = vld [vmem:[#allocation4 + $0x9] sm:$0xff]
          %v4299 = vld [vmem:[#allocation4 + $0x11] sm:$0xff]
          %v4300 = vld [vmem:[#allocation4 + $0x19] sm:$0xff]
          %v4301 = vld [vmem:[#allocation4 + $0x21] sm:$0xff]
          %v4302 = vld [vmem:[#allocation4 + $0x29] sm:$0xf]
          %v4303 = vld [vmem:[#allocation4 + $0x2] sm:$0xff]
          %v4304 = vld [vmem:[#allocation4 + $0xa] sm:$0xff]
          %v4305 = vld [vmem:[#allocation4 + $0x12] sm:$0xff]
          %v4306 = vld [vmem:[#allocation4 + $0x1a] sm:$0xff]
          %v4307 = vld [vmem:[#allocation4 + $0x22] sm:$0xff]
          %v4308 = vld [vmem:[#allocation4 + $0x2a] sm:$0xf]
          %v4309 = vadd.f32 %v4297, %v4303
          %v4310 = vadd.f32 %v4298, %v4304
          %v4311 = vadd.f32 %v4299, %v4305
          %v4312 = vadd.f32 %v4300, %v4306
          %v4313 = vadd.f32 %v4301, %v4307
          %v4314 = vadd.f32 %v4302, %v4308
          %v4315 = vld [vmem:[#allocation4 + $0x3] sm:$0xff]
          %v4316 = vld [vmem:[#allocation4 + $0xb] sm:$0xff]
          %v4317 = vld [vmem:[#allocation4 + $0x13] sm:$0xff]
          %v4318 = vld [vmem:[#allocation4 + $0x1b] sm:$0xff]
          %v4319 = vld [vmem:[#allocation4 + $0x23] sm:$0xff]
          %v4320 = vld [vmem:[#allocation4 + $0x2b] sm:$0xf]
          %v4321 = vadd.f32 %v4309, %v4315
          %v4322 = vadd.f32 %v4310, %v4316
          %v4323 = vadd.f32 %v4311, %v4317
          %v4324 = vadd.f32 %v4312, %v4318
          %v4325 = vadd.f32 %v4313, %v4319
          %v4326 = vadd.f32 %v4314, %v4320
          %4327 = vst [vmem:[#allocation5 + $0x1] sm:$0xff] %v4321
          %4328 = vst [vmem:[#allocation5 + $0x9] sm:$0xff] %v4322
          %4329 = vst [vmem:[#allocation5 + $0x11] sm:$0xff] %v4323
          %4330 = vst [vmem:[#allocation5 + $0x19] sm:$0xff] %v4324
          %4331 = vst [vmem:[#allocation5 + $0x21] sm:$0xff] %v4325
          %4332 = vst [vmem:[#allocation5 + $0x29] sm:$0xf] %v4326
          %v4333 = vld [vmem:[#allocation5 + $0x1] sm:$0xff]
          %v4334 = vld [vmem:[#allocation5 + $0x9] sm:$0xff]
          %v4335 = vld [vmem:[#allocation5 + $0x11] sm:$0xff]
          %v4336 = vld [vmem:[#allocation5 + $0x19] sm:$0xff]
          %v4337 = vld [vmem:[#allocation5 + $0x4] sm:$0xff]
          %v4338 = vld [vmem:[#allocation5 + $0xc] sm:$0xff]
          %v4339 = vld [vmem:[#allocation5 + $0x14] sm:$0xff]
          %v4340 = vld [vmem:[#allocation5 + $0x1c] sm:$0xff]
          %v4341 = vadd.f32 %v4333, %v4337
          %v4342 = vadd.f32 %v4334, %v4338
          %v4343 = vadd.f32 %v4335, %v4339
          %v4344 = vadd.f32 %v4336, %v4340
          %v4345 = vld [vmem:[#allocation5 + $0x7] sm:$0xff]
          %v4346 = vld [vmem:[#allocation5 + $0xf] sm:$0xff]
          %v4347 = vld [vmem:[#allocation5 + $0x17] sm:$0xff]
          %v4348 = vld [vmem:[#allocation5 + $0x1f] sm:$0xff]
          %v4349 = vadd.f32 %v4341, %v4345
          %v4350 = vadd.f32 %v4342, %v4346
          %v4351 = vadd.f32 %v4343, %v4347
          %v4352 = vadd.f32 %v4344, %v4348
          %v4353 = vld [vmem:[#allocation5 + $0xa] sm:$0xff]
          %v4354 = vld [vmem:[#allocation5 + $0x12] sm:$0xff]
          %v4355 = vld [vmem:[#allocation5 + $0x1a] sm:$0xff]
          %v4356 = vld [vmem:[#allocation5 + $0x22] sm:$0xff]
          %v4357 = vadd.f32 %v4349, %v4353
          %v4358 = vadd.f32 %v4350, %v4354
          %v4359 = vadd.f32 %v4351, %v4355
          %v4360 = vadd.f32 %v4352, %v4356
          %v4361 = vld [vmem:[#allocation5 + $0xd] sm:$0xff]
          %v4362 = vld [vmem:[#allocation5 + $0x15] sm:$0xff]
          %v4363 = vld [vmem:[#allocation5 + $0x1d] sm:$0xff]
          %v4364 = vld [vmem:[#allocation5 + $0x25] sm:$0xff]
          %v4365 = vadd.f32 %v4357, %v4361
          %v4366 = vadd.f32 %v4358, %v4362
          %v4367 = vadd.f32 %v4359, %v4363
          %v4368 = vadd.f32 %v4360, %v4364
          %v4369 = vld [vmem:[#allocation8] sm:$0xff]
          %v4370 = vld [vmem:[#allocation8 + $0x8] sm:$0xff]
          %v4371 = vld [vmem:[#allocation8 + $0x10] sm:$0xff]
          %v4372 = vld [vmem:[#allocation8 + $0x18] sm:$0xff]
          %vm4373 = vcmp.lt.f32.partialorder %v4365, %v4369
          %vm4374 = vcmp.lt.f32.partialorder %v4366, %v4370
          %vm4375 = vcmp.lt.f32.partialorder %v4367, %v4371
          %vm4376 = vcmp.lt.f32.partialorder %v4368, %v4372
          %v4377 = vsel %vm4373, %v4365, %v4369
          %v4378 = vsel %vm4374, %v4366, %v4370
          %v4379 = vsel %vm4375, %v4367, %v4371
          %v4380 = vsel %vm4376, %v4368, %v4372
          %4381 = vst [vmem:[#allocation8] sm:$0xff] %v4377
          %4382 = vst [vmem:[#allocation8 + $0x8] sm:$0xff] %v4378
          %4383 = vst [vmem:[#allocation8 + $0x10] sm:$0xff] %v4379
          %4384 = vst [vmem:[#allocation8 + $0x18] sm:$0xff] %v4380
          %v4385 = vld [vmem:[%s201] sm:$0xff]
          %v4386 = vld [vmem:[%s201 + $0x8] sm:$0xff]
          %v4387 = vld [vmem:[%s201 + $0x10] sm:$0xff]
          %v4388 = vld [vmem:[%s201 + $0x18] sm:$0xff]
          %v4389 = vstv %s3880
          %v4390 = vsel %vm4373, %v4389, %v4385
          %v4391 = vsel %vm4374, %v4389, %v4386
          %v4392 = vsel %vm4375, %v4389, %v4387
          %v4393 = vsel %vm4376, %v4389, %v4388
          %4394 = vst [vmem:[%s201] sm:$0xff] %v4390
          %4395 = vst [vmem:[%s201 + $0x8] sm:$0xff] %v4391
          %4396 = vst [vmem:[%s201 + $0x10] sm:$0xff] %v4392
          %4397 = vst [vmem:[%s201 + $0x18] sm:$0xff] %v4393
          %v4398 = vld [vmem:[#allocation7] sm:$0xff]
          %v4399 = vld [vmem:[#allocation7 + $0x8] sm:$0xff]
          %v4400 = vld [vmem:[#allocation7 + $0x10] sm:$0xff]
          %v4401 = vld [vmem:[#allocation7 + $0x18] sm:$0xff]
          %v4402 = vld [vmem:[#allocation7 + $0x20] sm:$0xff]
          %v4403 = vld [vmem:[#allocation7 + $0x28] sm:$0xff]
          %v4404 = vld [vmem:[#allocation7 + $0x30] sm:$0xff]
          %v4405 = vld [vmem:[#allocation7 + $0x38] sm:$0xff]
          %4414 = vrot.lane.b32.xlu0 %v4398, 4
          %v4415 = vpop.permute.xlu0 %4414
          %4416 = vrot.lane.b32.xlu0 %v4399, 4
          %v4417 = vpop.permute.xlu0 %4416
          %4418 = vrot.lane.b32.xlu0 %v4400, 4
          %v4419 = vpop.permute.xlu0 %4418
          %4420 = vrot.lane.b32.xlu0 %v4401, 4
          %v4421 = vpop.permute.xlu0 %4420
          %4422 = vrot.lane.b32.xlu0 %v4402, 4
          %v4423 = vpop.permute.xlu0 %4422
          %4424 = vrot.lane.b32.xlu0 %v4403, 4
          %v4425 = vpop.permute.xlu0 %4424
          %4426 = vrot.lane.b32.xlu0 %v4404, 4
          %v4427 = vpop.permute.xlu0 %4426
          %4428 = vrot.lane.b32.xlu0 %v4405, 4
          %v4429 = vpop.permute.xlu0 %4428
          %v4430 = vsel %vm2349, %v4415, %v4417
          %v4431 = vsel %vm2349, %v4419, %v4421
          %v4432 = vsel %vm2349, %v4423, %v4425
          %v4433 = vsel %vm2349, %v4427, %v4429
          %4438 = vst [vmem:[#allocation6 + $0x8] sm:$0xff] %v4430
          %4439 = vst [vmem:[#allocation6 + $0x18] sm:$0xff] %v4431
          %4440 = vst [vmem:[#allocation6 + $0x28] sm:$0xff] %v4432
          %4441 = vst [vmem:[#allocation6 + $0x38] sm:$0xff] %v4433
        $region41: #{tpu_custom_call.1} parent=27 // loop_footer
          %s267 = sadd.s32 1, %s263
        $region42: #{tpu_custom_call.1} parent=27 // loop_footer_branch
          %262 = sbr.rel target = $region38
        $region43: #{tpu_custom_call.1} parent=27 // loop_exit
          _
        %s4442 = sand.u32 %s82, 1
        %s4443 = scalar_lea.sflag [#allocation11], %s4442
        %s4444 = sand.u32 %s82, 1
        %s4445 = smul.addr %s4444, 32
        %s4446 = scalar_lea.vmem [#allocation14], %s4445
        // Predicated region
        $region44: #{tpu_custom_call.1} parent=27 // pred_check
          %p4447 = pneg %p92
        $region45: #{tpu_custom_call.1} parent=27 // pred_check_branch
          %4449 = sbr.rel (%p4447) target = $region47
        $region46: #{tpu_custom_call.1} parent=27 // pred_region
          %s4451 = ssub.s32 512, 512
          %4452 = vsyncadd %s4443, %s4451
          %s4453 = smul.addr %s22, 4
          %s4454 = smul.addr %s4453, 128
          %s4455 = scalar_lea.hbm %s2, %s4454
          %s4456 = sshll.u32 %s4446, 4
          %s4457 = int_to_ptr.vmem [resolvable:$true] %s4456
          %4462 = dma.vmem_to_hbm [thread:$0]  %s4457, 512, %s4455, %s4443, 128, 128, 8
        $region47: #{tpu_custom_call.1} parent=27 // pred_fallthru
          _
      $region28: #{tpu_custom_call.1} parent=5 // pred_fallthru
        _
      %p4463 = scmp.le.s32.totalorder 2, %s17
      // Predicated region
      $region48: #{tpu_custom_call.1} parent=5 // pred_check
        %p4464 = pneg %p4463
      $region49: #{tpu_custom_call.1} parent=5 // pred_check_branch
        %4466 = sbr.rel (%p4464) target = $region51
      $region50: #{tpu_custom_call.1} parent=5 // pred_region
        %s4467 = ssub.s32 %s17, 2
        // Predicated region
        $region52: #{tpu_custom_call.1} parent=50 // pred_check
          %p4468 = pneg %p98
        $region53: #{tpu_custom_call.1} parent=50 // pred_check_branch
          %4470 = sbr.rel (%p4468) target = $region55
        $region54: #{tpu_custom_call.1} parent=50 // pred_region
          %s4471 = sand.u32 %s83, 1
          %s4472 = scalar_lea.sflag [#allocation11], %s4471
          %s4473 = sand.u32 %s83, 1
          %s4474 = smul.addr %s4473, 32
          %s4475 = scalar_lea.vmem [#allocation14], %s4474
          %4476 = dma.done %s4472, 512
        $region55: #{tpu_custom_call.1} parent=50 // pred_fallthru
          _
      $region51: #{tpu_custom_call.1} parent=5 // pred_fallthru
        _
    $region6: #{tpu_custom_call.1} parent=1 // loop_footer
      %s21 = sadd.s32 1, %s17
    $region7: #{tpu_custom_call.1} parent=1 // loop_footer_branch
      %16 = sbr.rel target = $region3
    $region8: #{tpu_custom_call.1} parent=1 // loop_exit
      _
    %4477 = vsyncpa [#allocation10], 1
    %s4478 = scalar_lea.sflag [#allocation10], 1
    %4479 = vsyncpa %s4478, 1
    %4480 = vsyncpa [#allocation13], 1
    %s4481 = scalar_lea.sflag [#allocation13], 1
    %4482 = vsyncpa %s4481, 1
    %4483 = vsyncpa [#allocation11], 1
    %s4484 = scalar_lea.sflag [#allocation11], 1
    %4485 = vsyncpa %s4484, 1

</llo_original>
